<compile_context>
chip_gen: v5e
topology: v5e:2x2
jax: 0.10.0
libtpu: 0.0.40
codegen_flags: <defaults>
</compile_context>

<pallas_src>
import math
import numpy as np
import jax
import jax.numpy as jnp
from jax import lax
from jax.experimental import pallas as pl
from jax.experimental.pallas import tpu as pltpu

_LANE = 128
_SUBLANE = 8


# ----------------------------------------------------------------------------
# generation-aware VMEM budgeting
# ----------------------------------------------------------------------------
def _tpu_vmem_capacity_bytes():
    try:
        return int(pltpu.get_tpu_info().vmem_capacity_bytes)
    except Exception:
        return 64 << 20          # conservative fallback: v7x per-TC capacity


def _vmem_limit_for(need_bytes):
    """Scoped-VMEM limit: at least `need_bytes`, capped at ~75% of capacity."""
    cap = _tpu_vmem_capacity_bytes()
    ceiling = (cap * 3) // 4     # leave headroom for compiler-internal scratch
    return int(min(ceiling, max(int(need_bytes), 32 << 20)))


def _stream_tile_budget():
    """Per-pallas_call live-block budget for HBM-bound streaming kernels."""
    cap = _tpu_vmem_capacity_bytes()
    return (24 << 20) if cap <= (64 << 20) else (56 << 20)


# ----------------------------------------------------------------------------
# helpers: flatten volumes to lane-dense [rows, 128] slabs
# ----------------------------------------------------------------------------
def _flatten_lane(x, pad_value=0.0):
    flat = x.reshape(-1)
    total = flat.shape[0]
    pad = (-total) % (_LANE * _SUBLANE)
    if pad:
        flat = jnp.concatenate(
            [flat, jnp.full((pad,), pad_value, dtype=flat.dtype)])
    return flat.reshape(-1, _LANE), total


def _flatten_lane_batched(x, pad_value=0.0):
    """[Nc, ...] -> [Nc, rows, 128] lane-dense slab (+ valid element count)."""
    nc = x.shape[0]
    flat = x.reshape(nc, -1)
    total = flat.shape[1]
    pad = (-total) % (_LANE * _SUBLANE)
    if pad:
        flat = jnp.concatenate(
            [flat, jnp.full((nc, pad), pad_value, dtype=flat.dtype)], axis=1)
    return flat.reshape(nc, -1, _LANE), total


def _pick_tile_rows(rows, bytes_per_row, vmem_budget):
    """Largest tile-row count that divides `rows` and fits the VMEM budget."""
    for tr in (32768, 16384, 8192, 4096, 2048, 1024, 512, 256, 128, 64, 32, 16, 8):
        if rows % tr == 0 and tr * bytes_per_row <= vmem_budget:
            return tr
    return rows


# ----------------------------------------------------------------------------
# Kernel 1: fused occupancy gate + DDPM reverse diffusion.
#   * One whole chunk per block, grid=(num_chunks,), 'parallel'.
#   * In-kernel gate: sum(unnormalize(x)) >= min_points, folded to
#     0.5*(sum(x) + N) (slab padding is -1 so padded voxels net 0).
#   * Timestep loop reads/writes the output block (no VMEM scratch copy);
#     coefficients are folded so each step costs 5 VALU ops per element.
#   * The UNet3D eps-predictor is stubbed to zeros, so diffusers
#     DDPMScheduler.step (eps-pred, clip_sample=True) collapses to the
#     coefficient form used here.
# ----------------------------------------------------------------------------
def _make_fused_gate_ddpm_kernel(n_steps, n_elems, min_points, unroll):
    min_points = float(min_points)
    n_elems = float(n_elems)

    def kernel(coeff_ref, s_ref, o_ref):
        x0 = s_ref[...]                                  # (1, rows, 128)
        # occupancy gate: sum((x+1)/2) == 0.5*(sum(x) + N); -1 padding nets 0.
        occ_sum = 0.5 * (jnp.sum(x0) + n_elems)
        o_ref[...] = x0          # loop init / pass-through when gated off

        @pl.when(occ_sum >= min_points)
        def _():
            def body(t, carry):
                x = o_ref[...]
                a_t = coeff_ref[3 * t]           # c_orig / sqrt(abar_t)
                bound = coeff_ref[3 * t + 1]     # c_orig (folded clip bound)
                c_samp = coeff_ref[3 * t + 2]    # c_sample
                # TODO(synk): eps-predictor (UNet3D, get_model(config)) has no
                # reference implementation; eps == 0 is folded into the coeffs.
                y = jnp.minimum(jnp.maximum(x * a_t, -bound), bound) + c_samp * x
                o_ref[...] = y
                return carry

            lax.fori_loop(0, n_steps, body, 0, unroll=unroll)

    return kernel


def fused_gate_ddpm(slab, coeffs, *, min_points):
    """slab: [Nc, rows, 128] f32 (padding == -1); coeffs: flat (3*T,) f32."""
    nc, rows, lane = slab.shape
    assert lane == _LANE and rows % _SUBLANE == 0
    n_steps = int(coeffs.shape[0]) // 3
    block_bytes = rows * _LANE * 4
    # in + out blocks, each double-buffered, + headroom for internal scratch.
    vmem_limit = _vmem_limit_for(4 * block_bytes + (4 << 20))
    unroll = n_steps if n_steps <= 16 else 4
    # TODO(synk): a bf16-resident state would ~double VALU throughput on
    # v6e/v7x but risks flipping voxels at the steep density_to_x threshold
    # (and is unsupported on v5e's VPU); kept in f32 pending numeric validation.
    kernel = _make_fused_gate_ddpm_kernel(n_steps, rows * _LANE, min_points,
                                          unroll)
    return pl.pallas_call(
        kernel,
        out_shape=jax.ShapeDtypeStruct((nc, rows, _LANE), jnp.float32),
        grid_spec=pltpu.PrefetchScalarGridSpec(
            num_scalar_prefetch=1,                        # coeffs -> SMEM once
            grid=(nc,),
            in_specs=[pl.BlockSpec((1, rows, _LANE),
                                   lambda c, coeff: (c, 0, 0))],
            out_specs=pl.BlockSpec((1, rows, _LANE),
                                   lambda c, coeff: (c, 0, 0)),
        ),
        compiler_params=pltpu.CompilerParams(
            dimension_semantics=("parallel",),
            vmem_limit_bytes=vmem_limit),
    )(coeffs, slab)


# ----------------------------------------------------------------------------
# Kernel 2: density_to_x(activation='sigmoid') + binary threshold + .int()
# ----------------------------------------------------------------------------
def _density_to_x_kernel(d_ref, o_ref):
    x = 2.0 * jax.nn.sigmoid(1000.0 * (d_ref[...] - 0.01)) - 1.0
    x = jnp.where(x > 0.5, 1.0, x)                    # x[x > 0.5] = 1.0
    o_ref[...] = x.astype(jnp.int32)                  # truncation, like .int()


def density_to_x(density):
    shape = density.shape
    d2d, total = _flatten_lane(density.astype(jnp.float32))
    rows = d2d.shape[0]
    # f32 in + int32 out, both double-buffered.
    bytes_per_row = 4 * _LANE * 4
    tr = _pick_tile_rows(rows, bytes_per_row, _stream_tile_budget())
    vmem_limit = _vmem_limit_for(tr * bytes_per_row + (4 << 20))
    out = pl.pallas_call(
        _density_to_x_kernel,
        out_shape=jax.ShapeDtypeStruct((rows, _LANE), jnp.int32),
        grid_spec=pltpu.PrefetchScalarGridSpec(
            num_scalar_prefetch=0,
            grid=(rows // tr,),
            in_specs=[pl.BlockSpec((tr, _LANE), lambda i: (i, 0))],
            out_specs=pl.BlockSpec((tr, _LANE), lambda i: (i, 0)),
        ),
        compiler_params=pltpu.CompilerParams(
            dimension_semantics=("parallel",),
            vmem_limit_bytes=vmem_limit),
    )(d2d)
    return out.reshape(-1)[:total].reshape(shape)


# ----------------------------------------------------------------------------
# glue: chunking / reassembly
#   fast path (volume tiles evenly): single device-side reshape+transpose
#   ragged fallback: original per-chunk slicing semantics
# ----------------------------------------------------------------------------
def _chunk_volume_even(vol, ch, cw, cd):
    B, C, H, W, D = vol.shape
    nh, nw, nd = H // ch, W // cw, D // cd
    x = vol.reshape(B, C, nh, ch, nw, cw, nd, cd)
    x = jnp.transpose(x, (2, 4, 6, 0, 1, 3, 5, 7))   # [nh,nw,nd,B,C,ch,cw,cd]
    return x.reshape(nh * nw * nd, B, C, ch, cw, cd)


def _reassemble_volume_even(chunks, volume_shape, ch, cw, cd):
    B, C, H, W, D = volume_shape
    nh, nw, nd = H // ch, W // cw, D // cd
    x = chunks.reshape(nh, nw, nd, B, C, ch, cw, cd)
    x = jnp.transpose(x, (3, 4, 0, 5, 1, 6, 2, 7))   # [B,C,nh,ch,nw,cw,nd,cd]
    return x.reshape(B, C, H, W, D)


def chunk_voxel_volume(voxel_volume, chunk_size=32):
    assert voxel_volume.ndim == 5
    B, C, H, W, D = voxel_volume.shape
    chunks = []
    for h in range(0, H, chunk_size):
        for w in range(0, W, chunk_size):
            for d in range(0, D, chunk_size):
                chunks.append(voxel_volume[..., h:h + chunk_size,
                                           w:w + chunk_size,
                                           d:d + chunk_size])
    return chunks


def reassemble_voxel_volume(volume_chunks, volume_shape):
    assert len(volume_shape) == 5
    B, C, H, W, D = volume_shape
    bb, cc, hh, ww, dd = volume_chunks[0].shape
    vol = jnp.zeros(volume_shape, dtype=volume_chunks[0].dtype)
    idx = 0
    for h in range(0, H, hh):
        for w in range(0, W, ww):
            for d in range(0, D, dd):
                vol = vol.at[..., h:h + hh, w:w + ww, d:d + dd].set(
                    volume_chunks[idx])
                idx += 1
    return vol


# ----------------------------------------------------------------------------
# Nerfbusters module
# ----------------------------------------------------------------------------
class NerfbustersPallas:
    def __init__(self, noise_scheduler='ddpm', num_inference_steps=100,
                 beta_start=0.0015, beta_end=0.05, model_channels=32,
                 num_res_blocks=1, channel_mult=(1, 2, 4),
                 attention_resolutions=(4,), architecture='unet3d',
                 condition_on_scale=True, guidance_weight=1.0,
                 num_train_timesteps=1000):
        assert noise_scheduler == 'ddpm'
        self.num_inference_steps = num_inference_steps
        self.num_train_timesteps = num_train_timesteps
        betas = np.linspace(beta_start, beta_end, num_train_timesteps,
                            dtype=np.float64)
        alphas = 1.0 - betas
        self.alphas_cumprod = np.cumprod(alphas)
        self.model_channels = model_channels
        self.guidance_weight = guidance_weight
        # TODO(synk): get_model(config) UNet3D architecture/weights are not part
        # of the reference source; the epsilon predictor is stubbed (zeros).

    # --- folded diffusers DDPMScheduler.step coefficients (eps == 0) --------
    #   y = clamp(x * c_orig/sqrt(abar_t), -c_orig, c_orig) + c_sample * x
    def _coeff_table(self, timesteps, num_inference_steps):
        ac = self.alphas_cumprod
        flat = []
        for t in timesteps:
            prev_t = t - self.num_train_timesteps // num_inference_steps
            abar_t = float(ac[t])
            abar_prev = float(ac[prev_t]) if prev_t >= 0 else 1.0
            current_beta = 1.0 - abar_t / abar_prev
            c_orig = math.sqrt(abar_prev) * current_beta / (1.0 - abar_t)
            c_sample = (math.sqrt(abar_t / abar_prev) * (1.0 - abar_prev)
                        / (1.0 - abar_t))
            a_t = c_orig / math.sqrt(abar_t)      # fold 1/sqrt(abar_t) * c_orig
            flat.extend([a_t, c_orig, c_sample])
        return jnp.asarray(np.asarray(flat, dtype=np.float32))   # (3*T,)

    # --- reverse diffusion: all chunks, all timesteps, one fused kernel ------
    def reverse_process_batched(self, chunks, scale=None,
                                num_inference_steps=None, starting_t=1000,
                                min_points=10):
        """chunks: [Nc, B, C, h, w, d] float32."""
        if num_inference_steps is None:
            num_inference_steps = self.num_inference_steps
        nc = chunks.shape[0]
        chunk_shape = chunks.shape[1:]

        # lane-dense slab; pad with -1 so padded voxels add 0 to the occ gate.
        slab, total = _flatten_lane_batched(chunks.astype(jnp.float32),
                                            pad_value=-1.0)

        step_size = starting_t // num_inference_steps
        timesteps = list(range(starting_t - 1, 0, -step_size))
        coeffs = self._coeff_table(timesteps, num_inference_steps)   # (3*T,)

        # TODO(synk): `scale` conditioning feeds the (stubbed) UNet3D only.
        # TODO(synk): DDPM posterior variance noise (torch.randn inside
        # scheduler.step) omitted for determinism.
        out_slab = fused_gate_ddpm(slab, coeffs, min_points=min_points)
        out = out_slab.reshape(nc, -1)[:, :total].reshape((nc,) + chunk_shape)
        return out

    def reverse_process(self, sample, scale=None, num_inference_steps=None,
                        starting_t=1000, min_points=10):
        return self.reverse_process_batched(
            sample[None], scale=scale,
            num_inference_steps=num_inference_steps,
            starting_t=starting_t, min_points=min_points)[0]

    # --- point-cloud -> occupancy grid ---------------------------------------
    def convert(self, xyz):
        # TODO(synk): open3d VoxelGrid.create_from_point_cloud replaced by a
        # direct floor-quantization voxelizer (no open3d dependency).
        pts = np.asarray(jax.device_get(xyz)).transpose(0, 2, 1).reshape(-1, 3)
        voxel_size = 0.01
        min_b = pts.min(axis=0)
        max_b = pts.max(axis=0)
        indices = np.floor((pts - min_b) / voxel_size).astype(np.int64)
        non_uniform_voxel_dims = ((max_b - min_b) / voxel_size).astype(np.int64)
        num_cells = int(non_uniform_voxel_dims.max())
        num_cells = int(np.ceil(num_cells / 32.0) * 32.0)
        assert num_cells < 500, 'The number of cells is too big'
        vol = np.zeros((1, 1, num_cells, num_cells, num_cells), dtype=bool)
        vol[..., (indices[:, 0] - 1) % num_cells,
                 (indices[:, 1] - 1) % num_cells,
                 (indices[:, 2] - 1) % num_cells] = True
        colors = np.zeros((indices.shape[0], 3), dtype=np.float64)
        return jnp.asarray(vol), colors, non_uniform_voxel_dims

    # --- forward --------------------------------------------------------------
    def forward(self, corrupted_pcl):
        chunk_size = 128
        corrupted_voxel_volume, colors, og_bins = self.convert(corrupted_pcl)
        corrupted_voxel_volume = corrupted_voxel_volume.astype(jnp.float32)
        B, C, H, W, D = corrupted_voxel_volume.shape
        scale = chunk_size ** 3 / corrupted_voxel_volume.shape[-1] ** 3
        scale = jnp.full((B,), scale, dtype=jnp.float32)

        ch, cw, cd = min(chunk_size, H), min(chunk_size, W), min(chunk_size, D)
        if H % ch == 0 and W % cw == 0 and D % cd == 0:
            # fast path: device-side reshape/transpose chunking, one fused
            # reverse-diffusion pallas_call over all chunks, reshape back.
            stacked = _chunk_volume_even(corrupted_voxel_volume, ch, cw, cd)
            cleaned = self.reverse_process_batched(
                stacked, scale=scale,
                num_inference_steps=self.num_inference_steps)
            clean_density = _reassemble_volume_even(
                cleaned, (B, C, H, W, D), ch, cw, cd)
        else:
            # ragged fallback: original slicing semantics; same-shaped chunks
            # still batched through one fused call each.
            chunks = chunk_voxel_volume(corrupted_voxel_volume,
                                        chunk_size=chunk_size)
            cleaned = [None] * len(chunks)
            groups = {}
            for idx, chk in enumerate(chunks):
                groups.setdefault(tuple(chk.shape), []).append(idx)
            for _, idxs in groups.items():
                stacked = jnp.stack([chunks[i] for i in idxs])
                out = self.reverse_process_batched(
                    stacked, scale=scale,
                    num_inference_steps=self.num_inference_steps)
                for j, i in enumerate(idxs):
                    cleaned[i] = out[j]
            clean_density = reassemble_voxel_volume(
                cleaned, (B, C, H, W, D))

        clean_volume = density_to_x(clean_density)
        clean_volume = clean_volume[..., :int(og_bins[0]),
                                    :int(og_bins[1]), :int(og_bins[2])]
        # TODO(synk): test_volume() open3d visualization, ipdb.set_trace() and
        # torch.cuda.empty_cache() are host-side debug ops with no kernel meaning.
        return clean_volume


if __name__ == "__main__":
    key = jax.random.PRNGKey(0)
    # corrupted point cloud [B, 3, N]; coordinates span ~0.3m so the voxelizer
    # (voxel_size=0.01) produces a small 32^3 occupancy grid.
    corrupted_pcl = jax.random.uniform(key, (1, 3, 256),
                                       minval=0.0, maxval=0.30,
                                       dtype=jnp.float32)
    model = NerfbustersPallas(num_inference_steps=10)  # small # steps for test
    out = model.forward(corrupted_pcl)
    out = jax.block_until_ready(out)
    assert out.dtype == jnp.int32 and out.ndim == 5
    print("KERNEL_OK")
</pallas_src>

<mosaic_0001>
module attributes {stable_mosaic.version = 11 : i64} {
  func.func @kernel(%arg0: i32, %arg1: memref<30xf32, #tpu.memory_space<smem>>, %arg2: memref<1x256x128xf32, #tpu.memory_space<vmem>>, %arg3: memref<1x256x128xf32, #tpu.memory_space<vmem>>) attributes {dimension_semantics = [#tpu.dimension_semantics<parallel>], iteration_bounds = array<i64: 1>, scalar_prefetch = 1 : i64, scratch_operands = 0 : i64, tpu.core_type = #tpu.core_type<tc>, window_params = [{transform_indices = @transform_0, window_bounds = array<i64: 1, 256, 128>}, {transform_indices = @transform_1, window_bounds = array<i64: 1, 256, 128>}]} {
    %c0 = arith.constant 0 : index
    %c0_0 = arith.constant 0 : index
    %c0_1 = arith.constant 0 : index
    %0 = vector.load %arg2[%c0, %c0_0, %c0_1] : memref<1x256x128xf32, #tpu.memory_space<vmem>>, vector<1x256x128xf32>
    %1 = vector.shape_cast %0 : vector<1x256x128xf32> to vector<1x1x256x128xf32>
    %cst = arith.constant dense<0.000000e+00> : vector<1xf32>
    %2 = vector.multi_reduction <add>, %1, %cst [1, 2, 3] : vector<1x1x256x128xf32> to vector<1xf32>
    %3 = vector.shape_cast %2 : vector<1xf32> to vector<1x1x1x1xf32>
    %4 = vector.extract %3[0, 0, 0, 0] : f32 from vector<1x1x1x1xf32>
    %cst_2 = arith.constant 3.276800e+04 : f32
    %5 = arith.addf %4, %cst_2 : f32
    %cst_3 = arith.constant 5.000000e-01 : f32
    %6 = arith.mulf %cst_3, %5 : f32
    %c0_4 = arith.constant 0 : index
    %c0_5 = arith.constant 0 : index
    %c0_6 = arith.constant 0 : index
    %7 = vector.load %arg3[%c0_4, %c0_5, %c0_6] : memref<1x256x128xf32, #tpu.memory_space<vmem>>, vector<1x256x128xf32>
    tpu.vector_store %arg3[%c0_4, %c0_5, %c0_6], %0 {strides = array<i32>} : memref<1x256x128xf32, #tpu.memory_space<vmem>>, vector<1x256x128xf32>,
    %cst_7 = arith.constant 1.000000e+01 : f32
    %8 = arith.cmpf oge, %6, %cst_7 : f32
    %9 = arith.extui %8 : i1 to i32
    %c0_i32 = arith.constant 0 : i32
    %10 = arith.cmpi ne, %9, %c0_i32 : i32
    scf.if %10 {
      %c0_i32_8 = arith.constant 0 : i32
      %c0_9 = arith.constant 0 : index
      %c0_10 = arith.constant 0 : index
      %c0_11 = arith.constant 0 : index
      %11 = vector.load %arg3[%c0_9, %c0_10, %c0_11] : memref<1x256x128xf32, #tpu.memory_space<vmem>>, vector<1x256x128xf32>
      %c3_i32 = arith.constant 3 : i32
      %12 = arith.muli %c3_i32, %c0_i32_8 : i32
      %13 = arith.index_cast %12 : i32 to index
      %14 = memref.load %arg1[%13] : memref<30xf32, #tpu.memory_space<smem>>
      %c3_i32_12 = arith.constant 3 : i32
      %15 = arith.muli %c3_i32_12, %c0_i32_8 : i32
      %c1_i32 = arith.constant 1 : i32
      %16 = arith.addi %15, %c1_i32 : i32
      %17 = arith.index_cast %16 : i32 to index
      %18 = memref.load %arg1[%17] : memref<30xf32, #tpu.memory_space<smem>>
      %c3_i32_13 = arith.constant 3 : i32
      %19 = arith.muli %c3_i32_13, %c0_i32_8 : i32
      %c2_i32 = arith.constant 2 : i32
      %20 = arith.addi %19, %c2_i32 : i32
      %21 = arith.index_cast %20 : i32 to index
      %22 = memref.load %arg1[%21] : memref<30xf32, #tpu.memory_space<smem>>
      %23 = vector.broadcast %14 : f32 to vector<1x256x128xf32>
      %24 = arith.mulf %11, %23 : vector<1x256x128xf32>
      %cst_14 = arith.constant 0.000000e+00 : f32
      %25 = arith.subf %cst_14, %18 : f32
      %26 = vector.broadcast %25 : f32 to vector<1x256x128xf32>
      %27 = arith.maximumf %24, %26 : vector<1x256x128xf32>
      %28 = vector.broadcast %18 : f32 to vector<1x256x128xf32>
      %29 = arith.minimumf %27, %28 : vector<1x256x128xf32>
      %30 = vector.broadcast %22 : f32 to vector<1x256x128xf32>
      %31 = arith.mulf %30, %11 : vector<1x256x128xf32>
      %32 = arith.addf %29, %31 : vector<1x256x128xf32>
      %c0_15 = arith.constant 0 : index
      %c0_16 = arith.constant 0 : index
      %c0_17 = arith.constant 0 : index
      %33 = vector.load %arg3[%c0_15, %c0_16, %c0_17] : memref<1x256x128xf32, #tpu.memory_space<vmem>>, vector<1x256x128xf32>
      tpu.vector_store %arg3[%c0_15, %c0_16, %c0_17], %32 {strides = array<i32>} : memref<1x256x128xf32, #tpu.memory_space<vmem>>, vector<1x256x128xf32>,
      %c1_i32_18 = arith.constant 1 : i32
      %c0_19 = arith.constant 0 : index
      %c0_20 = arith.constant 0 : index
      %c0_21 = arith.constant 0 : index
      %34 = vector.load %arg3[%c0_19, %c0_20, %c0_21] : memref<1x256x128xf32, #tpu.memory_space<vmem>>, vector<1x256x128xf32>
      %c3_i32_22 = arith.constant 3 : i32
      %35 = arith.muli %c3_i32_22, %c1_i32_18 : i32
      %36 = arith.index_cast %35 : i32 to index
      %37 = memref.load %arg1[%36] : memref<30xf32, #tpu.memory_space<smem>>
      %c3_i32_23 = arith.constant 3 : i32
      %38 = arith.muli %c3_i32_23, %c1_i32_18 : i32
      %c1_i32_24 = arith.constant 1 : i32
      %39 = arith.addi %38, %c1_i32_24 : i32
      %40 = arith.index_cast %39 : i32 to index
      %41 = memref.load %arg1[%40] : memref<30xf32, #tpu.memory_space<smem>>
      %c3_i32_25 = arith.constant 3 : i32
      %42 = arith.muli %c3_i32_25, %c1_i32_18 : i32
      %c2_i32_26 = arith.constant 2 : i32
      %43 = arith.addi %42, %c2_i32_26 : i32
      %44 = arith.index_cast %43 : i32 to index
      %45 = memref.load %arg1[%44] : memref<30xf32, #tpu.memory_space<smem>>
      %46 = vector.broadcast %37 : f32 to vector<1x256x128xf32>
      %47 = arith.mulf %34, %46 : vector<1x256x128xf32>
      %cst_27 = arith.constant 0.000000e+00 : f32
      %48 = arith.subf %cst_27, %41 : f32
      %49 = vector.broadcast %48 : f32 to vector<1x256x128xf32>
      %50 = arith.maximumf %47, %49 : vector<1x256x128xf32>
      %51 = vector.broadcast %41 : f32 to vector<1x256x128xf32>
      %52 = arith.minimumf %50, %51 : vector<1x256x128xf32>
      %53 = vector.broadcast %45 : f32 to vector<1x256x128xf32>
      %54 = arith.mulf %53, %34 : vector<1x256x128xf32>
      %55 = arith.addf %52, %54 : vector<1x256x128xf32>
      %c0_28 = arith.constant 0 : index
      %c0_29 = arith.constant 0 : index
      %c0_30 = arith.constant 0 : index
      %56 = vector.load %arg3[%c0_28, %c0_29, %c0_30] : memref<1x256x128xf32, #tpu.memory_space<vmem>>, vector<1x256x128xf32>
      tpu.vector_store %arg3[%c0_28, %c0_29, %c0_30], %55 {strides = array<i32>} : memref<1x256x128xf32, #tpu.memory_space<vmem>>, vector<1x256x128xf32>,
      %c2_i32_31 = arith.constant 2 : i32
      %c0_32 = arith.constant 0 : index
      %c0_33 = arith.constant 0 : index
      %c0_34 = arith.constant 0 : index
      %57 = vector.load %arg3[%c0_32, %c0_33, %c0_34] : memref<1x256x128xf32, #tpu.memory_space<vmem>>, vector<1x256x128xf32>
      %c3_i32_35 = arith.constant 3 : i32
      %58 = arith.muli %c3_i32_35, %c2_i32_31 : i32
      %59 = arith.index_cast %58 : i32 to index
      %60 = memref.load %arg1[%59] : memref<30xf32, #tpu.memory_space<smem>>
      %c3_i32_36 = arith.constant 3 : i32
      %61 = arith.muli %c3_i32_36, %c2_i32_31 : i32
      %c1_i32_37 = arith.constant 1 : i32
      %62 = arith.addi %61, %c1_i32_37 : i32
      %63 = arith.index_cast %62 : i32 to index
      %64 = memref.load %arg1[%63] : memref<30xf32, #tpu.memory_space<smem>>
      %c3_i32_38 = arith.constant 3 : i32
      %65 = arith.muli %c3_i32_38, %c2_i32_31 : i32
      %c2_i32_39 = arith.constant 2 : i32
      %66 = arith.addi %65, %c2_i32_39 : i32
      %67 = arith.index_cast %66 : i32 to index
      %68 = memref.load %arg1[%67] : memref<30xf32, #tpu.memory_space<smem>>
      %69 = vector.broadcast %60 : f32 to vector<1x256x128xf32>
      %70 = arith.mulf %57, %69 : vector<1x256x128xf32>
      %cst_40 = arith.constant 0.000000e+00 : f32
      %71 = arith.subf %cst_40, %64 : f32
      %72 = vector.broadcast %71 : f32 to vector<1x256x128xf32>
      %73 = arith.maximumf %70, %72 : vector<1x256x128xf32>
      %74 = vector.broadcast %64 : f32 to vector<1x256x128xf32>
      %75 = arith.minimumf %73, %74 : vector<1x256x128xf32>
      %76 = vector.broadcast %68 : f32 to vector<1x256x128xf32>
      %77 = arith.mulf %76, %57 : vector<1x256x128xf32>
      %78 = arith.addf %75, %77 : vector<1x256x128xf32>
      %c0_41 = arith.constant 0 : index
      %c0_42 = arith.constant 0 : index
      %c0_43 = arith.constant 0 : index
      %79 = vector.load %arg3[%c0_41, %c0_42, %c0_43] : memref<1x256x128xf32, #tpu.memory_space<vmem>>, vector<1x256x128xf32>
      tpu.vector_store %arg3[%c0_41, %c0_42, %c0_43], %78 {strides = array<i32>} : memref<1x256x128xf32, #tpu.memory_space<vmem>>, vector<1x256x128xf32>,
      %c3_i32_44 = arith.constant 3 : i32
      %c0_45 = arith.constant 0 : index
      %c0_46 = arith.constant 0 : index
      %c0_47 = arith.constant 0 : index
      %80 = vector.load %arg3[%c0_45, %c0_46, %c0_47] : memref<1x256x128xf32, #tpu.memory_space<vmem>>, vector<1x256x128xf32>
      %c3_i32_48 = arith.constant 3 : i32
      %81 = arith.muli %c3_i32_48, %c3_i32_44 : i32
      %82 = arith.index_cast %81 : i32 to index
      %83 = memref.load %arg1[%82] : memref<30xf32, #tpu.memory_space<smem>>
      %c3_i32_49 = arith.constant 3 : i32
      %84 = arith.muli %c3_i32_49, %c3_i32_44 : i32
      %c1_i32_50 = arith.constant 1 : i32
      %85 = arith.addi %84, %c1_i32_50 : i32
      %86 = arith.index_cast %85 : i32 to index
      %87 = memref.load %arg1[%86] : memref<30xf32, #tpu.memory_space<smem>>
      %c3_i32_51 = arith.constant 3 : i32
      %88 = arith.muli %c3_i32_51, %c3_i32_44 : i32
      %c2_i32_52 = arith.constant 2 : i32
      %89 = arith.addi %88, %c2_i32_52 : i32
      %90 = arith.index_cast %89 : i32 to index
      %91 = memref.load %arg1[%90] : memref<30xf32, #tpu.memory_space<smem>>
      %92 = vector.broadcast %83 : f32 to vector<1x256x128xf32>
      %93 = arith.mulf %80, %92 : vector<1x256x128xf32>
      %cst_53 = arith.constant 0.000000e+00 : f32
      %94 = arith.subf %cst_53, %87 : f32
      %95 = vector.broadcast %94 : f32 to vector<1x256x128xf32>
      %96 = arith.maximumf %93, %95 : vector<1x256x128xf32>
      %97 = vector.broadcast %87 : f32 to vector<1x256x128xf32>
      %98 = arith.minimumf %96, %97 : vector<1x256x128xf32>
      %99 = vector.broadcast %91 : f32 to vector<1x256x128xf32>
      %100 = arith.mulf %99, %80 : vector<1x256x128xf32>
      %101 = arith.addf %98, %100 : vector<1x256x128xf32>
      %c0_54 = arith.constant 0 : index
      %c0_55 = arith.constant 0 : index
      %c0_56 = arith.constant 0 : index
      %102 = vector.load %arg3[%c0_54, %c0_55, %c0_56] : memref<1x256x128xf32, #tpu.memory_space<vmem>>, vector<1x256x128xf32>
      tpu.vector_store %arg3[%c0_54, %c0_55, %c0_56], %101 {strides = array<i32>} : memref<1x256x128xf32, #tpu.memory_space<vmem>>, vector<1x256x128xf32>,
      %c4_i32 = arith.constant 4 : i32
      %c0_57 = arith.constant 0 : index
      %c0_58 = arith.constant 0 : index
      %c0_59 = arith.constant 0 : index
      %103 = vector.load %arg3[%c0_57, %c0_58, %c0_59] : memref<1x256x128xf32, #tpu.memory_space<vmem>>, vector<1x256x128xf32>
      %c3_i32_60 = arith.constant 3 : i32
      %104 = arith.muli %c3_i32_60, %c4_i32 : i32
      %105 = arith.index_cast %104 : i32 to index
      %106 = memref.load %arg1[%105] : memref<30xf32, #tpu.memory_space<smem>>
      %c3_i32_61 = arith.constant 3 : i32
      %107 = arith.muli %c3_i32_61, %c4_i32 : i32
      %c1_i32_62 = arith.constant 1 : i32
      %108 = arith.addi %107, %c1_i32_62 : i32
      %109 = arith.index_cast %108 : i32 to index
      %110 = memref.load %arg1[%109] : memref<30xf32, #tpu.memory_space<smem>>
      %c3_i32_63 = arith.constant 3 : i32
      %111 = arith.muli %c3_i32_63, %c4_i32 : i32
      %c2_i32_64 = arith.constant 2 : i32
      %112 = arith.addi %111, %c2_i32_64 : i32
      %113 = arith.index_cast %112 : i32 to index
      %114 = memref.load %arg1[%113] : memref<30xf32, #tpu.memory_space<smem>>
      %115 = vector.broadcast %106 : f32 to vector<1x256x128xf32>
      %116 = arith.mulf %103, %115 : vector<1x256x128xf32>
      %cst_65 = arith.constant 0.000000e+00 : f32
      %117 = arith.subf %cst_65, %110 : f32
      %118 = vector.broadcast %117 : f32 to vector<1x256x128xf32>
      %119 = arith.maximumf %116, %118 : vector<1x256x128xf32>
      %120 = vector.broadcast %110 : f32 to vector<1x256x128xf32>
      %121 = arith.minimumf %119, %120 : vector<1x256x128xf32>
      %122 = vector.broadcast %114 : f32 to vector<1x256x128xf32>
      %123 = arith.mulf %122, %103 : vector<1x256x128xf32>
      %124 = arith.addf %121, %123 : vector<1x256x128xf32>
      %c0_66 = arith.constant 0 : index
      %c0_67 = arith.constant 0 : index
      %c0_68 = arith.constant 0 : index
      %125 = vector.load %arg3[%c0_66, %c0_67, %c0_68] : memref<1x256x128xf32, #tpu.memory_space<vmem>>, vector<1x256x128xf32>
      tpu.vector_store %arg3[%c0_66, %c0_67, %c0_68], %124 {strides = array<i32>} : memref<1x256x128xf32, #tpu.memory_space<vmem>>, vector<1x256x128xf32>,
      %c5_i32 = arith.constant 5 : i32
      %c0_69 = arith.constant 0 : index
      %c0_70 = arith.constant 0 : index
      %c0_71 = arith.constant 0 : index
      %126 = vector.load %arg3[%c0_69, %c0_70, %c0_71] : memref<1x256x128xf32, #tpu.memory_space<vmem>>, vector<1x256x128xf32>
      %c3_i32_72 = arith.constant 3 : i32
      %127 = arith.muli %c3_i32_72, %c5_i32 : i32
      %128 = arith.index_cast %127 : i32 to index
      %129 = memref.load %arg1[%128] : memref<30xf32, #tpu.memory_space<smem>>
      %c3_i32_73 = arith.constant 3 : i32
      %130 = arith.muli %c3_i32_73, %c5_i32 : i32
      %c1_i32_74 = arith.constant 1 : i32
      %131 = arith.addi %130, %c1_i32_74 : i32
      %132 = arith.index_cast %131 : i32 to index
      %133 = memref.load %arg1[%132] : memref<30xf32, #tpu.memory_space<smem>>
      %c3_i32_75 = arith.constant 3 : i32
      %134 = arith.muli %c3_i32_75, %c5_i32 : i32
      %c2_i32_76 = arith.constant 2 : i32
      %135 = arith.addi %134, %c2_i32_76 : i32
      %136 = arith.index_cast %135 : i32 to index
      %137 = memref.load %arg1[%136] : memref<30xf32, #tpu.memory_space<smem>>
      %138 = vector.broadcast %129 : f32 to vector<1x256x128xf32>
      %139 = arith.mulf %126, %138 : vector<1x256x128xf32>
      %cst_77 = arith.constant 0.000000e+00 : f32
      %140 = arith.subf %cst_77, %133 : f32
      %141 = vector.broadcast %140 : f32 to vector<1x256x128xf32>
      %142 = arith.maximumf %139, %141 : vector<1x256x128xf32>
      %143 = vector.broadcast %133 : f32 to vector<1x256x128xf32>
      %144 = arith.minimumf %142, %143 : vector<1x256x128xf32>
      %145 = vector.broadcast %137 : f32 to vector<1x256x128xf32>
      %146 = arith.mulf %145, %126 : vector<1x256x128xf32>
      %147 = arith.addf %144, %146 : vector<1x256x128xf32>
      %c0_78 = arith.constant 0 : index
      %c0_79 = arith.constant 0 : index
      %c0_80 = arith.constant 0 : index
      %148 = vector.load %arg3[%c0_78, %c0_79, %c0_80] : memref<1x256x128xf32, #tpu.memory_space<vmem>>, vector<1x256x128xf32>
      tpu.vector_store %arg3[%c0_78, %c0_79, %c0_80], %147 {strides = array<i32>} : memref<1x256x128xf32, #tpu.memory_space<vmem>>, vector<1x256x128xf32>,
      %c6_i32 = arith.constant 6 : i32
      %c0_81 = arith.constant 0 : index
      %c0_82 = arith.constant 0 : index
      %c0_83 = arith.constant 0 : index
      %149 = vector.load %arg3[%c0_81, %c0_82, %c0_83] : memref<1x256x128xf32, #tpu.memory_space<vmem>>, vector<1x256x128xf32>
      %c3_i32_84 = arith.constant 3 : i32
      %150 = arith.muli %c3_i32_84, %c6_i32 : i32
      %151 = arith.index_cast %150 : i32 to index
      %152 = memref.load %arg1[%151] : memref<30xf32, #tpu.memory_space<smem>>
      %c3_i32_85 = arith.constant 3 : i32
      %153 = arith.muli %c3_i32_85, %c6_i32 : i32
      %c1_i32_86 = arith.constant 1 : i32
      %154 = arith.addi %153, %c1_i32_86 : i32
      %155 = arith.index_cast %154 : i32 to index
      %156 = memref.load %arg1[%155] : memref<30xf32, #tpu.memory_space<smem>>
      %c3_i32_87 = arith.constant 3 : i32
      %157 = arith.muli %c3_i32_87, %c6_i32 : i32
      %c2_i32_88 = arith.constant 2 : i32
      %158 = arith.addi %157, %c2_i32_88 : i32
      %159 = arith.index_cast %158 : i32 to index
      %160 = memref.load %arg1[%159] : memref<30xf32, #tpu.memory_space<smem>>
      %161 = vector.broadcast %152 : f32 to vector<1x256x128xf32>
      %162 = arith.mulf %149, %161 : vector<1x256x128xf32>
      %cst_89 = arith.constant 0.000000e+00 : f32
      %163 = arith.subf %cst_89, %156 : f32
      %164 = vector.broadcast %163 : f32 to vector<1x256x128xf32>
      %165 = arith.maximumf %162, %164 : vector<1x256x128xf32>
      %166 = vector.broadcast %156 : f32 to vector<1x256x128xf32>
      %167 = arith.minimumf %165, %166 : vector<1x256x128xf32>
      %168 = vector.broadcast %160 : f32 to vector<1x256x128xf32>
      %169 = arith.mulf %168, %149 : vector<1x256x128xf32>
      %170 = arith.addf %167, %169 : vector<1x256x128xf32>
      %c0_90 = arith.constant 0 : index
      %c0_91 = arith.constant 0 : index
      %c0_92 = arith.constant 0 : index
      %171 = vector.load %arg3[%c0_90, %c0_91, %c0_92] : memref<1x256x128xf32, #tpu.memory_space<vmem>>, vector<1x256x128xf32>
      tpu.vector_store %arg3[%c0_90, %c0_91, %c0_92], %170 {strides = array<i32>} : memref<1x256x128xf32, #tpu.memory_space<vmem>>, vector<1x256x128xf32>,
      %c7_i32 = arith.constant 7 : i32
      %c0_93 = arith.constant 0 : index
      %c0_94 = arith.constant 0 : index
      %c0_95 = arith.constant 0 : index
      %172 = vector.load %arg3[%c0_93, %c0_94, %c0_95] : memref<1x256x128xf32, #tpu.memory_space<vmem>>, vector<1x256x128xf32>
      %c3_i32_96 = arith.constant 3 : i32
      %173 = arith.muli %c3_i32_96, %c7_i32 : i32
      %174 = arith.index_cast %173 : i32 to index
      %175 = memref.load %arg1[%174] : memref<30xf32, #tpu.memory_space<smem>>
      %c3_i32_97 = arith.constant 3 : i32
      %176 = arith.muli %c3_i32_97, %c7_i32 : i32
      %c1_i32_98 = arith.constant 1 : i32
      %177 = arith.addi %176, %c1_i32_98 : i32
      %178 = arith.index_cast %177 : i32 to index
      %179 = memref.load %arg1[%178] : memref<30xf32, #tpu.memory_space<smem>>
      %c3_i32_99 = arith.constant 3 : i32
      %180 = arith.muli %c3_i32_99, %c7_i32 : i32
      %c2_i32_100 = arith.constant 2 : i32
      %181 = arith.addi %180, %c2_i32_100 : i32
      %182 = arith.index_cast %181 : i32 to index
      %183 = memref.load %arg1[%182] : memref<30xf32, #tpu.memory_space<smem>>
      %184 = vector.broadcast %175 : f32 to vector<1x256x128xf32>
      %185 = arith.mulf %172, %184 : vector<1x256x128xf32>
      %cst_101 = arith.constant 0.000000e+00 : f32
      %186 = arith.subf %cst_101, %179 : f32
      %187 = vector.broadcast %186 : f32 to vector<1x256x128xf32>
      %188 = arith.maximumf %185, %187 : vector<1x256x128xf32>
      %189 = vector.broadcast %179 : f32 to vector<1x256x128xf32>
      %190 = arith.minimumf %188, %189 : vector<1x256x128xf32>
      %191 = vector.broadcast %183 : f32 to vector<1x256x128xf32>
      %192 = arith.mulf %191, %172 : vector<1x256x128xf32>
      %193 = arith.addf %190, %192 : vector<1x256x128xf32>
      %c0_102 = arith.constant 0 : index
      %c0_103 = arith.constant 0 : index
      %c0_104 = arith.constant 0 : index
      %194 = vector.load %arg3[%c0_102, %c0_103, %c0_104] : memref<1x256x128xf32, #tpu.memory_space<vmem>>, vector<1x256x128xf32>
      tpu.vector_store %arg3[%c0_102, %c0_103, %c0_104], %193 {strides = array<i32>} : memref<1x256x128xf32, #tpu.memory_space<vmem>>, vector<1x256x128xf32>,
      %c8_i32 = arith.constant 8 : i32
      %c0_105 = arith.constant 0 : index
      %c0_106 = arith.constant 0 : index
      %c0_107 = arith.constant 0 : index
      %195 = vector.load %arg3[%c0_105, %c0_106, %c0_107] : memref<1x256x128xf32, #tpu.memory_space<vmem>>, vector<1x256x128xf32>
      %c3_i32_108 = arith.constant 3 : i32
      %196 = arith.muli %c3_i32_108, %c8_i32 : i32
      %197 = arith.index_cast %196 : i32 to index
      %198 = memref.load %arg1[%197] : memref<30xf32, #tpu.memory_space<smem>>
      %c3_i32_109 = arith.constant 3 : i32
      %199 = arith.muli %c3_i32_109, %c8_i32 : i32
      %c1_i32_110 = arith.constant 1 : i32
      %200 = arith.addi %199, %c1_i32_110 : i32
      %201 = arith.index_cast %200 : i32 to index
      %202 = memref.load %arg1[%201] : memref<30xf32, #tpu.memory_space<smem>>
      %c3_i32_111 = arith.constant 3 : i32
      %203 = arith.muli %c3_i32_111, %c8_i32 : i32
      %c2_i32_112 = arith.constant 2 : i32
      %204 = arith.addi %203, %c2_i32_112 : i32
      %205 = arith.index_cast %204 : i32 to index
      %206 = memref.load %arg1[%205] : memref<30xf32, #tpu.memory_space<smem>>
      %207 = vector.broadcast %198 : f32 to vector<1x256x128xf32>
      %208 = arith.mulf %195, %207 : vector<1x256x128xf32>
      %cst_113 = arith.constant 0.000000e+00 : f32
      %209 = arith.subf %cst_113, %202 : f32
      %210 = vector.broadcast %209 : f32 to vector<1x256x128xf32>
      %211 = arith.maximumf %208, %210 : vector<1x256x128xf32>
      %212 = vector.broadcast %202 : f32 to vector<1x256x128xf32>
      %213 = arith.minimumf %211, %212 : vector<1x256x128xf32>
      %214 = vector.broadcast %206 : f32 to vector<1x256x128xf32>
      %215 = arith.mulf %214, %195 : vector<1x256x128xf32>
      %216 = arith.addf %213, %215 : vector<1x256x128xf32>
      %c0_114 = arith.constant 0 : index
      %c0_115 = arith.constant 0 : index
      %c0_116 = arith.constant 0 : index
      %217 = vector.load %arg3[%c0_114, %c0_115, %c0_116] : memref<1x256x128xf32, #tpu.memory_space<vmem>>, vector<1x256x128xf32>
      tpu.vector_store %arg3[%c0_114, %c0_115, %c0_116], %216 {strides = array<i32>} : memref<1x256x128xf32, #tpu.memory_space<vmem>>, vector<1x256x128xf32>,
      %c9_i32 = arith.constant 9 : i32
      %c0_117 = arith.constant 0 : index
      %c0_118 = arith.constant 0 : index
      %c0_119 = arith.constant 0 : index
      %218 = vector.load %arg3[%c0_117, %c0_118, %c0_119] : memref<1x256x128xf32, #tpu.memory_space<vmem>>, vector<1x256x128xf32>
      %c3_i32_120 = arith.constant 3 : i32
      %219 = arith.muli %c3_i32_120, %c9_i32 : i32
      %220 = arith.index_cast %219 : i32 to index
      %221 = memref.load %arg1[%220] : memref<30xf32, #tpu.memory_space<smem>>
      %c3_i32_121 = arith.constant 3 : i32
      %222 = arith.muli %c3_i32_121, %c9_i32 : i32
      %c1_i32_122 = arith.constant 1 : i32
      %223 = arith.addi %222, %c1_i32_122 : i32
      %224 = arith.index_cast %223 : i32 to index
      %225 = memref.load %arg1[%224] : memref<30xf32, #tpu.memory_space<smem>>
      %c3_i32_123 = arith.constant 3 : i32
      %226 = arith.muli %c3_i32_123, %c9_i32 : i32
      %c2_i32_124 = arith.constant 2 : i32
      %227 = arith.addi %226, %c2_i32_124 : i32
      %228 = arith.index_cast %227 : i32 to index
      %229 = memref.load %arg1[%228] : memref<30xf32, #tpu.memory_space<smem>>
      %230 = vector.broadcast %221 : f32 to vector<1x256x128xf32>
      %231 = arith.mulf %218, %230 : vector<1x256x128xf32>
      %cst_125 = arith.constant 0.000000e+00 : f32
      %232 = arith.subf %cst_125, %225 : f32
      %233 = vector.broadcast %232 : f32 to vector<1x256x128xf32>
      %234 = arith.maximumf %231, %233 : vector<1x256x128xf32>
      %235 = vector.broadcast %225 : f32 to vector<1x256x128xf32>
      %236 = arith.minimumf %234, %235 : vector<1x256x128xf32>
      %237 = vector.broadcast %229 : f32 to vector<1x256x128xf32>
      %238 = arith.mulf %237, %218 : vector<1x256x128xf32>
      %239 = arith.addf %236, %238 : vector<1x256x128xf32>
      %c0_126 = arith.constant 0 : index
      %c0_127 = arith.constant 0 : index
      %c0_128 = arith.constant 0 : index
      %240 = vector.load %arg3[%c0_126, %c0_127, %c0_128] : memref<1x256x128xf32, #tpu.memory_space<vmem>>, vector<1x256x128xf32>
      tpu.vector_store %arg3[%c0_126, %c0_127, %c0_128], %239 {strides = array<i32>} : memref<1x256x128xf32, #tpu.memory_space<vmem>>, vector<1x256x128xf32>,
      %c10_i32 = arith.constant 10 : i32
    } else {
    }
    return
  }
  func.func @transform_0(%arg0: i32, %arg1: memref<30xf32, #tpu.memory_space<smem>>) -> (i32, i32, i32) {
    %c0_i32 = arith.constant 0 : i32
    %c0_i32_0 = arith.constant 0 : i32
    %c0_i32_1 = arith.constant 0 : i32
    return %arg0, %c0_i32, %c0_i32_0 : i32, i32, i32
  }
  func.func @transform_1(%arg0: i32, %arg1: memref<30xf32, #tpu.memory_space<smem>>) -> (i32, i32, i32) {
    %c0_i32 = arith.constant 0 : i32
    %c0_i32_0 = arith.constant 0 : i32
    %c0_i32_1 = arith.constant 0 : i32
    return %arg0, %c0_i32, %c0_i32_0 : i32, i32, i32
  }
}

</mosaic_0001>

<llo_original>
// kernel: tpu_custom_call.1
$region0: #{tpu_custom_call.1}
  #allocation0 [shape = 'u32[]', space=smem, size = 0x4, offset = 0x4, fixed_abs, tag = 'smem constant byte address 0x4 - core index']
  #allocation1 [shape = 'u32[72,128]{1,0:T(1,128)}', space=vmem, size = 0x9000, scoped, tag = 'internal scratch']
  #allocation2 [shape = 's32[1]{0}', space=sflag, size = 0x4, scoped, tag = 'scoped memory for tpu_custom_call.1']
  #allocation3 [shape = 'u8[512]{0}', space=smem, size = 0x200, scoped, tag = 'prefetched SMEM operand 0']
  %s0 = inlined_call_operand.hbm [shape: f32[30], index: 0, kind: input, shape index: {}]
  %s1 = inlined_call_operand.hbm [shape: f32[1,256,128], index: 1, kind: input, shape index: {}]
  %s2 = inlined_call_operand.hbm [shape: f32[1,256,128], index: 2, kind: output, shape index: {}]
  %s3 = sld [smem:[#allocation0]]
  $region22: #{tpu_custom_call.1} parent=0
    _
  %s5 = ssub.s32 1, %s3
  %s6 = scalar_select 0, %s5, %s3
  %s8 = sshll.u32 %s0, 4
  %s9 = int_to_ptr.hbm [resolvable:$true] %s8
  %11 = dma.hbm_to_smem %s9, 16, [#allocation3], [#allocation2]
  %13 = dma.done [#allocation2], 16
  %14 = sfence
  $region1: #{tpu_custom_call.1} parent=0
    #allocation4 [shape = 'u8[131072]{0}', space=vmem, size = 0x20000, scoped, tag = 'input window, operand 1, single buffered']
    #allocation5 [shape = 's32[1]{0}', space=sflag, size = 0x4, scoped, tag = 'scoped memory for tpu_custom_call.1']
    #allocation6 [shape = 's32[1]{0}', space=sflag, size = 0x4, scoped, tag = 'scoped memory for tpu_custom_call.1']
    #allocation7 [shape = 'u8[131072]{0}', space=vmem, size = 0x20000, scoped, tag = 'output window, operand 0, single buffered']
    %15 = vsyncpa [#allocation5], 0
    %16 = vsyncpa [#allocation6], 0
    // Predicated region
    $region2: #{tpu_custom_call.1} parent=1 // pred_check
      _
    $region3: #{tpu_custom_call.1} parent=1 // pred_check_branch
      %18 = sbr.rel (0) target = $region5
    $region4: #{tpu_custom_call.1} parent=1 // pred_region
      %20 = vsyncadd [#allocation5], 0
      %s21 = sshll.u32 %s1, 4
      %s22 = int_to_ptr.hbm [resolvable:$true] %s21
      %s23 = sshll.u32 [#allocation4], 4
      %s24 = int_to_ptr.vmem [resolvable:$true] %s23
      %29 = dma.hbm_to_vmem [thread:$0]  %s22, 4096, %s24, [#allocation5], 128, 128, 8
    $region5: #{tpu_custom_call.1} parent=1 // pred_fallthru
      _
    // Predicated region
    $region6: #{tpu_custom_call.1} parent=1 // pred_check
      _
    $region7: #{tpu_custom_call.1} parent=1 // pred_check_branch
      %31 = sbr.rel (0) target = $region9
    $region8: #{tpu_custom_call.1} parent=1 // pred_region
      %33 = dma.done [#allocation5], 4096
    $region9: #{tpu_custom_call.1} parent=1 // pred_fallthru
      _
    %v34 = vld [vmem:[#allocation4] sm:$0xff]
    %v35 = vld [vmem:[#allocation4 + $0x8] sm:$0xff]
    %v36 = vld [vmem:[#allocation4 + $0x10] sm:$0xff]
    %v37 = vld [vmem:[#allocation4 + $0x18] sm:$0xff]
    %v38 = vld [vmem:[#allocation4 + $0x20] sm:$0xff]
    %v39 = vld [vmem:[#allocation4 + $0x28] sm:$0xff]
    %v40 = vld [vmem:[#allocation4 + $0x30] sm:$0xff]
    %v41 = vld [vmem:[#allocation4 + $0x38] sm:$0xff]
    %v42 = vld [vmem:[#allocation4 + $0x40] sm:$0xff]
    %v43 = vld [vmem:[#allocation4 + $0x48] sm:$0xff]
    %v44 = vld [vmem:[#allocation4 + $0x50] sm:$0xff]
    %v45 = vld [vmem:[#allocation4 + $0x58] sm:$0xff]
    %v46 = vld [vmem:[#allocation4 + $0x60] sm:$0xff]
    %v47 = vld [vmem:[#allocation4 + $0x68] sm:$0xff]
    %v48 = vld [vmem:[#allocation4 + $0x70] sm:$0xff]
    %v49 = vld [vmem:[#allocation4 + $0x78] sm:$0xff]
    %v50 = vld [vmem:[#allocation4 + $0x80] sm:$0xff]
    %v51 = vld [vmem:[#allocation4 + $0x88] sm:$0xff]
    %v52 = vld [vmem:[#allocation4 + $0x90] sm:$0xff]
    %v53 = vld [vmem:[#allocation4 + $0x98] sm:$0xff]
    %v54 = vld [vmem:[#allocation4 + $0xa0] sm:$0xff]
    %v55 = vld [vmem:[#allocation4 + $0xa8] sm:$0xff]
    %v56 = vld [vmem:[#allocation4 + $0xb0] sm:$0xff]
    %v57 = vld [vmem:[#allocation4 + $0xb8] sm:$0xff]
    %v58 = vld [vmem:[#allocation4 + $0xc0] sm:$0xff]
    %v59 = vld [vmem:[#allocation4 + $0xc8] sm:$0xff]
    %v60 = vld [vmem:[#allocation4 + $0xd0] sm:$0xff]
    %v61 = vld [vmem:[#allocation4 + $0xd8] sm:$0xff]
    %v62 = vld [vmem:[#allocation4 + $0xe0] sm:$0xff]
    %v63 = vld [vmem:[#allocation4 + $0xe8] sm:$0xff]
    %v64 = vld [vmem:[#allocation4 + $0xf0] sm:$0xff]
    %v65 = vld [vmem:[#allocation4 + $0xf8] sm:$0xff]
    %v66 = vadd.f32 %v34, %v35
    %v67 = vadd.f32 %v66, %v36
    %v68 = vadd.f32 %v67, %v37
    %v69 = vadd.f32 %v68, %v38
    %v70 = vadd.f32 %v69, %v39
    %v71 = vadd.f32 %v70, %v40
    %v72 = vadd.f32 %v71, %v41
    %v73 = vadd.f32 %v72, %v42
    %v74 = vadd.f32 %v73, %v43
    %v75 = vadd.f32 %v74, %v44
    %v76 = vadd.f32 %v75, %v45
    %v77 = vadd.f32 %v76, %v46
    %v78 = vadd.f32 %v77, %v47
    %v79 = vadd.f32 %v78, %v48
    %v80 = vadd.f32 %v79, %v49
    %v81 = vadd.f32 %v80, %v50
    %v82 = vadd.f32 %v81, %v51
    %v83 = vadd.f32 %v82, %v52
    %v84 = vadd.f32 %v83, %v53
    %v85 = vadd.f32 %v84, %v54
    %v86 = vadd.f32 %v85, %v55
    %v87 = vadd.f32 %v86, %v56
    %v88 = vadd.f32 %v87, %v57
    %v89 = vadd.f32 %v88, %v58
    %v90 = vadd.f32 %v89, %v59
    %v91 = vadd.f32 %v90, %v60
    %v92 = vadd.f32 %v91, %v61
    %v93 = vadd.f32 %v92, %v62
    %v94 = vadd.f32 %v93, %v63
    %v95 = vadd.f32 %v94, %v64
    %v96 = vadd.f32 %v95, %v65
    %97 = vadd.xlane.f32.xlu0 %v96
    %v98 = vpop.xlane.xlu0 %97
    %v99 = vrot.slane %v98, 4
    %v100 = vadd.f32 %v98, %v99
    %v101 = vrot.slane %v100, 2
    %v102 = vadd.f32 %v100, %v101
    %v103 = vrot.slane %v102, 1
    %v104 = vadd.f32 %v102, %v103
    %s105 = vtos %v104
    %s106 = sadd.f32 %s105, 32768.0
    %s107 = smul.f32 %s106, 0.5
    %108 = vst [vmem:[#allocation7] sm:$0xff] %v34
    %109 = vst [vmem:[#allocation7 + $0x8] sm:$0xff] %v35
    %110 = vst [vmem:[#allocation7 + $0x10] sm:$0xff] %v36
    %111 = vst [vmem:[#allocation7 + $0x18] sm:$0xff] %v37
    %112 = vst [vmem:[#allocation7 + $0x20] sm:$0xff] %v38
    %113 = vst [vmem:[#allocation7 + $0x28] sm:$0xff] %v39
    %114 = vst [vmem:[#allocation7 + $0x30] sm:$0xff] %v40
    %115 = vst [vmem:[#allocation7 + $0x38] sm:$0xff] %v41
    %116 = vst [vmem:[#allocation7 + $0x40] sm:$0xff] %v42
    %117 = vst [vmem:[#allocation7 + $0x48] sm:$0xff] %v43
    %118 = vst [vmem:[#allocation7 + $0x50] sm:$0xff] %v44
    %119 = vst [vmem:[#allocation7 + $0x58] sm:$0xff] %v45
    %120 = vst [vmem:[#allocation7 + $0x60] sm:$0xff] %v46
    %121 = vst [vmem:[#allocation7 + $0x68] sm:$0xff] %v47
    %122 = vst [vmem:[#allocation7 + $0x70] sm:$0xff] %v48
    %123 = vst [vmem:[#allocation7 + $0x78] sm:$0xff] %v49
    %124 = vst [vmem:[#allocation7 + $0x80] sm:$0xff] %v50
    %125 = vst [vmem:[#allocation7 + $0x88] sm:$0xff] %v51
    %126 = vst [vmem:[#allocation7 + $0x90] sm:$0xff] %v52
    %127 = vst [vmem:[#allocation7 + $0x98] sm:$0xff] %v53
    %128 = vst [vmem:[#allocation7 + $0xa0] sm:$0xff] %v54
    %129 = vst [vmem:[#allocation7 + $0xa8] sm:$0xff] %v55
    %130 = vst [vmem:[#allocation7 + $0xb0] sm:$0xff] %v56
    %131 = vst [vmem:[#allocation7 + $0xb8] sm:$0xff] %v57
    %132 = vst [vmem:[#allocation7 + $0xc0] sm:$0xff] %v58
    %133 = vst [vmem:[#allocation7 + $0xc8] sm:$0xff] %v59
    %134 = vst [vmem:[#allocation7 + $0xd0] sm:$0xff] %v60
    %135 = vst [vmem:[#allocation7 + $0xd8] sm:$0xff] %v61
    %136 = vst [vmem:[#allocation7 + $0xe0] sm:$0xff] %v62
    %137 = vst [vmem:[#allocation7 + $0xe8] sm:$0xff] %v63
    %138 = vst [vmem:[#allocation7 + $0xf0] sm:$0xff] %v64
    %139 = vst [vmem:[#allocation7 + $0xf8] sm:$0xff] %v65
    %p140 = scmp.ge.f32.partialorder %s107, 10.0
    // Predicated region
    $region10: #{tpu_custom_call.1} parent=1 // pred_check
      %p141 = pneg %p140
    $region11: #{tpu_custom_call.1} parent=1 // pred_check_branch
      %143 = sbr.rel (%p141) target = $region13
    $region12: #{tpu_custom_call.1} parent=1 // pred_region
      %v144 = vld [vmem:[#allocation7] sm:$0xff]
      %v145 = vld [vmem:[#allocation7 + $0x8] sm:$0xff]
      %v146 = vld [vmem:[#allocation7 + $0x10] sm:$0xff]
      %v147 = vld [vmem:[#allocation7 + $0x18] sm:$0xff]
      %v148 = vld [vmem:[#allocation7 + $0x20] sm:$0xff]
      %v149 = vld [vmem:[#allocation7 + $0x28] sm:$0xff]
      %v150 = vld [vmem:[#allocation7 + $0x30] sm:$0xff]
      %v151 = vld [vmem:[#allocation7 + $0x38] sm:$0xff]
      %v152 = vld [vmem:[#allocation7 + $0x40] sm:$0xff]
      %v153 = vld [vmem:[#allocation7 + $0x48] sm:$0xff]
      %v154 = vld [vmem:[#allocation7 + $0x50] sm:$0xff]
      %v155 = vld [vmem:[#allocation7 + $0x58] sm:$0xff]
      %v156 = vld [vmem:[#allocation7 + $0x60] sm:$0xff]
      %v157 = vld [vmem:[#allocation7 + $0x68] sm:$0xff]
      %v158 = vld [vmem:[#allocation7 + $0x70] sm:$0xff]
      %v159 = vld [vmem:[#allocation7 + $0x78] sm:$0xff]
      %v160 = vld [vmem:[#allocation7 + $0x80] sm:$0xff]
      %v161 = vld [vmem:[#allocation7 + $0x88] sm:$0xff]
      %v162 = vld [vmem:[#allocation7 + $0x90] sm:$0xff]
      %v163 = vld [vmem:[#allocation7 + $0x98] sm:$0xff]
      %v164 = vld [vmem:[#allocation7 + $0xa0] sm:$0xff]
      %v165 = vld [vmem:[#allocation7 + $0xa8] sm:$0xff]
      %v166 = vld [vmem:[#allocation7 + $0xb0] sm:$0xff]
      %v167 = vld [vmem:[#allocation7 + $0xb8] sm:$0xff]
      %v168 = vld [vmem:[#allocation7 + $0xc0] sm:$0xff]
      %v169 = vld [vmem:[#allocation7 + $0xc8] sm:$0xff]
      %v170 = vld [vmem:[#allocation7 + $0xd0] sm:$0xff]
      %v171 = vld [vmem:[#allocation7 + $0xd8] sm:$0xff]
      %v172 = vld [vmem:[#allocation7 + $0xe0] sm:$0xff]
      %v173 = vld [vmem:[#allocation7 + $0xe8] sm:$0xff]
      %v174 = vld [vmem:[#allocation7 + $0xf0] sm:$0xff]
      %v175 = vld [vmem:[#allocation7 + $0xf8] sm:$0xff]
      %s176 = sld [smem:[#allocation3]]
      %s177 = sld [smem:[#allocation3 + $0x1]]
      %s178 = sld [smem:[#allocation3 + $0x2]]
      %v179 = vstv %s176
      %v180 = vmul.f32 %v144, %v179
      %v181 = vmul.f32 %v145, %v179
      %v182 = vmul.f32 %v146, %v179
      %v183 = vmul.f32 %v147, %v179
      %v184 = vmul.f32 %v148, %v179
      %v185 = vmul.f32 %v149, %v179
      %v186 = vmul.f32 %v150, %v179
      %v187 = vmul.f32 %v151, %v179
      %v188 = vmul.f32 %v152, %v179
      %v189 = vmul.f32 %v153, %v179
      %v190 = vmul.f32 %v154, %v179
      %v191 = vmul.f32 %v155, %v179
      %v192 = vmul.f32 %v156, %v179
      %v193 = vmul.f32 %v157, %v179
      %v194 = vmul.f32 %v158, %v179
      %v195 = vmul.f32 %v159, %v179
      %v196 = vmul.f32 %v160, %v179
      %v197 = vmul.f32 %v161, %v179
      %v198 = vmul.f32 %v162, %v179
      %v199 = vmul.f32 %v163, %v179
      %v200 = vmul.f32 %v164, %v179
      %v201 = vmul.f32 %v165, %v179
      %v202 = vmul.f32 %v166, %v179
      %v203 = vmul.f32 %v167, %v179
      %v204 = vmul.f32 %v168, %v179
      %v205 = vmul.f32 %v169, %v179
      %v206 = vmul.f32 %v170, %v179
      %v207 = vmul.f32 %v171, %v179
      %v208 = vmul.f32 %v172, %v179
      %v209 = vmul.f32 %v173, %v179
      %v210 = vmul.f32 %v174, %v179
      %v211 = vmul.f32 %v175, %v179
      %s212 = ssub.f32 0.0, %s177
      %v213 = vstv %s212
      %v214 = vmax.f32 %v180, %v213
      %v215 = vmax.f32 %v181, %v213
      %v216 = vmax.f32 %v182, %v213
      %v217 = vmax.f32 %v183, %v213
      %v218 = vmax.f32 %v184, %v213
      %v219 = vmax.f32 %v185, %v213
      %v220 = vmax.f32 %v186, %v213
      %v221 = vmax.f32 %v187, %v213
      %v222 = vmax.f32 %v188, %v213
      %v223 = vmax.f32 %v189, %v213
      %v224 = vmax.f32 %v190, %v213
      %v225 = vmax.f32 %v191, %v213
      %v226 = vmax.f32 %v192, %v213
      %v227 = vmax.f32 %v193, %v213
      %v228 = vmax.f32 %v194, %v213
      %v229 = vmax.f32 %v195, %v213
      %v230 = vmax.f32 %v196, %v213
      %v231 = vmax.f32 %v197, %v213
      %v232 = vmax.f32 %v198, %v213
      %v233 = vmax.f32 %v199, %v213
      %v234 = vmax.f32 %v200, %v213
      %v235 = vmax.f32 %v201, %v213
      %v236 = vmax.f32 %v202, %v213
      %v237 = vmax.f32 %v203, %v213
      %v238 = vmax.f32 %v204, %v213
      %v239 = vmax.f32 %v205, %v213
      %v240 = vmax.f32 %v206, %v213
      %v241 = vmax.f32 %v207, %v213
      %v242 = vmax.f32 %v208, %v213
      %v243 = vmax.f32 %v209, %v213
      %v244 = vmax.f32 %v210, %v213
      %v245 = vmax.f32 %v211, %v213
      %v246 = vstv %s177
      %v247 = vmin.f32 %v214, %v246
      %v248 = vmin.f32 %v215, %v246
      %v249 = vmin.f32 %v216, %v246
      %v250 = vmin.f32 %v217, %v246
      %v251 = vmin.f32 %v218, %v246
      %v252 = vmin.f32 %v219, %v246
      %v253 = vmin.f32 %v220, %v246
      %v254 = vmin.f32 %v221, %v246
      %v255 = vmin.f32 %v222, %v246
      %v256 = vmin.f32 %v223, %v246
      %v257 = vmin.f32 %v224, %v246
      %v258 = vmin.f32 %v225, %v246
      %v259 = vmin.f32 %v226, %v246
      %v260 = vmin.f32 %v227, %v246
      %v261 = vmin.f32 %v228, %v246
      %v262 = vmin.f32 %v229, %v246
      %v263 = vmin.f32 %v230, %v246
      %v264 = vmin.f32 %v231, %v246
      %v265 = vmin.f32 %v232, %v246
      %v266 = vmin.f32 %v233, %v246
      %v267 = vmin.f32 %v234, %v246
      %v268 = vmin.f32 %v235, %v246
      %v269 = vmin.f32 %v236, %v246
      %v270 = vmin.f32 %v237, %v246
      %v271 = vmin.f32 %v238, %v246
      %v272 = vmin.f32 %v239, %v246
      %v273 = vmin.f32 %v240, %v246
      %v274 = vmin.f32 %v241, %v246
      %v275 = vmin.f32 %v242, %v246
      %v276 = vmin.f32 %v243, %v246
      %v277 = vmin.f32 %v244, %v246
      %v278 = vmin.f32 %v245, %v246
      %v279 = vstv %s178
      %v280 = vmul.f32 %v279, %v144
      %v281 = vmul.f32 %v279, %v145
      %v282 = vmul.f32 %v279, %v146
      %v283 = vmul.f32 %v279, %v147
      %v284 = vmul.f32 %v279, %v148
      %v285 = vmul.f32 %v279, %v149
      %v286 = vmul.f32 %v279, %v150
      %v287 = vmul.f32 %v279, %v151
      %v288 = vmul.f32 %v279, %v152
      %v289 = vmul.f32 %v279, %v153
      %v290 = vmul.f32 %v279, %v154
      %v291 = vmul.f32 %v279, %v155
      %v292 = vmul.f32 %v279, %v156
      %v293 = vmul.f32 %v279, %v157
      %v294 = vmul.f32 %v279, %v158
      %v295 = vmul.f32 %v279, %v159
      %v296 = vmul.f32 %v279, %v160
      %v297 = vmul.f32 %v279, %v161
      %v298 = vmul.f32 %v279, %v162
      %v299 = vmul.f32 %v279, %v163
      %v300 = vmul.f32 %v279, %v164
      %v301 = vmul.f32 %v279, %v165
      %v302 = vmul.f32 %v279, %v166
      %v303 = vmul.f32 %v279, %v167
      %v304 = vmul.f32 %v279, %v168
      %v305 = vmul.f32 %v279, %v169
      %v306 = vmul.f32 %v279, %v170
      %v307 = vmul.f32 %v279, %v171
      %v308 = vmul.f32 %v279, %v172
      %v309 = vmul.f32 %v279, %v173
      %v310 = vmul.f32 %v279, %v174
      %v311 = vmul.f32 %v279, %v175
      %v312 = vadd.f32 %v247, %v280
      %v313 = vadd.f32 %v248, %v281
      %v314 = vadd.f32 %v249, %v282
      %v315 = vadd.f32 %v250, %v283
      %v316 = vadd.f32 %v251, %v284
      %v317 = vadd.f32 %v252, %v285
      %v318 = vadd.f32 %v253, %v286
      %v319 = vadd.f32 %v254, %v287
      %v320 = vadd.f32 %v255, %v288
      %v321 = vadd.f32 %v256, %v289
      %v322 = vadd.f32 %v257, %v290
      %v323 = vadd.f32 %v258, %v291
      %v324 = vadd.f32 %v259, %v292
      %v325 = vadd.f32 %v260, %v293
      %v326 = vadd.f32 %v261, %v294
      %v327 = vadd.f32 %v262, %v295
      %v328 = vadd.f32 %v263, %v296
      %v329 = vadd.f32 %v264, %v297
      %v330 = vadd.f32 %v265, %v298
      %v331 = vadd.f32 %v266, %v299
      %v332 = vadd.f32 %v267, %v300
      %v333 = vadd.f32 %v268, %v301
      %v334 = vadd.f32 %v269, %v302
      %v335 = vadd.f32 %v270, %v303
      %v336 = vadd.f32 %v271, %v304
      %v337 = vadd.f32 %v272, %v305
      %v338 = vadd.f32 %v273, %v306
      %v339 = vadd.f32 %v274, %v307
      %v340 = vadd.f32 %v275, %v308
      %v341 = vadd.f32 %v276, %v309
      %v342 = vadd.f32 %v277, %v310
      %v343 = vadd.f32 %v278, %v311
      %344 = vst [vmem:[#allocation7] sm:$0xff] %v312
      %345 = vst [vmem:[#allocation7 + $0x8] sm:$0xff] %v313
      %346 = vst [vmem:[#allocation7 + $0x10] sm:$0xff] %v314
      %347 = vst [vmem:[#allocation7 + $0x18] sm:$0xff] %v315
      %348 = vst [vmem:[#allocation7 + $0x20] sm:$0xff] %v316
      %349 = vst [vmem:[#allocation7 + $0x28] sm:$0xff] %v317
      %350 = vst [vmem:[#allocation7 + $0x30] sm:$0xff] %v318
      %351 = vst [vmem:[#allocation7 + $0x38] sm:$0xff] %v319
      %352 = vst [vmem:[#allocation7 + $0x40] sm:$0xff] %v320
      %353 = vst [vmem:[#allocation7 + $0x48] sm:$0xff] %v321
      %354 = vst [vmem:[#allocation7 + $0x50] sm:$0xff] %v322
      %355 = vst [vmem:[#allocation7 + $0x58] sm:$0xff] %v323
      %356 = vst [vmem:[#allocation7 + $0x60] sm:$0xff] %v324
      %357 = vst [vmem:[#allocation7 + $0x68] sm:$0xff] %v325
      %358 = vst [vmem:[#allocation7 + $0x70] sm:$0xff] %v326
      %359 = vst [vmem:[#allocation7 + $0x78] sm:$0xff] %v327
      %360 = vst [vmem:[#allocation7 + $0x80] sm:$0xff] %v328
      %361 = vst [vmem:[#allocation7 + $0x88] sm:$0xff] %v329
      %362 = vst [vmem:[#allocation7 + $0x90] sm:$0xff] %v330
      %363 = vst [vmem:[#allocation7 + $0x98] sm:$0xff] %v331
      %364 = vst [vmem:[#allocation7 + $0xa0] sm:$0xff] %v332
      %365 = vst [vmem:[#allocation7 + $0xa8] sm:$0xff] %v333
      %366 = vst [vmem:[#allocation7 + $0xb0] sm:$0xff] %v334
      %367 = vst [vmem:[#allocation7 + $0xb8] sm:$0xff] %v335
      %368 = vst [vmem:[#allocation7 + $0xc0] sm:$0xff] %v336
      %369 = vst [vmem:[#allocation7 + $0xc8] sm:$0xff] %v337
      %370 = vst [vmem:[#allocation7 + $0xd0] sm:$0xff] %v338
      %371 = vst [vmem:[#allocation7 + $0xd8] sm:$0xff] %v339
      %372 = vst [vmem:[#allocation7 + $0xe0] sm:$0xff] %v340
      %373 = vst [vmem:[#allocation7 + $0xe8] sm:$0xff] %v341
      %374 = vst [vmem:[#allocation7 + $0xf0] sm:$0xff] %v342
      %375 = vst [vmem:[#allocation7 + $0xf8] sm:$0xff] %v343
      %v376 = vld [vmem:[#allocation7] sm:$0xff]
      %v377 = vld [vmem:[#allocation7 + $0x8] sm:$0xff]
      %v378 = vld [vmem:[#allocation7 + $0x10] sm:$0xff]
      %v379 = vld [vmem:[#allocation7 + $0x18] sm:$0xff]
      %v380 = vld [vmem:[#allocation7 + $0x20] sm:$0xff]
      %v381 = vld [vmem:[#allocation7 + $0x28] sm:$0xff]
      %v382 = vld [vmem:[#allocation7 + $0x30] sm:$0xff]
      %v383 = vld [vmem:[#allocation7 + $0x38] sm:$0xff]
      %v384 = vld [vmem:[#allocation7 + $0x40] sm:$0xff]
      %v385 = vld [vmem:[#allocation7 + $0x48] sm:$0xff]
      %v386 = vld [vmem:[#allocation7 + $0x50] sm:$0xff]
      %v387 = vld [vmem:[#allocation7 + $0x58] sm:$0xff]
      %v388 = vld [vmem:[#allocation7 + $0x60] sm:$0xff]
      %v389 = vld [vmem:[#allocation7 + $0x68] sm:$0xff]
      %v390 = vld [vmem:[#allocation7 + $0x70] sm:$0xff]
      %v391 = vld [vmem:[#allocation7 + $0x78] sm:$0xff]
      %v392 = vld [vmem:[#allocation7 + $0x80] sm:$0xff]
      %v393 = vld [vmem:[#allocation7 + $0x88] sm:$0xff]
      %v394 = vld [vmem:[#allocation7 + $0x90] sm:$0xff]
      %v395 = vld [vmem:[#allocation7 + $0x98] sm:$0xff]
      %v396 = vld [vmem:[#allocation7 + $0xa0] sm:$0xff]
      %v397 = vld [vmem:[#allocation7 + $0xa8] sm:$0xff]
      %v398 = vld [vmem:[#allocation7 + $0xb0] sm:$0xff]
      %v399 = vld [vmem:[#allocation7 + $0xb8] sm:$0xff]
      %v400 = vld [vmem:[#allocation7 + $0xc0] sm:$0xff]
      %v401 = vld [vmem:[#allocation7 + $0xc8] sm:$0xff]
      %v402 = vld [vmem:[#allocation7 + $0xd0] sm:$0xff]
      %v403 = vld [vmem:[#allocation7 + $0xd8] sm:$0xff]
      %v404 = vld [vmem:[#allocation7 + $0xe0] sm:$0xff]
      %v405 = vld [vmem:[#allocation7 + $0xe8] sm:$0xff]
      %v406 = vld [vmem:[#allocation7 + $0xf0] sm:$0xff]
      %v407 = vld [vmem:[#allocation7 + $0xf8] sm:$0xff]
      %s408 = sld [smem:[#allocation3 + $0x3]]
      %s409 = sld [smem:[#allocation3 + $0x4]]
      %s410 = sld [smem:[#allocation3 + $0x5]]
      %v411 = vstv %s408
      %v412 = vmul.f32 %v376, %v411
      %v413 = vmul.f32 %v377, %v411
      %v414 = vmul.f32 %v378, %v411
      %v415 = vmul.f32 %v379, %v411
      %v416 = vmul.f32 %v380, %v411
      %v417 = vmul.f32 %v381, %v411
      %v418 = vmul.f32 %v382, %v411
      %v419 = vmul.f32 %v383, %v411
      %v420 = vmul.f32 %v384, %v411
      %v421 = vmul.f32 %v385, %v411
      %v422 = vmul.f32 %v386, %v411
      %v423 = vmul.f32 %v387, %v411
      %v424 = vmul.f32 %v388, %v411
      %v425 = vmul.f32 %v389, %v411
      %v426 = vmul.f32 %v390, %v411
      %v427 = vmul.f32 %v391, %v411
      %v428 = vmul.f32 %v392, %v411
      %v429 = vmul.f32 %v393, %v411
      %v430 = vmul.f32 %v394, %v411
      %v431 = vmul.f32 %v395, %v411
      %v432 = vmul.f32 %v396, %v411
      %v433 = vmul.f32 %v397, %v411
      %v434 = vmul.f32 %v398, %v411
      %v435 = vmul.f32 %v399, %v411
      %v436 = vmul.f32 %v400, %v411
      %v437 = vmul.f32 %v401, %v411
      %v438 = vmul.f32 %v402, %v411
      %v439 = vmul.f32 %v403, %v411
      %v440 = vmul.f32 %v404, %v411
      %v441 = vmul.f32 %v405, %v411
      %v442 = vmul.f32 %v406, %v411
      %v443 = vmul.f32 %v407, %v411
      %s444 = ssub.f32 0.0, %s409
      %v445 = vstv %s444
      %v446 = vmax.f32 %v412, %v445
      %v447 = vmax.f32 %v413, %v445
      %v448 = vmax.f32 %v414, %v445
      %v449 = vmax.f32 %v415, %v445
      %v450 = vmax.f32 %v416, %v445
      %v451 = vmax.f32 %v417, %v445
      %v452 = vmax.f32 %v418, %v445
      %v453 = vmax.f32 %v419, %v445
      %v454 = vmax.f32 %v420, %v445
      %v455 = vmax.f32 %v421, %v445
      %v456 = vmax.f32 %v422, %v445
      %v457 = vmax.f32 %v423, %v445
      %v458 = vmax.f32 %v424, %v445
      %v459 = vmax.f32 %v425, %v445
      %v460 = vmax.f32 %v426, %v445
      %v461 = vmax.f32 %v427, %v445
      %v462 = vmax.f32 %v428, %v445
      %v463 = vmax.f32 %v429, %v445
      %v464 = vmax.f32 %v430, %v445
      %v465 = vmax.f32 %v431, %v445
      %v466 = vmax.f32 %v432, %v445
      %v467 = vmax.f32 %v433, %v445
      %v468 = vmax.f32 %v434, %v445
      %v469 = vmax.f32 %v435, %v445
      %v470 = vmax.f32 %v436, %v445
      %v471 = vmax.f32 %v437, %v445
      %v472 = vmax.f32 %v438, %v445
      %v473 = vmax.f32 %v439, %v445
      %v474 = vmax.f32 %v440, %v445
      %v475 = vmax.f32 %v441, %v445
      %v476 = vmax.f32 %v442, %v445
      %v477 = vmax.f32 %v443, %v445
      %v478 = vstv %s409
      %v479 = vmin.f32 %v446, %v478
      %v480 = vmin.f32 %v447, %v478
      %v481 = vmin.f32 %v448, %v478
      %v482 = vmin.f32 %v449, %v478
      %v483 = vmin.f32 %v450, %v478
      %v484 = vmin.f32 %v451, %v478
      %v485 = vmin.f32 %v452, %v478
      %v486 = vmin.f32 %v453, %v478
      %v487 = vmin.f32 %v454, %v478
      %v488 = vmin.f32 %v455, %v478
      %v489 = vmin.f32 %v456, %v478
      %v490 = vmin.f32 %v457, %v478
      %v491 = vmin.f32 %v458, %v478
      %v492 = vmin.f32 %v459, %v478
      %v493 = vmin.f32 %v460, %v478
      %v494 = vmin.f32 %v461, %v478
      %v495 = vmin.f32 %v462, %v478
      %v496 = vmin.f32 %v463, %v478
      %v497 = vmin.f32 %v464, %v478
      %v498 = vmin.f32 %v465, %v478
      %v499 = vmin.f32 %v466, %v478
      %v500 = vmin.f32 %v467, %v478
      %v501 = vmin.f32 %v468, %v478
      %v502 = vmin.f32 %v469, %v478
      %v503 = vmin.f32 %v470, %v478
      %v504 = vmin.f32 %v471, %v478
      %v505 = vmin.f32 %v472, %v478
      %v506 = vmin.f32 %v473, %v478
      %v507 = vmin.f32 %v474, %v478
      %v508 = vmin.f32 %v475, %v478
      %v509 = vmin.f32 %v476, %v478
      %v510 = vmin.f32 %v477, %v478
      %v511 = vstv %s410
      %v512 = vmul.f32 %v511, %v376
      %v513 = vmul.f32 %v511, %v377
      %v514 = vmul.f32 %v511, %v378
      %v515 = vmul.f32 %v511, %v379
      %v516 = vmul.f32 %v511, %v380
      %v517 = vmul.f32 %v511, %v381
      %v518 = vmul.f32 %v511, %v382
      %v519 = vmul.f32 %v511, %v383
      %v520 = vmul.f32 %v511, %v384
      %v521 = vmul.f32 %v511, %v385
      %v522 = vmul.f32 %v511, %v386
      %v523 = vmul.f32 %v511, %v387
      %v524 = vmul.f32 %v511, %v388
      %v525 = vmul.f32 %v511, %v389
      %v526 = vmul.f32 %v511, %v390
      %v527 = vmul.f32 %v511, %v391
      %v528 = vmul.f32 %v511, %v392
      %v529 = vmul.f32 %v511, %v393
      %v530 = vmul.f32 %v511, %v394
      %v531 = vmul.f32 %v511, %v395
      %v532 = vmul.f32 %v511, %v396
      %v533 = vmul.f32 %v511, %v397
      %v534 = vmul.f32 %v511, %v398
      %v535 = vmul.f32 %v511, %v399
      %v536 = vmul.f32 %v511, %v400
      %v537 = vmul.f32 %v511, %v401
      %v538 = vmul.f32 %v511, %v402
      %v539 = vmul.f32 %v511, %v403
      %v540 = vmul.f32 %v511, %v404
      %v541 = vmul.f32 %v511, %v405
      %v542 = vmul.f32 %v511, %v406
      %v543 = vmul.f32 %v511, %v407
      %v544 = vadd.f32 %v479, %v512
      %v545 = vadd.f32 %v480, %v513
      %v546 = vadd.f32 %v481, %v514
      %v547 = vadd.f32 %v482, %v515
      %v548 = vadd.f32 %v483, %v516
      %v549 = vadd.f32 %v484, %v517
      %v550 = vadd.f32 %v485, %v518
      %v551 = vadd.f32 %v486, %v519
      %v552 = vadd.f32 %v487, %v520
      %v553 = vadd.f32 %v488, %v521
      %v554 = vadd.f32 %v489, %v522
      %v555 = vadd.f32 %v490, %v523
      %v556 = vadd.f32 %v491, %v524
      %v557 = vadd.f32 %v492, %v525
      %v558 = vadd.f32 %v493, %v526
      %v559 = vadd.f32 %v494, %v527
      %v560 = vadd.f32 %v495, %v528
      %v561 = vadd.f32 %v496, %v529
      %v562 = vadd.f32 %v497, %v530
      %v563 = vadd.f32 %v498, %v531
      %v564 = vadd.f32 %v499, %v532
      %v565 = vadd.f32 %v500, %v533
      %v566 = vadd.f32 %v501, %v534
      %v567 = vadd.f32 %v502, %v535
      %v568 = vadd.f32 %v503, %v536
      %v569 = vadd.f32 %v504, %v537
      %v570 = vadd.f32 %v505, %v538
      %v571 = vadd.f32 %v506, %v539
      %v572 = vadd.f32 %v507, %v540
      %v573 = vadd.f32 %v508, %v541
      %v574 = vadd.f32 %v509, %v542
      %v575 = vadd.f32 %v510, %v543
      %576 = vst [vmem:[#allocation7] sm:$0xff] %v544
      %577 = vst [vmem:[#allocation7 + $0x8] sm:$0xff] %v545
      %578 = vst [vmem:[#allocation7 + $0x10] sm:$0xff] %v546
      %579 = vst [vmem:[#allocation7 + $0x18] sm:$0xff] %v547
      %580 = vst [vmem:[#allocation7 + $0x20] sm:$0xff] %v548
      %581 = vst [vmem:[#allocation7 + $0x28] sm:$0xff] %v549
      %582 = vst [vmem:[#allocation7 + $0x30] sm:$0xff] %v550
      %583 = vst [vmem:[#allocation7 + $0x38] sm:$0xff] %v551
      %584 = vst [vmem:[#allocation7 + $0x40] sm:$0xff] %v552
      %585 = vst [vmem:[#allocation7 + $0x48] sm:$0xff] %v553
      %586 = vst [vmem:[#allocation7 + $0x50] sm:$0xff] %v554
      %587 = vst [vmem:[#allocation7 + $0x58] sm:$0xff] %v555
      %588 = vst [vmem:[#allocation7 + $0x60] sm:$0xff] %v556
      %589 = vst [vmem:[#allocation7 + $0x68] sm:$0xff] %v557
      %590 = vst [vmem:[#allocation7 + $0x70] sm:$0xff] %v558
      %591 = vst [vmem:[#allocation7 + $0x78] sm:$0xff] %v559
      %592 = vst [vmem:[#allocation7 + $0x80] sm:$0xff] %v560
      %593 = vst [vmem:[#allocation7 + $0x88] sm:$0xff] %v561
      %594 = vst [vmem:[#allocation7 + $0x90] sm:$0xff] %v562
      %595 = vst [vmem:[#allocation7 + $0x98] sm:$0xff] %v563
      %596 = vst [vmem:[#allocation7 + $0xa0] sm:$0xff] %v564
      %597 = vst [vmem:[#allocation7 + $0xa8] sm:$0xff] %v565
      %598 = vst [vmem:[#allocation7 + $0xb0] sm:$0xff] %v566
      %599 = vst [vmem:[#allocation7 + $0xb8] sm:$0xff] %v567
      %600 = vst [vmem:[#allocation7 + $0xc0] sm:$0xff] %v568
      %601 = vst [vmem:[#allocation7 + $0xc8] sm:$0xff] %v569
      %602 = vst [vmem:[#allocation7 + $0xd0] sm:$0xff] %v570
      %603 = vst [vmem:[#allocation7 + $0xd8] sm:$0xff] %v571
      %604 = vst [vmem:[#allocation7 + $0xe0] sm:$0xff] %v572
      %605 = vst [vmem:[#allocation7 + $0xe8] sm:$0xff] %v573
      %606 = vst [vmem:[#allocation7 + $0xf0] sm:$0xff] %v574
      %607 = vst [vmem:[#allocation7 + $0xf8] sm:$0xff] %v575
      %v608 = vld [vmem:[#allocation7] sm:$0xff]
      %v609 = vld [vmem:[#allocation7 + $0x8] sm:$0xff]
      %v610 = vld [vmem:[#allocation7 + $0x10] sm:$0xff]
      %v611 = vld [vmem:[#allocation7 + $0x18] sm:$0xff]
      %v612 = vld [vmem:[#allocation7 + $0x20] sm:$0xff]
      %v613 = vld [vmem:[#allocation7 + $0x28] sm:$0xff]
      %v614 = vld [vmem:[#allocation7 + $0x30] sm:$0xff]
      %v615 = vld [vmem:[#allocation7 + $0x38] sm:$0xff]
      %v616 = vld [vmem:[#allocation7 + $0x40] sm:$0xff]
      %v617 = vld [vmem:[#allocation7 + $0x48] sm:$0xff]
      %v618 = vld [vmem:[#allocation7 + $0x50] sm:$0xff]
      %v619 = vld [vmem:[#allocation7 + $0x58] sm:$0xff]
      %v620 = vld [vmem:[#allocation7 + $0x60] sm:$0xff]
      %v621 = vld [vmem:[#allocation7 + $0x68] sm:$0xff]
      %v622 = vld [vmem:[#allocation7 + $0x70] sm:$0xff]
      %v623 = vld [vmem:[#allocation7 + $0x78] sm:$0xff]
      %v624 = vld [vmem:[#allocation7 + $0x80] sm:$0xff]
      %v625 = vld [vmem:[#allocation7 + $0x88] sm:$0xff]
      %v626 = vld [vmem:[#allocation7 + $0x90] sm:$0xff]
      %v627 = vld [vmem:[#allocation7 + $0x98] sm:$0xff]
      %v628 = vld [vmem:[#allocation7 + $0xa0] sm:$0xff]
      %v629 = vld [vmem:[#allocation7 + $0xa8] sm:$0xff]
      %v630 = vld [vmem:[#allocation7 + $0xb0] sm:$0xff]
      %v631 = vld [vmem:[#allocation7 + $0xb8] sm:$0xff]
      %v632 = vld [vmem:[#allocation7 + $0xc0] sm:$0xff]
      %v633 = vld [vmem:[#allocation7 + $0xc8] sm:$0xff]
      %v634 = vld [vmem:[#allocation7 + $0xd0] sm:$0xff]
      %v635 = vld [vmem:[#allocation7 + $0xd8] sm:$0xff]
      %v636 = vld [vmem:[#allocation7 + $0xe0] sm:$0xff]
      %v637 = vld [vmem:[#allocation7 + $0xe8] sm:$0xff]
      %v638 = vld [vmem:[#allocation7 + $0xf0] sm:$0xff]
      %v639 = vld [vmem:[#allocation7 + $0xf8] sm:$0xff]
      %s640 = sld [smem:[#allocation3 + $0x6]]
      %s641 = sld [smem:[#allocation3 + $0x7]]
      %s642 = sld [smem:[#allocation3 + $0x8]]
      %v643 = vstv %s640
      %v644 = vmul.f32 %v608, %v643
      %v645 = vmul.f32 %v609, %v643
      %v646 = vmul.f32 %v610, %v643
      %v647 = vmul.f32 %v611, %v643
      %v648 = vmul.f32 %v612, %v643
      %v649 = vmul.f32 %v613, %v643
      %v650 = vmul.f32 %v614, %v643
      %v651 = vmul.f32 %v615, %v643
      %v652 = vmul.f32 %v616, %v643
      %v653 = vmul.f32 %v617, %v643
      %v654 = vmul.f32 %v618, %v643
      %v655 = vmul.f32 %v619, %v643
      %v656 = vmul.f32 %v620, %v643
      %v657 = vmul.f32 %v621, %v643
      %v658 = vmul.f32 %v622, %v643
      %v659 = vmul.f32 %v623, %v643
      %v660 = vmul.f32 %v624, %v643
      %v661 = vmul.f32 %v625, %v643
      %v662 = vmul.f32 %v626, %v643
      %v663 = vmul.f32 %v627, %v643
      %v664 = vmul.f32 %v628, %v643
      %v665 = vmul.f32 %v629, %v643
      %v666 = vmul.f32 %v630, %v643
      %v667 = vmul.f32 %v631, %v643
      %v668 = vmul.f32 %v632, %v643
      %v669 = vmul.f32 %v633, %v643
      %v670 = vmul.f32 %v634, %v643
      %v671 = vmul.f32 %v635, %v643
      %v672 = vmul.f32 %v636, %v643
      %v673 = vmul.f32 %v637, %v643
      %v674 = vmul.f32 %v638, %v643
      %v675 = vmul.f32 %v639, %v643
      %s676 = ssub.f32 0.0, %s641
      %v677 = vstv %s676
      %v678 = vmax.f32 %v644, %v677
      %v679 = vmax.f32 %v645, %v677
      %v680 = vmax.f32 %v646, %v677
      %v681 = vmax.f32 %v647, %v677
      %v682 = vmax.f32 %v648, %v677
      %v683 = vmax.f32 %v649, %v677
      %v684 = vmax.f32 %v650, %v677
      %v685 = vmax.f32 %v651, %v677
      %v686 = vmax.f32 %v652, %v677
      %v687 = vmax.f32 %v653, %v677
      %v688 = vmax.f32 %v654, %v677
      %v689 = vmax.f32 %v655, %v677
      %v690 = vmax.f32 %v656, %v677
      %v691 = vmax.f32 %v657, %v677
      %v692 = vmax.f32 %v658, %v677
      %v693 = vmax.f32 %v659, %v677
      %v694 = vmax.f32 %v660, %v677
      %v695 = vmax.f32 %v661, %v677
      %v696 = vmax.f32 %v662, %v677
      %v697 = vmax.f32 %v663, %v677
      %v698 = vmax.f32 %v664, %v677
      %v699 = vmax.f32 %v665, %v677
      %v700 = vmax.f32 %v666, %v677
      %v701 = vmax.f32 %v667, %v677
      %v702 = vmax.f32 %v668, %v677
      %v703 = vmax.f32 %v669, %v677
      %v704 = vmax.f32 %v670, %v677
      %v705 = vmax.f32 %v671, %v677
      %v706 = vmax.f32 %v672, %v677
      %v707 = vmax.f32 %v673, %v677
      %v708 = vmax.f32 %v674, %v677
      %v709 = vmax.f32 %v675, %v677
      %v710 = vstv %s641
      %v711 = vmin.f32 %v678, %v710
      %v712 = vmin.f32 %v679, %v710
      %v713 = vmin.f32 %v680, %v710
      %v714 = vmin.f32 %v681, %v710
      %v715 = vmin.f32 %v682, %v710
      %v716 = vmin.f32 %v683, %v710
      %v717 = vmin.f32 %v684, %v710
      %v718 = vmin.f32 %v685, %v710
      %v719 = vmin.f32 %v686, %v710
      %v720 = vmin.f32 %v687, %v710
      %v721 = vmin.f32 %v688, %v710
      %v722 = vmin.f32 %v689, %v710
      %v723 = vmin.f32 %v690, %v710
      %v724 = vmin.f32 %v691, %v710
      %v725 = vmin.f32 %v692, %v710
      %v726 = vmin.f32 %v693, %v710
      %v727 = vmin.f32 %v694, %v710
      %v728 = vmin.f32 %v695, %v710
      %v729 = vmin.f32 %v696, %v710
      %v730 = vmin.f32 %v697, %v710
      %v731 = vmin.f32 %v698, %v710
      %v732 = vmin.f32 %v699, %v710
      %v733 = vmin.f32 %v700, %v710
      %v734 = vmin.f32 %v701, %v710
      %v735 = vmin.f32 %v702, %v710
      %v736 = vmin.f32 %v703, %v710
      %v737 = vmin.f32 %v704, %v710
      %v738 = vmin.f32 %v705, %v710
      %v739 = vmin.f32 %v706, %v710
      %v740 = vmin.f32 %v707, %v710
      %v741 = vmin.f32 %v708, %v710
      %v742 = vmin.f32 %v709, %v710
      %v743 = vstv %s642
      %v744 = vmul.f32 %v743, %v608
      %v745 = vmul.f32 %v743, %v609
      %v746 = vmul.f32 %v743, %v610
      %v747 = vmul.f32 %v743, %v611
      %v748 = vmul.f32 %v743, %v612
      %v749 = vmul.f32 %v743, %v613
      %v750 = vmul.f32 %v743, %v614
      %v751 = vmul.f32 %v743, %v615
      %v752 = vmul.f32 %v743, %v616
      %v753 = vmul.f32 %v743, %v617
      %v754 = vmul.f32 %v743, %v618
      %v755 = vmul.f32 %v743, %v619
      %v756 = vmul.f32 %v743, %v620
      %v757 = vmul.f32 %v743, %v621
      %v758 = vmul.f32 %v743, %v622
      %v759 = vmul.f32 %v743, %v623
      %v760 = vmul.f32 %v743, %v624
      %v761 = vmul.f32 %v743, %v625
      %v762 = vmul.f32 %v743, %v626
      %v763 = vmul.f32 %v743, %v627
      %v764 = vmul.f32 %v743, %v628
      %v765 = vmul.f32 %v743, %v629
      %v766 = vmul.f32 %v743, %v630
      %v767 = vmul.f32 %v743, %v631
      %v768 = vmul.f32 %v743, %v632
      %v769 = vmul.f32 %v743, %v633
      %v770 = vmul.f32 %v743, %v634
      %v771 = vmul.f32 %v743, %v635
      %v772 = vmul.f32 %v743, %v636
      %v773 = vmul.f32 %v743, %v637
      %v774 = vmul.f32 %v743, %v638
      %v775 = vmul.f32 %v743, %v639
      %v776 = vadd.f32 %v711, %v744
      %v777 = vadd.f32 %v712, %v745
      %v778 = vadd.f32 %v713, %v746
      %v779 = vadd.f32 %v714, %v747
      %v780 = vadd.f32 %v715, %v748
      %v781 = vadd.f32 %v716, %v749
      %v782 = vadd.f32 %v717, %v750
      %v783 = vadd.f32 %v718, %v751
      %v784 = vadd.f32 %v719, %v752
      %v785 = vadd.f32 %v720, %v753
      %v786 = vadd.f32 %v721, %v754
      %v787 = vadd.f32 %v722, %v755
      %v788 = vadd.f32 %v723, %v756
      %v789 = vadd.f32 %v724, %v757
      %v790 = vadd.f32 %v725, %v758
      %v791 = vadd.f32 %v726, %v759
      %v792 = vadd.f32 %v727, %v760
      %v793 = vadd.f32 %v728, %v761
      %v794 = vadd.f32 %v729, %v762
      %v795 = vadd.f32 %v730, %v763
      %v796 = vadd.f32 %v731, %v764
      %v797 = vadd.f32 %v732, %v765
      %v798 = vadd.f32 %v733, %v766
      %v799 = vadd.f32 %v734, %v767
      %v800 = vadd.f32 %v735, %v768
      %v801 = vadd.f32 %v736, %v769
      %v802 = vadd.f32 %v737, %v770
      %v803 = vadd.f32 %v738, %v771
      %v804 = vadd.f32 %v739, %v772
      %v805 = vadd.f32 %v740, %v773
      %v806 = vadd.f32 %v741, %v774
      %v807 = vadd.f32 %v742, %v775
      %808 = vst [vmem:[#allocation7] sm:$0xff] %v776
      %809 = vst [vmem:[#allocation7 + $0x8] sm:$0xff] %v777
      %810 = vst [vmem:[#allocation7 + $0x10] sm:$0xff] %v778
      %811 = vst [vmem:[#allocation7 + $0x18] sm:$0xff] %v779
      %812 = vst [vmem:[#allocation7 + $0x20] sm:$0xff] %v780
      %813 = vst [vmem:[#allocation7 + $0x28] sm:$0xff] %v781
      %814 = vst [vmem:[#allocation7 + $0x30] sm:$0xff] %v782
      %815 = vst [vmem:[#allocation7 + $0x38] sm:$0xff] %v783
      %816 = vst [vmem:[#allocation7 + $0x40] sm:$0xff] %v784
      %817 = vst [vmem:[#allocation7 + $0x48] sm:$0xff] %v785
      %818 = vst [vmem:[#allocation7 + $0x50] sm:$0xff] %v786
      %819 = vst [vmem:[#allocation7 + $0x58] sm:$0xff] %v787
      %820 = vst [vmem:[#allocation7 + $0x60] sm:$0xff] %v788
      %821 = vst [vmem:[#allocation7 + $0x68] sm:$0xff] %v789
      %822 = vst [vmem:[#allocation7 + $0x70] sm:$0xff] %v790
      %823 = vst [vmem:[#allocation7 + $0x78] sm:$0xff] %v791
      %824 = vst [vmem:[#allocation7 + $0x80] sm:$0xff] %v792
      %825 = vst [vmem:[#allocation7 + $0x88] sm:$0xff] %v793
      %826 = vst [vmem:[#allocation7 + $0x90] sm:$0xff] %v794
      %827 = vst [vmem:[#allocation7 + $0x98] sm:$0xff] %v795
      %828 = vst [vmem:[#allocation7 + $0xa0] sm:$0xff] %v796
      %829 = vst [vmem:[#allocation7 + $0xa8] sm:$0xff] %v797
      %830 = vst [vmem:[#allocation7 + $0xb0] sm:$0xff] %v798
      %831 = vst [vmem:[#allocation7 + $0xb8] sm:$0xff] %v799
      %832 = vst [vmem:[#allocation7 + $0xc0] sm:$0xff] %v800
      %833 = vst [vmem:[#allocation7 + $0xc8] sm:$0xff] %v801
      %834 = vst [vmem:[#allocation7 + $0xd0] sm:$0xff] %v802
      %835 = vst [vmem:[#allocation7 + $0xd8] sm:$0xff] %v803
      %836 = vst [vmem:[#allocation7 + $0xe0] sm:$0xff] %v804
      %837 = vst [vmem:[#allocation7 + $0xe8] sm:$0xff] %v805
      %838 = vst [vmem:[#allocation7 + $0xf0] sm:$0xff] %v806
      %839 = vst [vmem:[#allocation7 + $0xf8] sm:$0xff] %v807
      %v840 = vld [vmem:[#allocation7] sm:$0xff]
      %v841 = vld [vmem:[#allocation7 + $0x8] sm:$0xff]
      %v842 = vld [vmem:[#allocation7 + $0x10] sm:$0xff]
      %v843 = vld [vmem:[#allocation7 + $0x18] sm:$0xff]
      %v844 = vld [vmem:[#allocation7 + $0x20] sm:$0xff]
      %v845 = vld [vmem:[#allocation7 + $0x28] sm:$0xff]
      %v846 = vld [vmem:[#allocation7 + $0x30] sm:$0xff]
      %v847 = vld [vmem:[#allocation7 + $0x38] sm:$0xff]
      %v848 = vld [vmem:[#allocation7 + $0x40] sm:$0xff]
      %v849 = vld [vmem:[#allocation7 + $0x48] sm:$0xff]
      %v850 = vld [vmem:[#allocation7 + $0x50] sm:$0xff]
      %v851 = vld [vmem:[#allocation7 + $0x58] sm:$0xff]
      %v852 = vld [vmem:[#allocation7 + $0x60] sm:$0xff]
      %v853 = vld [vmem:[#allocation7 + $0x68] sm:$0xff]
      %v854 = vld [vmem:[#allocation7 + $0x70] sm:$0xff]
      %v855 = vld [vmem:[#allocation7 + $0x78] sm:$0xff]
      %v856 = vld [vmem:[#allocation7 + $0x80] sm:$0xff]
      %v857 = vld [vmem:[#allocation7 + $0x88] sm:$0xff]
      %v858 = vld [vmem:[#allocation7 + $0x90] sm:$0xff]
      %v859 = vld [vmem:[#allocation7 + $0x98] sm:$0xff]
      %v860 = vld [vmem:[#allocation7 + $0xa0] sm:$0xff]
      %v861 = vld [vmem:[#allocation7 + $0xa8] sm:$0xff]
      %v862 = vld [vmem:[#allocation7 + $0xb0] sm:$0xff]
      %v863 = vld [vmem:[#allocation7 + $0xb8] sm:$0xff]
      %v864 = vld [vmem:[#allocation7 + $0xc0] sm:$0xff]
      %v865 = vld [vmem:[#allocation7 + $0xc8] sm:$0xff]
      %v866 = vld [vmem:[#allocation7 + $0xd0] sm:$0xff]
      %v867 = vld [vmem:[#allocation7 + $0xd8] sm:$0xff]
      %v868 = vld [vmem:[#allocation7 + $0xe0] sm:$0xff]
      %v869 = vld [vmem:[#allocation7 + $0xe8] sm:$0xff]
      %v870 = vld [vmem:[#allocation7 + $0xf0] sm:$0xff]
      %v871 = vld [vmem:[#allocation7 + $0xf8] sm:$0xff]
      %s872 = sld [smem:[#allocation3 + $0x9]]
      %s873 = sld [smem:[#allocation3 + $0xa]]
      %s874 = sld [smem:[#allocation3 + $0xb]]
      %v875 = vstv %s872
      %v876 = vmul.f32 %v840, %v875
      %v877 = vmul.f32 %v841, %v875
      %v878 = vmul.f32 %v842, %v875
      %v879 = vmul.f32 %v843, %v875
      %v880 = vmul.f32 %v844, %v875
      %v881 = vmul.f32 %v845, %v875
      %v882 = vmul.f32 %v846, %v875
      %v883 = vmul.f32 %v847, %v875
      %v884 = vmul.f32 %v848, %v875
      %v885 = vmul.f32 %v849, %v875
      %v886 = vmul.f32 %v850, %v875
      %v887 = vmul.f32 %v851, %v875
      %v888 = vmul.f32 %v852, %v875
      %v889 = vmul.f32 %v853, %v875
      %v890 = vmul.f32 %v854, %v875
      %v891 = vmul.f32 %v855, %v875
      %v892 = vmul.f32 %v856, %v875
      %v893 = vmul.f32 %v857, %v875
      %v894 = vmul.f32 %v858, %v875
      %v895 = vmul.f32 %v859, %v875
      %v896 = vmul.f32 %v860, %v875
      %v897 = vmul.f32 %v861, %v875
      %v898 = vmul.f32 %v862, %v875
      %v899 = vmul.f32 %v863, %v875
      %v900 = vmul.f32 %v864, %v875
      %v901 = vmul.f32 %v865, %v875
      %v902 = vmul.f32 %v866, %v875
      %v903 = vmul.f32 %v867, %v875
      %v904 = vmul.f32 %v868, %v875
      %v905 = vmul.f32 %v869, %v875
      %v906 = vmul.f32 %v870, %v875
      %v907 = vmul.f32 %v871, %v875
      %s908 = ssub.f32 0.0, %s873
      %v909 = vstv %s908
      %v910 = vmax.f32 %v876, %v909
      %v911 = vmax.f32 %v877, %v909
      %v912 = vmax.f32 %v878, %v909
      %v913 = vmax.f32 %v879, %v909
      %v914 = vmax.f32 %v880, %v909
      %v915 = vmax.f32 %v881, %v909
      %v916 = vmax.f32 %v882, %v909
      %v917 = vmax.f32 %v883, %v909
      %v918 = vmax.f32 %v884, %v909
      %v919 = vmax.f32 %v885, %v909
      %v920 = vmax.f32 %v886, %v909
      %v921 = vmax.f32 %v887, %v909
      %v922 = vmax.f32 %v888, %v909
      %v923 = vmax.f32 %v889, %v909
      %v924 = vmax.f32 %v890, %v909
      %v925 = vmax.f32 %v891, %v909
      %v926 = vmax.f32 %v892, %v909
      %v927 = vmax.f32 %v893, %v909
      %v928 = vmax.f32 %v894, %v909
      %v929 = vmax.f32 %v895, %v909
      %v930 = vmax.f32 %v896, %v909
      %v931 = vmax.f32 %v897, %v909
      %v932 = vmax.f32 %v898, %v909
      %v933 = vmax.f32 %v899, %v909
      %v934 = vmax.f32 %v900, %v909
      %v935 = vmax.f32 %v901, %v909
      %v936 = vmax.f32 %v902, %v909
      %v937 = vmax.f32 %v903, %v909
      %v938 = vmax.f32 %v904, %v909
      %v939 = vmax.f32 %v905, %v909
      %v940 = vmax.f32 %v906, %v909
      %v941 = vmax.f32 %v907, %v909
      %v942 = vstv %s873
      %v943 = vmin.f32 %v910, %v942
      %v944 = vmin.f32 %v911, %v942
      %v945 = vmin.f32 %v912, %v942
      %v946 = vmin.f32 %v913, %v942
      %v947 = vmin.f32 %v914, %v942
      %v948 = vmin.f32 %v915, %v942
      %v949 = vmin.f32 %v916, %v942
      %v950 = vmin.f32 %v917, %v942
      %v951 = vmin.f32 %v918, %v942
      %v952 = vmin.f32 %v919, %v942
      %v953 = vmin.f32 %v920, %v942
      %v954 = vmin.f32 %v921, %v942
      %v955 = vmin.f32 %v922, %v942
      %v956 = vmin.f32 %v923, %v942
      %v957 = vmin.f32 %v924, %v942
      %v958 = vmin.f32 %v925, %v942
      %v959 = vmin.f32 %v926, %v942
      %v960 = vmin.f32 %v927, %v942
      %v961 = vmin.f32 %v928, %v942
      %v962 = vmin.f32 %v929, %v942
      %v963 = vmin.f32 %v930, %v942
      %v964 = vmin.f32 %v931, %v942
      %v965 = vmin.f32 %v932, %v942
      %v966 = vmin.f32 %v933, %v942
      %v967 = vmin.f32 %v934, %v942
      %v968 = vmin.f32 %v935, %v942
      %v969 = vmin.f32 %v936, %v942
      %v970 = vmin.f32 %v937, %v942
      %v971 = vmin.f32 %v938, %v942
      %v972 = vmin.f32 %v939, %v942
      %v973 = vmin.f32 %v940, %v942
      %v974 = vmin.f32 %v941, %v942
      %v975 = vstv %s874
      %v976 = vmul.f32 %v975, %v840
      %v977 = vmul.f32 %v975, %v841
      %v978 = vmul.f32 %v975, %v842
      %v979 = vmul.f32 %v975, %v843
      %v980 = vmul.f32 %v975, %v844
      %v981 = vmul.f32 %v975, %v845
      %v982 = vmul.f32 %v975, %v846
      %v983 = vmul.f32 %v975, %v847
      %v984 = vmul.f32 %v975, %v848
      %v985 = vmul.f32 %v975, %v849
      %v986 = vmul.f32 %v975, %v850
      %v987 = vmul.f32 %v975, %v851
      %v988 = vmul.f32 %v975, %v852
      %v989 = vmul.f32 %v975, %v853
      %v990 = vmul.f32 %v975, %v854
      %v991 = vmul.f32 %v975, %v855
      %v992 = vmul.f32 %v975, %v856
      %v993 = vmul.f32 %v975, %v857
      %v994 = vmul.f32 %v975, %v858
      %v995 = vmul.f32 %v975, %v859
      %v996 = vmul.f32 %v975, %v860
      %v997 = vmul.f32 %v975, %v861
      %v998 = vmul.f32 %v975, %v862
      %v999 = vmul.f32 %v975, %v863
      %v1000 = vmul.f32 %v975, %v864
      %v1001 = vmul.f32 %v975, %v865
      %v1002 = vmul.f32 %v975, %v866
      %v1003 = vmul.f32 %v975, %v867
      %v1004 = vmul.f32 %v975, %v868
      %v1005 = vmul.f32 %v975, %v869
      %v1006 = vmul.f32 %v975, %v870
      %v1007 = vmul.f32 %v975, %v871
      %v1008 = vadd.f32 %v943, %v976
      %v1009 = vadd.f32 %v944, %v977
      %v1010 = vadd.f32 %v945, %v978
      %v1011 = vadd.f32 %v946, %v979
      %v1012 = vadd.f32 %v947, %v980
      %v1013 = vadd.f32 %v948, %v981
      %v1014 = vadd.f32 %v949, %v982
      %v1015 = vadd.f32 %v950, %v983
      %v1016 = vadd.f32 %v951, %v984
      %v1017 = vadd.f32 %v952, %v985
      %v1018 = vadd.f32 %v953, %v986
      %v1019 = vadd.f32 %v954, %v987
      %v1020 = vadd.f32 %v955, %v988
      %v1021 = vadd.f32 %v956, %v989
      %v1022 = vadd.f32 %v957, %v990
      %v1023 = vadd.f32 %v958, %v991
      %v1024 = vadd.f32 %v959, %v992
      %v1025 = vadd.f32 %v960, %v993
      %v1026 = vadd.f32 %v961, %v994
      %v1027 = vadd.f32 %v962, %v995
      %v1028 = vadd.f32 %v963, %v996
      %v1029 = vadd.f32 %v964, %v997
      %v1030 = vadd.f32 %v965, %v998
      %v1031 = vadd.f32 %v966, %v999
      %v1032 = vadd.f32 %v967, %v1000
      %v1033 = vadd.f32 %v968, %v1001
      %v1034 = vadd.f32 %v969, %v1002
      %v1035 = vadd.f32 %v970, %v1003
      %v1036 = vadd.f32 %v971, %v1004
      %v1037 = vadd.f32 %v972, %v1005
      %v1038 = vadd.f32 %v973, %v1006
      %v1039 = vadd.f32 %v974, %v1007
      %1040 = vst [vmem:[#allocation7] sm:$0xff] %v1008
      %1041 = vst [vmem:[#allocation7 + $0x8] sm:$0xff] %v1009
      %1042 = vst [vmem:[#allocation7 + $0x10] sm:$0xff] %v1010
      %1043 = vst [vmem:[#allocation7 + $0x18] sm:$0xff] %v1011
      %1044 = vst [vmem:[#allocation7 + $0x20] sm:$0xff] %v1012
      %1045 = vst [vmem:[#allocation7 + $0x28] sm:$0xff] %v1013
      %1046 = vst [vmem:[#allocation7 + $0x30] sm:$0xff] %v1014
      %1047 = vst [vmem:[#allocation7 + $0x38] sm:$0xff] %v1015
      %1048 = vst [vmem:[#allocation7 + $0x40] sm:$0xff] %v1016
      %1049 = vst [vmem:[#allocation7 + $0x48] sm:$0xff] %v1017
      %1050 = vst [vmem:[#allocation7 + $0x50] sm:$0xff] %v1018
      %1051 = vst [vmem:[#allocation7 + $0x58] sm:$0xff] %v1019
      %1052 = vst [vmem:[#allocation7 + $0x60] sm:$0xff] %v1020
      %1053 = vst [vmem:[#allocation7 + $0x68] sm:$0xff] %v1021
      %1054 = vst [vmem:[#allocation7 + $0x70] sm:$0xff] %v1022
      %1055 = vst [vmem:[#allocation7 + $0x78] sm:$0xff] %v1023
      %1056 = vst [vmem:[#allocation7 + $0x80] sm:$0xff] %v1024
      %1057 = vst [vmem:[#allocation7 + $0x88] sm:$0xff] %v1025
      %1058 = vst [vmem:[#allocation7 + $0x90] sm:$0xff] %v1026
      %1059 = vst [vmem:[#allocation7 + $0x98] sm:$0xff] %v1027
      %1060 = vst [vmem:[#allocation7 + $0xa0] sm:$0xff] %v1028
      %1061 = vst [vmem:[#allocation7 + $0xa8] sm:$0xff] %v1029
      %1062 = vst [vmem:[#allocation7 + $0xb0] sm:$0xff] %v1030
      %1063 = vst [vmem:[#allocation7 + $0xb8] sm:$0xff] %v1031
      %1064 = vst [vmem:[#allocation7 + $0xc0] sm:$0xff] %v1032
      %1065 = vst [vmem:[#allocation7 + $0xc8] sm:$0xff] %v1033
      %1066 = vst [vmem:[#allocation7 + $0xd0] sm:$0xff] %v1034
      %1067 = vst [vmem:[#allocation7 + $0xd8] sm:$0xff] %v1035
      %1068 = vst [vmem:[#allocation7 + $0xe0] sm:$0xff] %v1036
      %1069 = vst [vmem:[#allocation7 + $0xe8] sm:$0xff] %v1037
      %1070 = vst [vmem:[#allocation7 + $0xf0] sm:$0xff] %v1038
      %1071 = vst [vmem:[#allocation7 + $0xf8] sm:$0xff] %v1039
      %v1072 = vld [vmem:[#allocation7] sm:$0xff]
      %v1073 = vld [vmem:[#allocation7 + $0x8] sm:$0xff]
      %v1074 = vld [vmem:[#allocation7 + $0x10] sm:$0xff]
      %v1075 = vld [vmem:[#allocation7 + $0x18] sm:$0xff]
      %v1076 = vld [vmem:[#allocation7 + $0x20] sm:$0xff]
      %v1077 = vld [vmem:[#allocation7 + $0x28] sm:$0xff]
      %v1078 = vld [vmem:[#allocation7 + $0x30] sm:$0xff]
      %v1079 = vld [vmem:[#allocation7 + $0x38] sm:$0xff]
      %v1080 = vld [vmem:[#allocation7 + $0x40] sm:$0xff]
      %v1081 = vld [vmem:[#allocation7 + $0x48] sm:$0xff]
      %v1082 = vld [vmem:[#allocation7 + $0x50] sm:$0xff]
      %v1083 = vld [vmem:[#allocation7 + $0x58] sm:$0xff]
      %v1084 = vld [vmem:[#allocation7 + $0x60] sm:$0xff]
      %v1085 = vld [vmem:[#allocation7 + $0x68] sm:$0xff]
      %v1086 = vld [vmem:[#allocation7 + $0x70] sm:$0xff]
      %v1087 = vld [vmem:[#allocation7 + $0x78] sm:$0xff]
      %v1088 = vld [vmem:[#allocation7 + $0x80] sm:$0xff]
      %v1089 = vld [vmem:[#allocation7 + $0x88] sm:$0xff]
      %v1090 = vld [vmem:[#allocation7 + $0x90] sm:$0xff]
      %v1091 = vld [vmem:[#allocation7 + $0x98] sm:$0xff]
      %v1092 = vld [vmem:[#allocation7 + $0xa0] sm:$0xff]
      %v1093 = vld [vmem:[#allocation7 + $0xa8] sm:$0xff]
      %v1094 = vld [vmem:[#allocation7 + $0xb0] sm:$0xff]
      %v1095 = vld [vmem:[#allocation7 + $0xb8] sm:$0xff]
      %v1096 = vld [vmem:[#allocation7 + $0xc0] sm:$0xff]
      %v1097 = vld [vmem:[#allocation7 + $0xc8] sm:$0xff]
      %v1098 = vld [vmem:[#allocation7 + $0xd0] sm:$0xff]
      %v1099 = vld [vmem:[#allocation7 + $0xd8] sm:$0xff]
      %v1100 = vld [vmem:[#allocation7 + $0xe0] sm:$0xff]
      %v1101 = vld [vmem:[#allocation7 + $0xe8] sm:$0xff]
      %v1102 = vld [vmem:[#allocation7 + $0xf0] sm:$0xff]
      %v1103 = vld [vmem:[#allocation7 + $0xf8] sm:$0xff]
      %s1104 = sld [smem:[#allocation3 + $0xc]]
      %s1105 = sld [smem:[#allocation3 + $0xd]]
      %s1106 = sld [smem:[#allocation3 + $0xe]]
      %v1107 = vstv %s1104
      %v1108 = vmul.f32 %v1072, %v1107
      %v1109 = vmul.f32 %v1073, %v1107
      %v1110 = vmul.f32 %v1074, %v1107
      %v1111 = vmul.f32 %v1075, %v1107
      %v1112 = vmul.f32 %v1076, %v1107
      %v1113 = vmul.f32 %v1077, %v1107
      %v1114 = vmul.f32 %v1078, %v1107
      %v1115 = vmul.f32 %v1079, %v1107
      %v1116 = vmul.f32 %v1080, %v1107
      %v1117 = vmul.f32 %v1081, %v1107
      %v1118 = vmul.f32 %v1082, %v1107
      %v1119 = vmul.f32 %v1083, %v1107
      %v1120 = vmul.f32 %v1084, %v1107
      %v1121 = vmul.f32 %v1085, %v1107
      %v1122 = vmul.f32 %v1086, %v1107
      %v1123 = vmul.f32 %v1087, %v1107
      %v1124 = vmul.f32 %v1088, %v1107
      %v1125 = vmul.f32 %v1089, %v1107
      %v1126 = vmul.f32 %v1090, %v1107
      %v1127 = vmul.f32 %v1091, %v1107
      %v1128 = vmul.f32 %v1092, %v1107
      %v1129 = vmul.f32 %v1093, %v1107
      %v1130 = vmul.f32 %v1094, %v1107
      %v1131 = vmul.f32 %v1095, %v1107
      %v1132 = vmul.f32 %v1096, %v1107
      %v1133 = vmul.f32 %v1097, %v1107
      %v1134 = vmul.f32 %v1098, %v1107
      %v1135 = vmul.f32 %v1099, %v1107
      %v1136 = vmul.f32 %v1100, %v1107
      %v1137 = vmul.f32 %v1101, %v1107
      %v1138 = vmul.f32 %v1102, %v1107
      %v1139 = vmul.f32 %v1103, %v1107
      %s1140 = ssub.f32 0.0, %s1105
      %v1141 = vstv %s1140
      %v1142 = vmax.f32 %v1108, %v1141
      %v1143 = vmax.f32 %v1109, %v1141
      %v1144 = vmax.f32 %v1110, %v1141
      %v1145 = vmax.f32 %v1111, %v1141
      %v1146 = vmax.f32 %v1112, %v1141
      %v1147 = vmax.f32 %v1113, %v1141
      %v1148 = vmax.f32 %v1114, %v1141
      %v1149 = vmax.f32 %v1115, %v1141
      %v1150 = vmax.f32 %v1116, %v1141
      %v1151 = vmax.f32 %v1117, %v1141
      %v1152 = vmax.f32 %v1118, %v1141
      %v1153 = vmax.f32 %v1119, %v1141
      %v1154 = vmax.f32 %v1120, %v1141
      %v1155 = vmax.f32 %v1121, %v1141
      %v1156 = vmax.f32 %v1122, %v1141
      %v1157 = vmax.f32 %v1123, %v1141
      %v1158 = vmax.f32 %v1124, %v1141
      %v1159 = vmax.f32 %v1125, %v1141
      %v1160 = vmax.f32 %v1126, %v1141
      %v1161 = vmax.f32 %v1127, %v1141
      %v1162 = vmax.f32 %v1128, %v1141
      %v1163 = vmax.f32 %v1129, %v1141
      %v1164 = vmax.f32 %v1130, %v1141
      %v1165 = vmax.f32 %v1131, %v1141
      %v1166 = vmax.f32 %v1132, %v1141
      %v1167 = vmax.f32 %v1133, %v1141
      %v1168 = vmax.f32 %v1134, %v1141
      %v1169 = vmax.f32 %v1135, %v1141
      %v1170 = vmax.f32 %v1136, %v1141
      %v1171 = vmax.f32 %v1137, %v1141
      %v1172 = vmax.f32 %v1138, %v1141
      %v1173 = vmax.f32 %v1139, %v1141
      %v1174 = vstv %s1105
      %v1175 = vmin.f32 %v1142, %v1174
      %v1176 = vmin.f32 %v1143, %v1174
      %v1177 = vmin.f32 %v1144, %v1174
      %v1178 = vmin.f32 %v1145, %v1174
      %v1179 = vmin.f32 %v1146, %v1174
      %v1180 = vmin.f32 %v1147, %v1174
      %v1181 = vmin.f32 %v1148, %v1174
      %v1182 = vmin.f32 %v1149, %v1174
      %v1183 = vmin.f32 %v1150, %v1174
      %v1184 = vmin.f32 %v1151, %v1174
      %v1185 = vmin.f32 %v1152, %v1174
      %v1186 = vmin.f32 %v1153, %v1174
      %v1187 = vmin.f32 %v1154, %v1174
      %v1188 = vmin.f32 %v1155, %v1174
      %v1189 = vmin.f32 %v1156, %v1174
      %v1190 = vmin.f32 %v1157, %v1174
      %v1191 = vmin.f32 %v1158, %v1174
      %v1192 = vmin.f32 %v1159, %v1174
      %v1193 = vmin.f32 %v1160, %v1174
      %v1194 = vmin.f32 %v1161, %v1174
      %v1195 = vmin.f32 %v1162, %v1174
      %v1196 = vmin.f32 %v1163, %v1174
      %v1197 = vmin.f32 %v1164, %v1174
      %v1198 = vmin.f32 %v1165, %v1174
      %v1199 = vmin.f32 %v1166, %v1174
      %v1200 = vmin.f32 %v1167, %v1174
      %v1201 = vmin.f32 %v1168, %v1174
      %v1202 = vmin.f32 %v1169, %v1174
      %v1203 = vmin.f32 %v1170, %v1174
      %v1204 = vmin.f32 %v1171, %v1174
      %v1205 = vmin.f32 %v1172, %v1174
      %v1206 = vmin.f32 %v1173, %v1174
      %v1207 = vstv %s1106
      %v1208 = vmul.f32 %v1207, %v1072
      %v1209 = vmul.f32 %v1207, %v1073
      %v1210 = vmul.f32 %v1207, %v1074
      %v1211 = vmul.f32 %v1207, %v1075
      %v1212 = vmul.f32 %v1207, %v1076
      %v1213 = vmul.f32 %v1207, %v1077
      %v1214 = vmul.f32 %v1207, %v1078
      %v1215 = vmul.f32 %v1207, %v1079
      %v1216 = vmul.f32 %v1207, %v1080
      %v1217 = vmul.f32 %v1207, %v1081
      %v1218 = vmul.f32 %v1207, %v1082
      %v1219 = vmul.f32 %v1207, %v1083
      %v1220 = vmul.f32 %v1207, %v1084
      %v1221 = vmul.f32 %v1207, %v1085
      %v1222 = vmul.f32 %v1207, %v1086
      %v1223 = vmul.f32 %v1207, %v1087
      %v1224 = vmul.f32 %v1207, %v1088
      %v1225 = vmul.f32 %v1207, %v1089
      %v1226 = vmul.f32 %v1207, %v1090
      %v1227 = vmul.f32 %v1207, %v1091
      %v1228 = vmul.f32 %v1207, %v1092
      %v1229 = vmul.f32 %v1207, %v1093
      %v1230 = vmul.f32 %v1207, %v1094
      %v1231 = vmul.f32 %v1207, %v1095
      %v1232 = vmul.f32 %v1207, %v1096
      %v1233 = vmul.f32 %v1207, %v1097
      %v1234 = vmul.f32 %v1207, %v1098
      %v1235 = vmul.f32 %v1207, %v1099
      %v1236 = vmul.f32 %v1207, %v1100
      %v1237 = vmul.f32 %v1207, %v1101
      %v1238 = vmul.f32 %v1207, %v1102
      %v1239 = vmul.f32 %v1207, %v1103
      %v1240 = vadd.f32 %v1175, %v1208
      %v1241 = vadd.f32 %v1176, %v1209
      %v1242 = vadd.f32 %v1177, %v1210
      %v1243 = vadd.f32 %v1178, %v1211
      %v1244 = vadd.f32 %v1179, %v1212
      %v1245 = vadd.f32 %v1180, %v1213
      %v1246 = vadd.f32 %v1181, %v1214
      %v1247 = vadd.f32 %v1182, %v1215
      %v1248 = vadd.f32 %v1183, %v1216
      %v1249 = vadd.f32 %v1184, %v1217
      %v1250 = vadd.f32 %v1185, %v1218
      %v1251 = vadd.f32 %v1186, %v1219
      %v1252 = vadd.f32 %v1187, %v1220
      %v1253 = vadd.f32 %v1188, %v1221
      %v1254 = vadd.f32 %v1189, %v1222
      %v1255 = vadd.f32 %v1190, %v1223
      %v1256 = vadd.f32 %v1191, %v1224
      %v1257 = vadd.f32 %v1192, %v1225
      %v1258 = vadd.f32 %v1193, %v1226
      %v1259 = vadd.f32 %v1194, %v1227
      %v1260 = vadd.f32 %v1195, %v1228
      %v1261 = vadd.f32 %v1196, %v1229
      %v1262 = vadd.f32 %v1197, %v1230
      %v1263 = vadd.f32 %v1198, %v1231
      %v1264 = vadd.f32 %v1199, %v1232
      %v1265 = vadd.f32 %v1200, %v1233
      %v1266 = vadd.f32 %v1201, %v1234
      %v1267 = vadd.f32 %v1202, %v1235
      %v1268 = vadd.f32 %v1203, %v1236
      %v1269 = vadd.f32 %v1204, %v1237
      %v1270 = vadd.f32 %v1205, %v1238
      %v1271 = vadd.f32 %v1206, %v1239
      %1272 = vst [vmem:[#allocation7] sm:$0xff] %v1240
      %1273 = vst [vmem:[#allocation7 + $0x8] sm:$0xff] %v1241
      %1274 = vst [vmem:[#allocation7 + $0x10] sm:$0xff] %v1242
      %1275 = vst [vmem:[#allocation7 + $0x18] sm:$0xff] %v1243
      %1276 = vst [vmem:[#allocation7 + $0x20] sm:$0xff] %v1244
      %1277 = vst [vmem:[#allocation7 + $0x28] sm:$0xff] %v1245
      %1278 = vst [vmem:[#allocation7 + $0x30] sm:$0xff] %v1246
      %1279 = vst [vmem:[#allocation7 + $0x38] sm:$0xff] %v1247
      %1280 = vst [vmem:[#allocation7 + $0x40] sm:$0xff] %v1248
      %1281 = vst [vmem:[#allocation7 + $0x48] sm:$0xff] %v1249
      %1282 = vst [vmem:[#allocation7 + $0x50] sm:$0xff] %v1250
      %1283 = vst [vmem:[#allocation7 + $0x58] sm:$0xff] %v1251
      %1284 = vst [vmem:[#allocation7 + $0x60] sm:$0xff] %v1252
      %1285 = vst [vmem:[#allocation7 + $0x68] sm:$0xff] %v1253
      %1286 = vst [vmem:[#allocation7 + $0x70] sm:$0xff] %v1254
      %1287 = vst [vmem:[#allocation7 + $0x78] sm:$0xff] %v1255
      %1288 = vst [vmem:[#allocation7 + $0x80] sm:$0xff] %v1256
      %1289 = vst [vmem:[#allocation7 + $0x88] sm:$0xff] %v1257
      %1290 = vst [vmem:[#allocation7 + $0x90] sm:$0xff] %v1258
      %1291 = vst [vmem:[#allocation7 + $0x98] sm:$0xff] %v1259
      %1292 = vst [vmem:[#allocation7 + $0xa0] sm:$0xff] %v1260
      %1293 = vst [vmem:[#allocation7 + $0xa8] sm:$0xff] %v1261
      %1294 = vst [vmem:[#allocation7 + $0xb0] sm:$0xff] %v1262
      %1295 = vst [vmem:[#allocation7 + $0xb8] sm:$0xff] %v1263
      %1296 = vst [vmem:[#allocation7 + $0xc0] sm:$0xff] %v1264
      %1297 = vst [vmem:[#allocation7 + $0xc8] sm:$0xff] %v1265
      %1298 = vst [vmem:[#allocation7 + $0xd0] sm:$0xff] %v1266
      %1299 = vst [vmem:[#allocation7 + $0xd8] sm:$0xff] %v1267
      %1300 = vst [vmem:[#allocation7 + $0xe0] sm:$0xff] %v1268
      %1301 = vst [vmem:[#allocation7 + $0xe8] sm:$0xff] %v1269
      %1302 = vst [vmem:[#allocation7 + $0xf0] sm:$0xff] %v1270
      %1303 = vst [vmem:[#allocation7 + $0xf8] sm:$0xff] %v1271
      %v1304 = vld [vmem:[#allocation7] sm:$0xff]
      %v1305 = vld [vmem:[#allocation7 + $0x8] sm:$0xff]
      %v1306 = vld [vmem:[#allocation7 + $0x10] sm:$0xff]
      %v1307 = vld [vmem:[#allocation7 + $0x18] sm:$0xff]
      %v1308 = vld [vmem:[#allocation7 + $0x20] sm:$0xff]
      %v1309 = vld [vmem:[#allocation7 + $0x28] sm:$0xff]
      %v1310 = vld [vmem:[#allocation7 + $0x30] sm:$0xff]
      %v1311 = vld [vmem:[#allocation7 + $0x38] sm:$0xff]
      %v1312 = vld [vmem:[#allocation7 + $0x40] sm:$0xff]
      %v1313 = vld [vmem:[#allocation7 + $0x48] sm:$0xff]
      %v1314 = vld [vmem:[#allocation7 + $0x50] sm:$0xff]
      %v1315 = vld [vmem:[#allocation7 + $0x58] sm:$0xff]
      %v1316 = vld [vmem:[#allocation7 + $0x60] sm:$0xff]
      %v1317 = vld [vmem:[#allocation7 + $0x68] sm:$0xff]
      %v1318 = vld [vmem:[#allocation7 + $0x70] sm:$0xff]
      %v1319 = vld [vmem:[#allocation7 + $0x78] sm:$0xff]
      %v1320 = vld [vmem:[#allocation7 + $0x80] sm:$0xff]
      %v1321 = vld [vmem:[#allocation7 + $0x88] sm:$0xff]
      %v1322 = vld [vmem:[#allocation7 + $0x90] sm:$0xff]
      %v1323 = vld [vmem:[#allocation7 + $0x98] sm:$0xff]
      %v1324 = vld [vmem:[#allocation7 + $0xa0] sm:$0xff]
      %v1325 = vld [vmem:[#allocation7 + $0xa8] sm:$0xff]
      %v1326 = vld [vmem:[#allocation7 + $0xb0] sm:$0xff]
      %v1327 = vld [vmem:[#allocation7 + $0xb8] sm:$0xff]
      %v1328 = vld [vmem:[#allocation7 + $0xc0] sm:$0xff]
      %v1329 = vld [vmem:[#allocation7 + $0xc8] sm:$0xff]
      %v1330 = vld [vmem:[#allocation7 + $0xd0] sm:$0xff]
      %v1331 = vld [vmem:[#allocation7 + $0xd8] sm:$0xff]
      %v1332 = vld [vmem:[#allocation7 + $0xe0] sm:$0xff]
      %v1333 = vld [vmem:[#allocation7 + $0xe8] sm:$0xff]
      %v1334 = vld [vmem:[#allocation7 + $0xf0] sm:$0xff]
      %v1335 = vld [vmem:[#allocation7 + $0xf8] sm:$0xff]
      %s1336 = sld [smem:[#allocation3 + $0xf]]
      %s1337 = sld [smem:[#allocation3 + $0x10]]
      %s1338 = sld [smem:[#allocation3 + $0x11]]
      %v1339 = vstv %s1336
      %v1340 = vmul.f32 %v1304, %v1339
      %v1341 = vmul.f32 %v1305, %v1339
      %v1342 = vmul.f32 %v1306, %v1339
      %v1343 = vmul.f32 %v1307, %v1339
      %v1344 = vmul.f32 %v1308, %v1339
      %v1345 = vmul.f32 %v1309, %v1339
      %v1346 = vmul.f32 %v1310, %v1339
      %v1347 = vmul.f32 %v1311, %v1339
      %v1348 = vmul.f32 %v1312, %v1339
      %v1349 = vmul.f32 %v1313, %v1339
      %v1350 = vmul.f32 %v1314, %v1339
      %v1351 = vmul.f32 %v1315, %v1339
      %v1352 = vmul.f32 %v1316, %v1339
      %v1353 = vmul.f32 %v1317, %v1339
      %v1354 = vmul.f32 %v1318, %v1339
      %v1355 = vmul.f32 %v1319, %v1339
      %v1356 = vmul.f32 %v1320, %v1339
      %v1357 = vmul.f32 %v1321, %v1339
      %v1358 = vmul.f32 %v1322, %v1339
      %v1359 = vmul.f32 %v1323, %v1339
      %v1360 = vmul.f32 %v1324, %v1339
      %v1361 = vmul.f32 %v1325, %v1339
      %v1362 = vmul.f32 %v1326, %v1339
      %v1363 = vmul.f32 %v1327, %v1339
      %v1364 = vmul.f32 %v1328, %v1339
      %v1365 = vmul.f32 %v1329, %v1339
      %v1366 = vmul.f32 %v1330, %v1339
      %v1367 = vmul.f32 %v1331, %v1339
      %v1368 = vmul.f32 %v1332, %v1339
      %v1369 = vmul.f32 %v1333, %v1339
      %v1370 = vmul.f32 %v1334, %v1339
      %v1371 = vmul.f32 %v1335, %v1339
      %s1372 = ssub.f32 0.0, %s1337
      %v1373 = vstv %s1372
      %v1374 = vmax.f32 %v1340, %v1373
      %v1375 = vmax.f32 %v1341, %v1373
      %v1376 = vmax.f32 %v1342, %v1373
      %v1377 = vmax.f32 %v1343, %v1373
      %v1378 = vmax.f32 %v1344, %v1373
      %v1379 = vmax.f32 %v1345, %v1373
      %v1380 = vmax.f32 %v1346, %v1373
      %v1381 = vmax.f32 %v1347, %v1373
      %v1382 = vmax.f32 %v1348, %v1373
      %v1383 = vmax.f32 %v1349, %v1373
      %v1384 = vmax.f32 %v1350, %v1373
      %v1385 = vmax.f32 %v1351, %v1373
      %v1386 = vmax.f32 %v1352, %v1373
      %v1387 = vmax.f32 %v1353, %v1373
      %v1388 = vmax.f32 %v1354, %v1373
      %v1389 = vmax.f32 %v1355, %v1373
      %v1390 = vmax.f32 %v1356, %v1373
      %v1391 = vmax.f32 %v1357, %v1373
      %v1392 = vmax.f32 %v1358, %v1373
      %v1393 = vmax.f32 %v1359, %v1373
      %v1394 = vmax.f32 %v1360, %v1373
      %v1395 = vmax.f32 %v1361, %v1373
      %v1396 = vmax.f32 %v1362, %v1373
      %v1397 = vmax.f32 %v1363, %v1373
      %v1398 = vmax.f32 %v1364, %v1373
      %v1399 = vmax.f32 %v1365, %v1373
      %v1400 = vmax.f32 %v1366, %v1373
      %v1401 = vmax.f32 %v1367, %v1373
      %v1402 = vmax.f32 %v1368, %v1373
      %v1403 = vmax.f32 %v1369, %v1373
      %v1404 = vmax.f32 %v1370, %v1373
      %v1405 = vmax.f32 %v1371, %v1373
      %v1406 = vstv %s1337
      %v1407 = vmin.f32 %v1374, %v1406
      %v1408 = vmin.f32 %v1375, %v1406
      %v1409 = vmin.f32 %v1376, %v1406
      %v1410 = vmin.f32 %v1377, %v1406
      %v1411 = vmin.f32 %v1378, %v1406
      %v1412 = vmin.f32 %v1379, %v1406
      %v1413 = vmin.f32 %v1380, %v1406
      %v1414 = vmin.f32 %v1381, %v1406
      %v1415 = vmin.f32 %v1382, %v1406
      %v1416 = vmin.f32 %v1383, %v1406
      %v1417 = vmin.f32 %v1384, %v1406
      %v1418 = vmin.f32 %v1385, %v1406
      %v1419 = vmin.f32 %v1386, %v1406
      %v1420 = vmin.f32 %v1387, %v1406
      %v1421 = vmin.f32 %v1388, %v1406
      %v1422 = vmin.f32 %v1389, %v1406
      %v1423 = vmin.f32 %v1390, %v1406
      %v1424 = vmin.f32 %v1391, %v1406
      %v1425 = vmin.f32 %v1392, %v1406
      %v1426 = vmin.f32 %v1393, %v1406
      %v1427 = vmin.f32 %v1394, %v1406
      %v1428 = vmin.f32 %v1395, %v1406
      %v1429 = vmin.f32 %v1396, %v1406
      %v1430 = vmin.f32 %v1397, %v1406
      %v1431 = vmin.f32 %v1398, %v1406
      %v1432 = vmin.f32 %v1399, %v1406
      %v1433 = vmin.f32 %v1400, %v1406
      %v1434 = vmin.f32 %v1401, %v1406
      %v1435 = vmin.f32 %v1402, %v1406
      %v1436 = vmin.f32 %v1403, %v1406
      %v1437 = vmin.f32 %v1404, %v1406
      %v1438 = vmin.f32 %v1405, %v1406
      %v1439 = vstv %s1338
      %v1440 = vmul.f32 %v1439, %v1304
      %v1441 = vmul.f32 %v1439, %v1305
      %v1442 = vmul.f32 %v1439, %v1306
      %v1443 = vmul.f32 %v1439, %v1307
      %v1444 = vmul.f32 %v1439, %v1308
      %v1445 = vmul.f32 %v1439, %v1309
      %v1446 = vmul.f32 %v1439, %v1310
      %v1447 = vmul.f32 %v1439, %v1311
      %v1448 = vmul.f32 %v1439, %v1312
      %v1449 = vmul.f32 %v1439, %v1313
      %v1450 = vmul.f32 %v1439, %v1314
      %v1451 = vmul.f32 %v1439, %v1315
      %v1452 = vmul.f32 %v1439, %v1316
      %v1453 = vmul.f32 %v1439, %v1317
      %v1454 = vmul.f32 %v1439, %v1318
      %v1455 = vmul.f32 %v1439, %v1319
      %v1456 = vmul.f32 %v1439, %v1320
      %v1457 = vmul.f32 %v1439, %v1321
      %v1458 = vmul.f32 %v1439, %v1322
      %v1459 = vmul.f32 %v1439, %v1323
      %v1460 = vmul.f32 %v1439, %v1324
      %v1461 = vmul.f32 %v1439, %v1325
      %v1462 = vmul.f32 %v1439, %v1326
      %v1463 = vmul.f32 %v1439, %v1327
      %v1464 = vmul.f32 %v1439, %v1328
      %v1465 = vmul.f32 %v1439, %v1329
      %v1466 = vmul.f32 %v1439, %v1330
      %v1467 = vmul.f32 %v1439, %v1331
      %v1468 = vmul.f32 %v1439, %v1332
      %v1469 = vmul.f32 %v1439, %v1333
      %v1470 = vmul.f32 %v1439, %v1334
      %v1471 = vmul.f32 %v1439, %v1335
      %v1472 = vadd.f32 %v1407, %v1440
      %v1473 = vadd.f32 %v1408, %v1441
      %v1474 = vadd.f32 %v1409, %v1442
      %v1475 = vadd.f32 %v1410, %v1443
      %v1476 = vadd.f32 %v1411, %v1444
      %v1477 = vadd.f32 %v1412, %v1445
      %v1478 = vadd.f32 %v1413, %v1446
      %v1479 = vadd.f32 %v1414, %v1447
      %v1480 = vadd.f32 %v1415, %v1448
      %v1481 = vadd.f32 %v1416, %v1449
      %v1482 = vadd.f32 %v1417, %v1450
      %v1483 = vadd.f32 %v1418, %v1451
      %v1484 = vadd.f32 %v1419, %v1452
      %v1485 = vadd.f32 %v1420, %v1453
      %v1486 = vadd.f32 %v1421, %v1454
      %v1487 = vadd.f32 %v1422, %v1455
      %v1488 = vadd.f32 %v1423, %v1456
      %v1489 = vadd.f32 %v1424, %v1457
      %v1490 = vadd.f32 %v1425, %v1458
      %v1491 = vadd.f32 %v1426, %v1459
      %v1492 = vadd.f32 %v1427, %v1460
      %v1493 = vadd.f32 %v1428, %v1461
      %v1494 = vadd.f32 %v1429, %v1462
      %v1495 = vadd.f32 %v1430, %v1463
      %v1496 = vadd.f32 %v1431, %v1464
      %v1497 = vadd.f32 %v1432, %v1465
      %v1498 = vadd.f32 %v1433, %v1466
      %v1499 = vadd.f32 %v1434, %v1467
      %v1500 = vadd.f32 %v1435, %v1468
      %v1501 = vadd.f32 %v1436, %v1469
      %v1502 = vadd.f32 %v1437, %v1470
      %v1503 = vadd.f32 %v1438, %v1471
      %1504 = vst [vmem:[#allocation7] sm:$0xff] %v1472
      %1505 = vst [vmem:[#allocation7 + $0x8] sm:$0xff] %v1473
      %1506 = vst [vmem:[#allocation7 + $0x10] sm:$0xff] %v1474
      %1507 = vst [vmem:[#allocation7 + $0x18] sm:$0xff] %v1475
      %1508 = vst [vmem:[#allocation7 + $0x20] sm:$0xff] %v1476
      %1509 = vst [vmem:[#allocation7 + $0x28] sm:$0xff] %v1477
      %1510 = vst [vmem:[#allocation7 + $0x30] sm:$0xff] %v1478
      %1511 = vst [vmem:[#allocation7 + $0x38] sm:$0xff] %v1479
      %1512 = vst [vmem:[#allocation7 + $0x40] sm:$0xff] %v1480
      %1513 = vst [vmem:[#allocation7 + $0x48] sm:$0xff] %v1481
      %1514 = vst [vmem:[#allocation7 + $0x50] sm:$0xff] %v1482
      %1515 = vst [vmem:[#allocation7 + $0x58] sm:$0xff] %v1483
      %1516 = vst [vmem:[#allocation7 + $0x60] sm:$0xff] %v1484
      %1517 = vst [vmem:[#allocation7 + $0x68] sm:$0xff] %v1485
      %1518 = vst [vmem:[#allocation7 + $0x70] sm:$0xff] %v1486
      %1519 = vst [vmem:[#allocation7 + $0x78] sm:$0xff] %v1487
      %1520 = vst [vmem:[#allocation7 + $0x80] sm:$0xff] %v1488
      %1521 = vst [vmem:[#allocation7 + $0x88] sm:$0xff] %v1489
      %1522 = vst [vmem:[#allocation7 + $0x90] sm:$0xff] %v1490
      %1523 = vst [vmem:[#allocation7 + $0x98] sm:$0xff] %v1491
      %1524 = vst [vmem:[#allocation7 + $0xa0] sm:$0xff] %v1492
      %1525 = vst [vmem:[#allocation7 + $0xa8] sm:$0xff] %v1493
      %1526 = vst [vmem:[#allocation7 + $0xb0] sm:$0xff] %v1494
      %1527 = vst [vmem:[#allocation7 + $0xb8] sm:$0xff] %v1495
      %1528 = vst [vmem:[#allocation7 + $0xc0] sm:$0xff] %v1496
      %1529 = vst [vmem:[#allocation7 + $0xc8] sm:$0xff] %v1497
      %1530 = vst [vmem:[#allocation7 + $0xd0] sm:$0xff] %v1498
      %1531 = vst [vmem:[#allocation7 + $0xd8] sm:$0xff] %v1499
      %1532 = vst [vmem:[#allocation7 + $0xe0] sm:$0xff] %v1500
      %1533 = vst [vmem:[#allocation7 + $0xe8] sm:$0xff] %v1501
      %1534 = vst [vmem:[#allocation7 + $0xf0] sm:$0xff] %v1502
      %1535 = vst [vmem:[#allocation7 + $0xf8] sm:$0xff] %v1503
      %v1536 = vld [vmem:[#allocation7] sm:$0xff]
      %v1537 = vld [vmem:[#allocation7 + $0x8] sm:$0xff]
      %v1538 = vld [vmem:[#allocation7 + $0x10] sm:$0xff]
      %v1539 = vld [vmem:[#allocation7 + $0x18] sm:$0xff]
      %v1540 = vld [vmem:[#allocation7 + $0x20] sm:$0xff]
      %v1541 = vld [vmem:[#allocation7 + $0x28] sm:$0xff]
      %v1542 = vld [vmem:[#allocation7 + $0x30] sm:$0xff]
      %v1543 = vld [vmem:[#allocation7 + $0x38] sm:$0xff]
      %v1544 = vld [vmem:[#allocation7 + $0x40] sm:$0xff]
      %v1545 = vld [vmem:[#allocation7 + $0x48] sm:$0xff]
      %v1546 = vld [vmem:[#allocation7 + $0x50] sm:$0xff]
      %v1547 = vld [vmem:[#allocation7 + $0x58] sm:$0xff]
      %v1548 = vld [vmem:[#allocation7 + $0x60] sm:$0xff]
      %v1549 = vld [vmem:[#allocation7 + $0x68] sm:$0xff]
      %v1550 = vld [vmem:[#allocation7 + $0x70] sm:$0xff]
      %v1551 = vld [vmem:[#allocation7 + $0x78] sm:$0xff]
      %v1552 = vld [vmem:[#allocation7 + $0x80] sm:$0xff]
      %v1553 = vld [vmem:[#allocation7 + $0x88] sm:$0xff]
      %v1554 = vld [vmem:[#allocation7 + $0x90] sm:$0xff]
      %v1555 = vld [vmem:[#allocation7 + $0x98] sm:$0xff]
      %v1556 = vld [vmem:[#allocation7 + $0xa0] sm:$0xff]
      %v1557 = vld [vmem:[#allocation7 + $0xa8] sm:$0xff]
      %v1558 = vld [vmem:[#allocation7 + $0xb0] sm:$0xff]
      %v1559 = vld [vmem:[#allocation7 + $0xb8] sm:$0xff]
      %v1560 = vld [vmem:[#allocation7 + $0xc0] sm:$0xff]
      %v1561 = vld [vmem:[#allocation7 + $0xc8] sm:$0xff]
      %v1562 = vld [vmem:[#allocation7 + $0xd0] sm:$0xff]
      %v1563 = vld [vmem:[#allocation7 + $0xd8] sm:$0xff]
      %v1564 = vld [vmem:[#allocation7 + $0xe0] sm:$0xff]
      %v1565 = vld [vmem:[#allocation7 + $0xe8] sm:$0xff]
      %v1566 = vld [vmem:[#allocation7 + $0xf0] sm:$0xff]
      %v1567 = vld [vmem:[#allocation7 + $0xf8] sm:$0xff]
      %s1568 = sld [smem:[#allocation3 + $0x12]]
      %s1569 = sld [smem:[#allocation3 + $0x13]]
      %s1570 = sld [smem:[#allocation3 + $0x14]]
      %v1571 = vstv %s1568
      %v1572 = vmul.f32 %v1536, %v1571
      %v1573 = vmul.f32 %v1537, %v1571
      %v1574 = vmul.f32 %v1538, %v1571
      %v1575 = vmul.f32 %v1539, %v1571
      %v1576 = vmul.f32 %v1540, %v1571
      %v1577 = vmul.f32 %v1541, %v1571
      %v1578 = vmul.f32 %v1542, %v1571
      %v1579 = vmul.f32 %v1543, %v1571
      %v1580 = vmul.f32 %v1544, %v1571
      %v1581 = vmul.f32 %v1545, %v1571
      %v1582 = vmul.f32 %v1546, %v1571
      %v1583 = vmul.f32 %v1547, %v1571
      %v1584 = vmul.f32 %v1548, %v1571
      %v1585 = vmul.f32 %v1549, %v1571
      %v1586 = vmul.f32 %v1550, %v1571
      %v1587 = vmul.f32 %v1551, %v1571
      %v1588 = vmul.f32 %v1552, %v1571
      %v1589 = vmul.f32 %v1553, %v1571
      %v1590 = vmul.f32 %v1554, %v1571
      %v1591 = vmul.f32 %v1555, %v1571
      %v1592 = vmul.f32 %v1556, %v1571
      %v1593 = vmul.f32 %v1557, %v1571
      %v1594 = vmul.f32 %v1558, %v1571
      %v1595 = vmul.f32 %v1559, %v1571
      %v1596 = vmul.f32 %v1560, %v1571
      %v1597 = vmul.f32 %v1561, %v1571
      %v1598 = vmul.f32 %v1562, %v1571
      %v1599 = vmul.f32 %v1563, %v1571
      %v1600 = vmul.f32 %v1564, %v1571
      %v1601 = vmul.f32 %v1565, %v1571
      %v1602 = vmul.f32 %v1566, %v1571
      %v1603 = vmul.f32 %v1567, %v1571
      %s1604 = ssub.f32 0.0, %s1569
      %v1605 = vstv %s1604
      %v1606 = vmax.f32 %v1572, %v1605
      %v1607 = vmax.f32 %v1573, %v1605
      %v1608 = vmax.f32 %v1574, %v1605
      %v1609 = vmax.f32 %v1575, %v1605
      %v1610 = vmax.f32 %v1576, %v1605
      %v1611 = vmax.f32 %v1577, %v1605
      %v1612 = vmax.f32 %v1578, %v1605
      %v1613 = vmax.f32 %v1579, %v1605
      %v1614 = vmax.f32 %v1580, %v1605
      %v1615 = vmax.f32 %v1581, %v1605
      %v1616 = vmax.f32 %v1582, %v1605
      %v1617 = vmax.f32 %v1583, %v1605
      %v1618 = vmax.f32 %v1584, %v1605
      %v1619 = vmax.f32 %v1585, %v1605
      %v1620 = vmax.f32 %v1586, %v1605
      %v1621 = vmax.f32 %v1587, %v1605
      %v1622 = vmax.f32 %v1588, %v1605
      %v1623 = vmax.f32 %v1589, %v1605
      %v1624 = vmax.f32 %v1590, %v1605
      %v1625 = vmax.f32 %v1591, %v1605
      %v1626 = vmax.f32 %v1592, %v1605
      %v1627 = vmax.f32 %v1593, %v1605
      %v1628 = vmax.f32 %v1594, %v1605
      %v1629 = vmax.f32 %v1595, %v1605
      %v1630 = vmax.f32 %v1596, %v1605
      %v1631 = vmax.f32 %v1597, %v1605
      %v1632 = vmax.f32 %v1598, %v1605
      %v1633 = vmax.f32 %v1599, %v1605
      %v1634 = vmax.f32 %v1600, %v1605
      %v1635 = vmax.f32 %v1601, %v1605
      %v1636 = vmax.f32 %v1602, %v1605
      %v1637 = vmax.f32 %v1603, %v1605
      %v1638 = vstv %s1569
      %v1639 = vmin.f32 %v1606, %v1638
      %v1640 = vmin.f32 %v1607, %v1638
      %v1641 = vmin.f32 %v1608, %v1638
      %v1642 = vmin.f32 %v1609, %v1638
      %v1643 = vmin.f32 %v1610, %v1638
      %v1644 = vmin.f32 %v1611, %v1638
      %v1645 = vmin.f32 %v1612, %v1638
      %v1646 = vmin.f32 %v1613, %v1638
      %v1647 = vmin.f32 %v1614, %v1638
      %v1648 = vmin.f32 %v1615, %v1638
      %v1649 = vmin.f32 %v1616, %v1638
      %v1650 = vmin.f32 %v1617, %v1638
      %v1651 = vmin.f32 %v1618, %v1638
      %v1652 = vmin.f32 %v1619, %v1638
      %v1653 = vmin.f32 %v1620, %v1638
      %v1654 = vmin.f32 %v1621, %v1638
      %v1655 = vmin.f32 %v1622, %v1638
      %v1656 = vmin.f32 %v1623, %v1638
      %v1657 = vmin.f32 %v1624, %v1638
      %v1658 = vmin.f32 %v1625, %v1638
      %v1659 = vmin.f32 %v1626, %v1638
      %v1660 = vmin.f32 %v1627, %v1638
      %v1661 = vmin.f32 %v1628, %v1638
      %v1662 = vmin.f32 %v1629, %v1638
      %v1663 = vmin.f32 %v1630, %v1638
      %v1664 = vmin.f32 %v1631, %v1638
      %v1665 = vmin.f32 %v1632, %v1638
      %v1666 = vmin.f32 %v1633, %v1638
      %v1667 = vmin.f32 %v1634, %v1638
      %v1668 = vmin.f32 %v1635, %v1638
      %v1669 = vmin.f32 %v1636, %v1638
      %v1670 = vmin.f32 %v1637, %v1638
      %v1671 = vstv %s1570
      %v1672 = vmul.f32 %v1671, %v1536
      %v1673 = vmul.f32 %v1671, %v1537
      %v1674 = vmul.f32 %v1671, %v1538
      %v1675 = vmul.f32 %v1671, %v1539
      %v1676 = vmul.f32 %v1671, %v1540
      %v1677 = vmul.f32 %v1671, %v1541
      %v1678 = vmul.f32 %v1671, %v1542
      %v1679 = vmul.f32 %v1671, %v1543
      %v1680 = vmul.f32 %v1671, %v1544
      %v1681 = vmul.f32 %v1671, %v1545
      %v1682 = vmul.f32 %v1671, %v1546
      %v1683 = vmul.f32 %v1671, %v1547
      %v1684 = vmul.f32 %v1671, %v1548
      %v1685 = vmul.f32 %v1671, %v1549
      %v1686 = vmul.f32 %v1671, %v1550
      %v1687 = vmul.f32 %v1671, %v1551
      %v1688 = vmul.f32 %v1671, %v1552
      %v1689 = vmul.f32 %v1671, %v1553
      %v1690 = vmul.f32 %v1671, %v1554
      %v1691 = vmul.f32 %v1671, %v1555
      %v1692 = vmul.f32 %v1671, %v1556
      %v1693 = vmul.f32 %v1671, %v1557
      %v1694 = vmul.f32 %v1671, %v1558
      %v1695 = vmul.f32 %v1671, %v1559
      %v1696 = vmul.f32 %v1671, %v1560
      %v1697 = vmul.f32 %v1671, %v1561
      %v1698 = vmul.f32 %v1671, %v1562
      %v1699 = vmul.f32 %v1671, %v1563
      %v1700 = vmul.f32 %v1671, %v1564
      %v1701 = vmul.f32 %v1671, %v1565
      %v1702 = vmul.f32 %v1671, %v1566
      %v1703 = vmul.f32 %v1671, %v1567
      %v1704 = vadd.f32 %v1639, %v1672
      %v1705 = vadd.f32 %v1640, %v1673
      %v1706 = vadd.f32 %v1641, %v1674
      %v1707 = vadd.f32 %v1642, %v1675
      %v1708 = vadd.f32 %v1643, %v1676
      %v1709 = vadd.f32 %v1644, %v1677
      %v1710 = vadd.f32 %v1645, %v1678
      %v1711 = vadd.f32 %v1646, %v1679
      %v1712 = vadd.f32 %v1647, %v1680
      %v1713 = vadd.f32 %v1648, %v1681
      %v1714 = vadd.f32 %v1649, %v1682
      %v1715 = vadd.f32 %v1650, %v1683
      %v1716 = vadd.f32 %v1651, %v1684
      %v1717 = vadd.f32 %v1652, %v1685
      %v1718 = vadd.f32 %v1653, %v1686
      %v1719 = vadd.f32 %v1654, %v1687
      %v1720 = vadd.f32 %v1655, %v1688
      %v1721 = vadd.f32 %v1656, %v1689
      %v1722 = vadd.f32 %v1657, %v1690
      %v1723 = vadd.f32 %v1658, %v1691
      %v1724 = vadd.f32 %v1659, %v1692
      %v1725 = vadd.f32 %v1660, %v1693
      %v1726 = vadd.f32 %v1661, %v1694
      %v1727 = vadd.f32 %v1662, %v1695
      %v1728 = vadd.f32 %v1663, %v1696
      %v1729 = vadd.f32 %v1664, %v1697
      %v1730 = vadd.f32 %v1665, %v1698
      %v1731 = vadd.f32 %v1666, %v1699
      %v1732 = vadd.f32 %v1667, %v1700
      %v1733 = vadd.f32 %v1668, %v1701
      %v1734 = vadd.f32 %v1669, %v1702
      %v1735 = vadd.f32 %v1670, %v1703
      %1736 = vst [vmem:[#allocation7] sm:$0xff] %v1704
      %1737 = vst [vmem:[#allocation7 + $0x8] sm:$0xff] %v1705
      %1738 = vst [vmem:[#allocation7 + $0x10] sm:$0xff] %v1706
      %1739 = vst [vmem:[#allocation7 + $0x18] sm:$0xff] %v1707
      %1740 = vst [vmem:[#allocation7 + $0x20] sm:$0xff] %v1708
      %1741 = vst [vmem:[#allocation7 + $0x28] sm:$0xff] %v1709
      %1742 = vst [vmem:[#allocation7 + $0x30] sm:$0xff] %v1710
      %1743 = vst [vmem:[#allocation7 + $0x38] sm:$0xff] %v1711
      %1744 = vst [vmem:[#allocation7 + $0x40] sm:$0xff] %v1712
      %1745 = vst [vmem:[#allocation7 + $0x48] sm:$0xff] %v1713
      %1746 = vst [vmem:[#allocation7 + $0x50] sm:$0xff] %v1714
      %1747 = vst [vmem:[#allocation7 + $0x58] sm:$0xff] %v1715
      %1748 = vst [vmem:[#allocation7 + $0x60] sm:$0xff] %v1716
      %1749 = vst [vmem:[#allocation7 + $0x68] sm:$0xff] %v1717
      %1750 = vst [vmem:[#allocation7 + $0x70] sm:$0xff] %v1718
      %1751 = vst [vmem:[#allocation7 + $0x78] sm:$0xff] %v1719
      %1752 = vst [vmem:[#allocation7 + $0x80] sm:$0xff] %v1720
      %1753 = vst [vmem:[#allocation7 + $0x88] sm:$0xff] %v1721
      %1754 = vst [vmem:[#allocation7 + $0x90] sm:$0xff] %v1722
      %1755 = vst [vmem:[#allocation7 + $0x98] sm:$0xff] %v1723
      %1756 = vst [vmem:[#allocation7 + $0xa0] sm:$0xff] %v1724
      %1757 = vst [vmem:[#allocation7 + $0xa8] sm:$0xff] %v1725
      %1758 = vst [vmem:[#allocation7 + $0xb0] sm:$0xff] %v1726
      %1759 = vst [vmem:[#allocation7 + $0xb8] sm:$0xff] %v1727
      %1760 = vst [vmem:[#allocation7 + $0xc0] sm:$0xff] %v1728
      %1761 = vst [vmem:[#allocation7 + $0xc8] sm:$0xff] %v1729
      %1762 = vst [vmem:[#allocation7 + $0xd0] sm:$0xff] %v1730
      %1763 = vst [vmem:[#allocation7 + $0xd8] sm:$0xff] %v1731
      %1764 = vst [vmem:[#allocation7 + $0xe0] sm:$0xff] %v1732
      %1765 = vst [vmem:[#allocation7 + $0xe8] sm:$0xff] %v1733
      %1766 = vst [vmem:[#allocation7 + $0xf0] sm:$0xff] %v1734
      %1767 = vst [vmem:[#allocation7 + $0xf8] sm:$0xff] %v1735
      %v1768 = vld [vmem:[#allocation7] sm:$0xff]
      %v1769 = vld [vmem:[#allocation7 + $0x8] sm:$0xff]
      %v1770 = vld [vmem:[#allocation7 + $0x10] sm:$0xff]
      %v1771 = vld [vmem:[#allocation7 + $0x18] sm:$0xff]
      %v1772 = vld [vmem:[#allocation7 + $0x20] sm:$0xff]
      %v1773 = vld [vmem:[#allocation7 + $0x28] sm:$0xff]
      %v1774 = vld [vmem:[#allocation7 + $0x30] sm:$0xff]
      %v1775 = vld [vmem:[#allocation7 + $0x38] sm:$0xff]
      %v1776 = vld [vmem:[#allocation7 + $0x40] sm:$0xff]
      %v1777 = vld [vmem:[#allocation7 + $0x48] sm:$0xff]
      %v1778 = vld [vmem:[#allocation7 + $0x50] sm:$0xff]
      %v1779 = vld [vmem:[#allocation7 + $0x58] sm:$0xff]
      %v1780 = vld [vmem:[#allocation7 + $0x60] sm:$0xff]
      %v1781 = vld [vmem:[#allocation7 + $0x68] sm:$0xff]
      %v1782 = vld [vmem:[#allocation7 + $0x70] sm:$0xff]
      %v1783 = vld [vmem:[#allocation7 + $0x78] sm:$0xff]
      %v1784 = vld [vmem:[#allocation7 + $0x80] sm:$0xff]
      %v1785 = vld [vmem:[#allocation7 + $0x88] sm:$0xff]
      %v1786 = vld [vmem:[#allocation7 + $0x90] sm:$0xff]
      %v1787 = vld [vmem:[#allocation7 + $0x98] sm:$0xff]
      %v1788 = vld [vmem:[#allocation7 + $0xa0] sm:$0xff]
      %v1789 = vld [vmem:[#allocation7 + $0xa8] sm:$0xff]
      %v1790 = vld [vmem:[#allocation7 + $0xb0] sm:$0xff]
      %v1791 = vld [vmem:[#allocation7 + $0xb8] sm:$0xff]
      %v1792 = vld [vmem:[#allocation7 + $0xc0] sm:$0xff]
      %v1793 = vld [vmem:[#allocation7 + $0xc8] sm:$0xff]
      %v1794 = vld [vmem:[#allocation7 + $0xd0] sm:$0xff]
      %v1795 = vld [vmem:[#allocation7 + $0xd8] sm:$0xff]
      %v1796 = vld [vmem:[#allocation7 + $0xe0] sm:$0xff]
      %v1797 = vld [vmem:[#allocation7 + $0xe8] sm:$0xff]
      %v1798 = vld [vmem:[#allocation7 + $0xf0] sm:$0xff]
      %v1799 = vld [vmem:[#allocation7 + $0xf8] sm:$0xff]
      %s1800 = sld [smem:[#allocation3 + $0x15]]
      %s1801 = sld [smem:[#allocation3 + $0x16]]
      %s1802 = sld [smem:[#allocation3 + $0x17]]
      %v1803 = vstv %s1800
      %v1804 = vmul.f32 %v1768, %v1803
      %v1805 = vmul.f32 %v1769, %v1803
      %v1806 = vmul.f32 %v1770, %v1803
      %v1807 = vmul.f32 %v1771, %v1803
      %v1808 = vmul.f32 %v1772, %v1803
      %v1809 = vmul.f32 %v1773, %v1803
      %v1810 = vmul.f32 %v1774, %v1803
      %v1811 = vmul.f32 %v1775, %v1803
      %v1812 = vmul.f32 %v1776, %v1803
      %v1813 = vmul.f32 %v1777, %v1803
      %v1814 = vmul.f32 %v1778, %v1803
      %v1815 = vmul.f32 %v1779, %v1803
      %v1816 = vmul.f32 %v1780, %v1803
      %v1817 = vmul.f32 %v1781, %v1803
      %v1818 = vmul.f32 %v1782, %v1803
      %v1819 = vmul.f32 %v1783, %v1803
      %v1820 = vmul.f32 %v1784, %v1803
      %v1821 = vmul.f32 %v1785, %v1803
      %v1822 = vmul.f32 %v1786, %v1803
      %v1823 = vmul.f32 %v1787, %v1803
      %v1824 = vmul.f32 %v1788, %v1803
      %v1825 = vmul.f32 %v1789, %v1803
      %v1826 = vmul.f32 %v1790, %v1803
      %v1827 = vmul.f32 %v1791, %v1803
      %v1828 = vmul.f32 %v1792, %v1803
      %v1829 = vmul.f32 %v1793, %v1803
      %v1830 = vmul.f32 %v1794, %v1803
      %v1831 = vmul.f32 %v1795, %v1803
      %v1832 = vmul.f32 %v1796, %v1803
      %v1833 = vmul.f32 %v1797, %v1803
      %v1834 = vmul.f32 %v1798, %v1803
      %v1835 = vmul.f32 %v1799, %v1803
      %s1836 = ssub.f32 0.0, %s1801
      %v1837 = vstv %s1836
      %v1838 = vmax.f32 %v1804, %v1837
      %v1839 = vmax.f32 %v1805, %v1837
      %v1840 = vmax.f32 %v1806, %v1837
      %v1841 = vmax.f32 %v1807, %v1837
      %v1842 = vmax.f32 %v1808, %v1837
      %v1843 = vmax.f32 %v1809, %v1837
      %v1844 = vmax.f32 %v1810, %v1837
      %v1845 = vmax.f32 %v1811, %v1837
      %v1846 = vmax.f32 %v1812, %v1837
      %v1847 = vmax.f32 %v1813, %v1837
      %v1848 = vmax.f32 %v1814, %v1837
      %v1849 = vmax.f32 %v1815, %v1837
      %v1850 = vmax.f32 %v1816, %v1837
      %v1851 = vmax.f32 %v1817, %v1837
      %v1852 = vmax.f32 %v1818, %v1837
      %v1853 = vmax.f32 %v1819, %v1837
      %v1854 = vmax.f32 %v1820, %v1837
      %v1855 = vmax.f32 %v1821, %v1837
      %v1856 = vmax.f32 %v1822, %v1837
      %v1857 = vmax.f32 %v1823, %v1837
      %v1858 = vmax.f32 %v1824, %v1837
      %v1859 = vmax.f32 %v1825, %v1837
      %v1860 = vmax.f32 %v1826, %v1837
      %v1861 = vmax.f32 %v1827, %v1837
      %v1862 = vmax.f32 %v1828, %v1837
      %v1863 = vmax.f32 %v1829, %v1837
      %v1864 = vmax.f32 %v1830, %v1837
      %v1865 = vmax.f32 %v1831, %v1837
      %v1866 = vmax.f32 %v1832, %v1837
      %v1867 = vmax.f32 %v1833, %v1837
      %v1868 = vmax.f32 %v1834, %v1837
      %v1869 = vmax.f32 %v1835, %v1837
      %v1870 = vstv %s1801
      %v1871 = vmin.f32 %v1838, %v1870
      %v1872 = vmin.f32 %v1839, %v1870
      %v1873 = vmin.f32 %v1840, %v1870
      %v1874 = vmin.f32 %v1841, %v1870
      %v1875 = vmin.f32 %v1842, %v1870
      %v1876 = vmin.f32 %v1843, %v1870
      %v1877 = vmin.f32 %v1844, %v1870
      %v1878 = vmin.f32 %v1845, %v1870
      %v1879 = vmin.f32 %v1846, %v1870
      %v1880 = vmin.f32 %v1847, %v1870
      %v1881 = vmin.f32 %v1848, %v1870
      %v1882 = vmin.f32 %v1849, %v1870
      %v1883 = vmin.f32 %v1850, %v1870
      %v1884 = vmin.f32 %v1851, %v1870
      %v1885 = vmin.f32 %v1852, %v1870
      %v1886 = vmin.f32 %v1853, %v1870
      %v1887 = vmin.f32 %v1854, %v1870
      %v1888 = vmin.f32 %v1855, %v1870
      %v1889 = vmin.f32 %v1856, %v1870
      %v1890 = vmin.f32 %v1857, %v1870
      %v1891 = vmin.f32 %v1858, %v1870
      %v1892 = vmin.f32 %v1859, %v1870
      %v1893 = vmin.f32 %v1860, %v1870
      %v1894 = vmin.f32 %v1861, %v1870
      %v1895 = vmin.f32 %v1862, %v1870
      %v1896 = vmin.f32 %v1863, %v1870
      %v1897 = vmin.f32 %v1864, %v1870
      %v1898 = vmin.f32 %v1865, %v1870
      %v1899 = vmin.f32 %v1866, %v1870
      %v1900 = vmin.f32 %v1867, %v1870
      %v1901 = vmin.f32 %v1868, %v1870
      %v1902 = vmin.f32 %v1869, %v1870
      %v1903 = vstv %s1802
      %v1904 = vmul.f32 %v1903, %v1768
      %v1905 = vmul.f32 %v1903, %v1769
      %v1906 = vmul.f32 %v1903, %v1770
      %v1907 = vmul.f32 %v1903, %v1771
      %v1908 = vmul.f32 %v1903, %v1772
      %v1909 = vmul.f32 %v1903, %v1773
      %v1910 = vmul.f32 %v1903, %v1774
      %v1911 = vmul.f32 %v1903, %v1775
      %v1912 = vmul.f32 %v1903, %v1776
      %v1913 = vmul.f32 %v1903, %v1777
      %v1914 = vmul.f32 %v1903, %v1778
      %v1915 = vmul.f32 %v1903, %v1779
      %v1916 = vmul.f32 %v1903, %v1780
      %v1917 = vmul.f32 %v1903, %v1781
      %v1918 = vmul.f32 %v1903, %v1782
      %v1919 = vmul.f32 %v1903, %v1783
      %v1920 = vmul.f32 %v1903, %v1784
      %v1921 = vmul.f32 %v1903, %v1785
      %v1922 = vmul.f32 %v1903, %v1786
      %v1923 = vmul.f32 %v1903, %v1787
      %v1924 = vmul.f32 %v1903, %v1788
      %v1925 = vmul.f32 %v1903, %v1789
      %v1926 = vmul.f32 %v1903, %v1790
      %v1927 = vmul.f32 %v1903, %v1791
      %v1928 = vmul.f32 %v1903, %v1792
      %v1929 = vmul.f32 %v1903, %v1793
      %v1930 = vmul.f32 %v1903, %v1794
      %v1931 = vmul.f32 %v1903, %v1795
      %v1932 = vmul.f32 %v1903, %v1796
      %v1933 = vmul.f32 %v1903, %v1797
      %v1934 = vmul.f32 %v1903, %v1798
      %v1935 = vmul.f32 %v1903, %v1799
      %v1936 = vadd.f32 %v1871, %v1904
      %v1937 = vadd.f32 %v1872, %v1905
      %v1938 = vadd.f32 %v1873, %v1906
      %v1939 = vadd.f32 %v1874, %v1907
      %v1940 = vadd.f32 %v1875, %v1908
      %v1941 = vadd.f32 %v1876, %v1909
      %v1942 = vadd.f32 %v1877, %v1910
      %v1943 = vadd.f32 %v1878, %v1911
      %v1944 = vadd.f32 %v1879, %v1912
      %v1945 = vadd.f32 %v1880, %v1913
      %v1946 = vadd.f32 %v1881, %v1914
      %v1947 = vadd.f32 %v1882, %v1915
      %v1948 = vadd.f32 %v1883, %v1916
      %v1949 = vadd.f32 %v1884, %v1917
      %v1950 = vadd.f32 %v1885, %v1918
      %v1951 = vadd.f32 %v1886, %v1919
      %v1952 = vadd.f32 %v1887, %v1920
      %v1953 = vadd.f32 %v1888, %v1921
      %v1954 = vadd.f32 %v1889, %v1922
      %v1955 = vadd.f32 %v1890, %v1923
      %v1956 = vadd.f32 %v1891, %v1924
      %v1957 = vadd.f32 %v1892, %v1925
      %v1958 = vadd.f32 %v1893, %v1926
      %v1959 = vadd.f32 %v1894, %v1927
      %v1960 = vadd.f32 %v1895, %v1928
      %v1961 = vadd.f32 %v1896, %v1929
      %v1962 = vadd.f32 %v1897, %v1930
      %v1963 = vadd.f32 %v1898, %v1931
      %v1964 = vadd.f32 %v1899, %v1932
      %v1965 = vadd.f32 %v1900, %v1933
      %v1966 = vadd.f32 %v1901, %v1934
      %v1967 = vadd.f32 %v1902, %v1935
      %1968 = vst [vmem:[#allocation7] sm:$0xff] %v1936
      %1969 = vst [vmem:[#allocation7 + $0x8] sm:$0xff] %v1937
      %1970 = vst [vmem:[#allocation7 + $0x10] sm:$0xff] %v1938
      %1971 = vst [vmem:[#allocation7 + $0x18] sm:$0xff] %v1939
      %1972 = vst [vmem:[#allocation7 + $0x20] sm:$0xff] %v1940
      %1973 = vst [vmem:[#allocation7 + $0x28] sm:$0xff] %v1941
      %1974 = vst [vmem:[#allocation7 + $0x30] sm:$0xff] %v1942
      %1975 = vst [vmem:[#allocation7 + $0x38] sm:$0xff] %v1943
      %1976 = vst [vmem:[#allocation7 + $0x40] sm:$0xff] %v1944
      %1977 = vst [vmem:[#allocation7 + $0x48] sm:$0xff] %v1945
      %1978 = vst [vmem:[#allocation7 + $0x50] sm:$0xff] %v1946
      %1979 = vst [vmem:[#allocation7 + $0x58] sm:$0xff] %v1947
      %1980 = vst [vmem:[#allocation7 + $0x60] sm:$0xff] %v1948
      %1981 = vst [vmem:[#allocation7 + $0x68] sm:$0xff] %v1949
      %1982 = vst [vmem:[#allocation7 + $0x70] sm:$0xff] %v1950
      %1983 = vst [vmem:[#allocation7 + $0x78] sm:$0xff] %v1951
      %1984 = vst [vmem:[#allocation7 + $0x80] sm:$0xff] %v1952
      %1985 = vst [vmem:[#allocation7 + $0x88] sm:$0xff] %v1953
      %1986 = vst [vmem:[#allocation7 + $0x90] sm:$0xff] %v1954
      %1987 = vst [vmem:[#allocation7 + $0x98] sm:$0xff] %v1955
      %1988 = vst [vmem:[#allocation7 + $0xa0] sm:$0xff] %v1956
      %1989 = vst [vmem:[#allocation7 + $0xa8] sm:$0xff] %v1957
      %1990 = vst [vmem:[#allocation7 + $0xb0] sm:$0xff] %v1958
      %1991 = vst [vmem:[#allocation7 + $0xb8] sm:$0xff] %v1959
      %1992 = vst [vmem:[#allocation7 + $0xc0] sm:$0xff] %v1960
      %1993 = vst [vmem:[#allocation7 + $0xc8] sm:$0xff] %v1961
      %1994 = vst [vmem:[#allocation7 + $0xd0] sm:$0xff] %v1962
      %1995 = vst [vmem:[#allocation7 + $0xd8] sm:$0xff] %v1963
      %1996 = vst [vmem:[#allocation7 + $0xe0] sm:$0xff] %v1964
      %1997 = vst [vmem:[#allocation7 + $0xe8] sm:$0xff] %v1965
      %1998 = vst [vmem:[#allocation7 + $0xf0] sm:$0xff] %v1966
      %1999 = vst [vmem:[#allocation7 + $0xf8] sm:$0xff] %v1967
      %v2000 = vld [vmem:[#allocation7] sm:$0xff]
      %v2001 = vld [vmem:[#allocation7 + $0x8] sm:$0xff]
      %v2002 = vld [vmem:[#allocation7 + $0x10] sm:$0xff]
      %v2003 = vld [vmem:[#allocation7 + $0x18] sm:$0xff]
      %v2004 = vld [vmem:[#allocation7 + $0x20] sm:$0xff]
      %v2005 = vld [vmem:[#allocation7 + $0x28] sm:$0xff]
      %v2006 = vld [vmem:[#allocation7 + $0x30] sm:$0xff]
      %v2007 = vld [vmem:[#allocation7 + $0x38] sm:$0xff]
      %v2008 = vld [vmem:[#allocation7 + $0x40] sm:$0xff]
      %v2009 = vld [vmem:[#allocation7 + $0x48] sm:$0xff]
      %v2010 = vld [vmem:[#allocation7 + $0x50] sm:$0xff]
      %v2011 = vld [vmem:[#allocation7 + $0x58] sm:$0xff]
      %v2012 = vld [vmem:[#allocation7 + $0x60] sm:$0xff]
      %v2013 = vld [vmem:[#allocation7 + $0x68] sm:$0xff]
      %v2014 = vld [vmem:[#allocation7 + $0x70] sm:$0xff]
      %v2015 = vld [vmem:[#allocation7 + $0x78] sm:$0xff]
      %v2016 = vld [vmem:[#allocation7 + $0x80] sm:$0xff]
      %v2017 = vld [vmem:[#allocation7 + $0x88] sm:$0xff]
      %v2018 = vld [vmem:[#allocation7 + $0x90] sm:$0xff]
      %v2019 = vld [vmem:[#allocation7 + $0x98] sm:$0xff]
      %v2020 = vld [vmem:[#allocation7 + $0xa0] sm:$0xff]
      %v2021 = vld [vmem:[#allocation7 + $0xa8] sm:$0xff]
      %v2022 = vld [vmem:[#allocation7 + $0xb0] sm:$0xff]
      %v2023 = vld [vmem:[#allocation7 + $0xb8] sm:$0xff]
      %v2024 = vld [vmem:[#allocation7 + $0xc0] sm:$0xff]
      %v2025 = vld [vmem:[#allocation7 + $0xc8] sm:$0xff]
      %v2026 = vld [vmem:[#allocation7 + $0xd0] sm:$0xff]
      %v2027 = vld [vmem:[#allocation7 + $0xd8] sm:$0xff]
      %v2028 = vld [vmem:[#allocation7 + $0xe0] sm:$0xff]
      %v2029 = vld [vmem:[#allocation7 + $0xe8] sm:$0xff]
      %v2030 = vld [vmem:[#allocation7 + $0xf0] sm:$0xff]
      %v2031 = vld [vmem:[#allocation7 + $0xf8] sm:$0xff]
      %s2032 = sld [smem:[#allocation3 + $0x18]]
      %s2033 = sld [smem:[#allocation3 + $0x19]]
      %s2034 = sld [smem:[#allocation3 + $0x1a]]
      %v2035 = vstv %s2032
      %v2036 = vmul.f32 %v2000, %v2035
      %v2037 = vmul.f32 %v2001, %v2035
      %v2038 = vmul.f32 %v2002, %v2035
      %v2039 = vmul.f32 %v2003, %v2035
      %v2040 = vmul.f32 %v2004, %v2035
      %v2041 = vmul.f32 %v2005, %v2035
      %v2042 = vmul.f32 %v2006, %v2035
      %v2043 = vmul.f32 %v2007, %v2035
      %v2044 = vmul.f32 %v2008, %v2035
      %v2045 = vmul.f32 %v2009, %v2035
      %v2046 = vmul.f32 %v2010, %v2035
      %v2047 = vmul.f32 %v2011, %v2035
      %v2048 = vmul.f32 %v2012, %v2035
      %v2049 = vmul.f32 %v2013, %v2035
      %v2050 = vmul.f32 %v2014, %v2035
      %v2051 = vmul.f32 %v2015, %v2035
      %v2052 = vmul.f32 %v2016, %v2035
      %v2053 = vmul.f32 %v2017, %v2035
      %v2054 = vmul.f32 %v2018, %v2035
      %v2055 = vmul.f32 %v2019, %v2035
      %v2056 = vmul.f32 %v2020, %v2035
      %v2057 = vmul.f32 %v2021, %v2035
      %v2058 = vmul.f32 %v2022, %v2035
      %v2059 = vmul.f32 %v2023, %v2035
      %v2060 = vmul.f32 %v2024, %v2035
      %v2061 = vmul.f32 %v2025, %v2035
      %v2062 = vmul.f32 %v2026, %v2035
      %v2063 = vmul.f32 %v2027, %v2035
      %v2064 = vmul.f32 %v2028, %v2035
      %v2065 = vmul.f32 %v2029, %v2035
      %v2066 = vmul.f32 %v2030, %v2035
      %v2067 = vmul.f32 %v2031, %v2035
      %s2068 = ssub.f32 0.0, %s2033
      %v2069 = vstv %s2068
      %v2070 = vmax.f32 %v2036, %v2069
      %v2071 = vmax.f32 %v2037, %v2069
      %v2072 = vmax.f32 %v2038, %v2069
      %v2073 = vmax.f32 %v2039, %v2069
      %v2074 = vmax.f32 %v2040, %v2069
      %v2075 = vmax.f32 %v2041, %v2069
      %v2076 = vmax.f32 %v2042, %v2069
      %v2077 = vmax.f32 %v2043, %v2069
      %v2078 = vmax.f32 %v2044, %v2069
      %v2079 = vmax.f32 %v2045, %v2069
      %v2080 = vmax.f32 %v2046, %v2069
      %v2081 = vmax.f32 %v2047, %v2069
      %v2082 = vmax.f32 %v2048, %v2069
      %v2083 = vmax.f32 %v2049, %v2069
      %v2084 = vmax.f32 %v2050, %v2069
      %v2085 = vmax.f32 %v2051, %v2069
      %v2086 = vmax.f32 %v2052, %v2069
      %v2087 = vmax.f32 %v2053, %v2069
      %v2088 = vmax.f32 %v2054, %v2069
      %v2089 = vmax.f32 %v2055, %v2069
      %v2090 = vmax.f32 %v2056, %v2069
      %v2091 = vmax.f32 %v2057, %v2069
      %v2092 = vmax.f32 %v2058, %v2069
      %v2093 = vmax.f32 %v2059, %v2069
      %v2094 = vmax.f32 %v2060, %v2069
      %v2095 = vmax.f32 %v2061, %v2069
      %v2096 = vmax.f32 %v2062, %v2069
      %v2097 = vmax.f32 %v2063, %v2069
      %v2098 = vmax.f32 %v2064, %v2069
      %v2099 = vmax.f32 %v2065, %v2069
      %v2100 = vmax.f32 %v2066, %v2069
      %v2101 = vmax.f32 %v2067, %v2069
      %v2102 = vstv %s2033
      %v2103 = vmin.f32 %v2070, %v2102
      %v2104 = vmin.f32 %v2071, %v2102
      %v2105 = vmin.f32 %v2072, %v2102
      %v2106 = vmin.f32 %v2073, %v2102
      %v2107 = vmin.f32 %v2074, %v2102
      %v2108 = vmin.f32 %v2075, %v2102
      %v2109 = vmin.f32 %v2076, %v2102
      %v2110 = vmin.f32 %v2077, %v2102
      %v2111 = vmin.f32 %v2078, %v2102
      %v2112 = vmin.f32 %v2079, %v2102
      %v2113 = vmin.f32 %v2080, %v2102
      %v2114 = vmin.f32 %v2081, %v2102
      %v2115 = vmin.f32 %v2082, %v2102
      %v2116 = vmin.f32 %v2083, %v2102
      %v2117 = vmin.f32 %v2084, %v2102
      %v2118 = vmin.f32 %v2085, %v2102
      %v2119 = vmin.f32 %v2086, %v2102
      %v2120 = vmin.f32 %v2087, %v2102
      %v2121 = vmin.f32 %v2088, %v2102
      %v2122 = vmin.f32 %v2089, %v2102
      %v2123 = vmin.f32 %v2090, %v2102
      %v2124 = vmin.f32 %v2091, %v2102
      %v2125 = vmin.f32 %v2092, %v2102
      %v2126 = vmin.f32 %v2093, %v2102
      %v2127 = vmin.f32 %v2094, %v2102
      %v2128 = vmin.f32 %v2095, %v2102
      %v2129 = vmin.f32 %v2096, %v2102
      %v2130 = vmin.f32 %v2097, %v2102
      %v2131 = vmin.f32 %v2098, %v2102
      %v2132 = vmin.f32 %v2099, %v2102
      %v2133 = vmin.f32 %v2100, %v2102
      %v2134 = vmin.f32 %v2101, %v2102
      %v2135 = vstv %s2034
      %v2136 = vmul.f32 %v2135, %v2000
      %v2137 = vmul.f32 %v2135, %v2001
      %v2138 = vmul.f32 %v2135, %v2002
      %v2139 = vmul.f32 %v2135, %v2003
      %v2140 = vmul.f32 %v2135, %v2004
      %v2141 = vmul.f32 %v2135, %v2005
      %v2142 = vmul.f32 %v2135, %v2006
      %v2143 = vmul.f32 %v2135, %v2007
      %v2144 = vmul.f32 %v2135, %v2008
      %v2145 = vmul.f32 %v2135, %v2009
      %v2146 = vmul.f32 %v2135, %v2010
      %v2147 = vmul.f32 %v2135, %v2011
      %v2148 = vmul.f32 %v2135, %v2012
      %v2149 = vmul.f32 %v2135, %v2013
      %v2150 = vmul.f32 %v2135, %v2014
      %v2151 = vmul.f32 %v2135, %v2015
      %v2152 = vmul.f32 %v2135, %v2016
      %v2153 = vmul.f32 %v2135, %v2017
      %v2154 = vmul.f32 %v2135, %v2018
      %v2155 = vmul.f32 %v2135, %v2019
      %v2156 = vmul.f32 %v2135, %v2020
      %v2157 = vmul.f32 %v2135, %v2021
      %v2158 = vmul.f32 %v2135, %v2022
      %v2159 = vmul.f32 %v2135, %v2023
      %v2160 = vmul.f32 %v2135, %v2024
      %v2161 = vmul.f32 %v2135, %v2025
      %v2162 = vmul.f32 %v2135, %v2026
      %v2163 = vmul.f32 %v2135, %v2027
      %v2164 = vmul.f32 %v2135, %v2028
      %v2165 = vmul.f32 %v2135, %v2029
      %v2166 = vmul.f32 %v2135, %v2030
      %v2167 = vmul.f32 %v2135, %v2031
      %v2168 = vadd.f32 %v2103, %v2136
      %v2169 = vadd.f32 %v2104, %v2137
      %v2170 = vadd.f32 %v2105, %v2138
      %v2171 = vadd.f32 %v2106, %v2139
      %v2172 = vadd.f32 %v2107, %v2140
      %v2173 = vadd.f32 %v2108, %v2141
      %v2174 = vadd.f32 %v2109, %v2142
      %v2175 = vadd.f32 %v2110, %v2143
      %v2176 = vadd.f32 %v2111, %v2144
      %v2177 = vadd.f32 %v2112, %v2145
      %v2178 = vadd.f32 %v2113, %v2146
      %v2179 = vadd.f32 %v2114, %v2147
      %v2180 = vadd.f32 %v2115, %v2148
      %v2181 = vadd.f32 %v2116, %v2149
      %v2182 = vadd.f32 %v2117, %v2150
      %v2183 = vadd.f32 %v2118, %v2151
      %v2184 = vadd.f32 %v2119, %v2152
      %v2185 = vadd.f32 %v2120, %v2153
      %v2186 = vadd.f32 %v2121, %v2154
      %v2187 = vadd.f32 %v2122, %v2155
      %v2188 = vadd.f32 %v2123, %v2156
      %v2189 = vadd.f32 %v2124, %v2157
      %v2190 = vadd.f32 %v2125, %v2158
      %v2191 = vadd.f32 %v2126, %v2159
      %v2192 = vadd.f32 %v2127, %v2160
      %v2193 = vadd.f32 %v2128, %v2161
      %v2194 = vadd.f32 %v2129, %v2162
      %v2195 = vadd.f32 %v2130, %v2163
      %v2196 = vadd.f32 %v2131, %v2164
      %v2197 = vadd.f32 %v2132, %v2165
      %v2198 = vadd.f32 %v2133, %v2166
      %v2199 = vadd.f32 %v2134, %v2167
      %2200 = vst [vmem:[#allocation7] sm:$0xff] %v2168
      %2201 = vst [vmem:[#allocation7 + $0x8] sm:$0xff] %v2169
      %2202 = vst [vmem:[#allocation7 + $0x10] sm:$0xff] %v2170
      %2203 = vst [vmem:[#allocation7 + $0x18] sm:$0xff] %v2171
      %2204 = vst [vmem:[#allocation7 + $0x20] sm:$0xff] %v2172
      %2205 = vst [vmem:[#allocation7 + $0x28] sm:$0xff] %v2173
      %2206 = vst [vmem:[#allocation7 + $0x30] sm:$0xff] %v2174
      %2207 = vst [vmem:[#allocation7 + $0x38] sm:$0xff] %v2175
      %2208 = vst [vmem:[#allocation7 + $0x40] sm:$0xff] %v2176
      %2209 = vst [vmem:[#allocation7 + $0x48] sm:$0xff] %v2177
      %2210 = vst [vmem:[#allocation7 + $0x50] sm:$0xff] %v2178
      %2211 = vst [vmem:[#allocation7 + $0x58] sm:$0xff] %v2179
      %2212 = vst [vmem:[#allocation7 + $0x60] sm:$0xff] %v2180
      %2213 = vst [vmem:[#allocation7 + $0x68] sm:$0xff] %v2181
      %2214 = vst [vmem:[#allocation7 + $0x70] sm:$0xff] %v2182
      %2215 = vst [vmem:[#allocation7 + $0x78] sm:$0xff] %v2183
      %2216 = vst [vmem:[#allocation7 + $0x80] sm:$0xff] %v2184
      %2217 = vst [vmem:[#allocation7 + $0x88] sm:$0xff] %v2185
      %2218 = vst [vmem:[#allocation7 + $0x90] sm:$0xff] %v2186
      %2219 = vst [vmem:[#allocation7 + $0x98] sm:$0xff] %v2187
      %2220 = vst [vmem:[#allocation7 + $0xa0] sm:$0xff] %v2188
      %2221 = vst [vmem:[#allocation7 + $0xa8] sm:$0xff] %v2189
      %2222 = vst [vmem:[#allocation7 + $0xb0] sm:$0xff] %v2190
      %2223 = vst [vmem:[#allocation7 + $0xb8] sm:$0xff] %v2191
      %2224 = vst [vmem:[#allocation7 + $0xc0] sm:$0xff] %v2192
      %2225 = vst [vmem:[#allocation7 + $0xc8] sm:$0xff] %v2193
      %2226 = vst [vmem:[#allocation7 + $0xd0] sm:$0xff] %v2194
      %2227 = vst [vmem:[#allocation7 + $0xd8] sm:$0xff] %v2195
      %2228 = vst [vmem:[#allocation7 + $0xe0] sm:$0xff] %v2196
      %2229 = vst [vmem:[#allocation7 + $0xe8] sm:$0xff] %v2197
      %2230 = vst [vmem:[#allocation7 + $0xf0] sm:$0xff] %v2198
      %2231 = vst [vmem:[#allocation7 + $0xf8] sm:$0xff] %v2199
      %v2232 = vld [vmem:[#allocation7] sm:$0xff]
      %v2233 = vld [vmem:[#allocation7 + $0x8] sm:$0xff]
      %v2234 = vld [vmem:[#allocation7 + $0x10] sm:$0xff]
      %v2235 = vld [vmem:[#allocation7 + $0x18] sm:$0xff]
      %v2236 = vld [vmem:[#allocation7 + $0x20] sm:$0xff]
      %v2237 = vld [vmem:[#allocation7 + $0x28] sm:$0xff]
      %v2238 = vld [vmem:[#allocation7 + $0x30] sm:$0xff]
      %v2239 = vld [vmem:[#allocation7 + $0x38] sm:$0xff]
      %v2240 = vld [vmem:[#allocation7 + $0x40] sm:$0xff]
      %v2241 = vld [vmem:[#allocation7 + $0x48] sm:$0xff]
      %v2242 = vld [vmem:[#allocation7 + $0x50] sm:$0xff]
      %v2243 = vld [vmem:[#allocation7 + $0x58] sm:$0xff]
      %v2244 = vld [vmem:[#allocation7 + $0x60] sm:$0xff]
      %v2245 = vld [vmem:[#allocation7 + $0x68] sm:$0xff]
      %v2246 = vld [vmem:[#allocation7 + $0x70] sm:$0xff]
      %v2247 = vld [vmem:[#allocation7 + $0x78] sm:$0xff]
      %v2248 = vld [vmem:[#allocation7 + $0x80] sm:$0xff]
      %v2249 = vld [vmem:[#allocation7 + $0x88] sm:$0xff]
      %v2250 = vld [vmem:[#allocation7 + $0x90] sm:$0xff]
      %v2251 = vld [vmem:[#allocation7 + $0x98] sm:$0xff]
      %v2252 = vld [vmem:[#allocation7 + $0xa0] sm:$0xff]
      %v2253 = vld [vmem:[#allocation7 + $0xa8] sm:$0xff]
      %v2254 = vld [vmem:[#allocation7 + $0xb0] sm:$0xff]
      %v2255 = vld [vmem:[#allocation7 + $0xb8] sm:$0xff]
      %v2256 = vld [vmem:[#allocation7 + $0xc0] sm:$0xff]
      %v2257 = vld [vmem:[#allocation7 + $0xc8] sm:$0xff]
      %v2258 = vld [vmem:[#allocation7 + $0xd0] sm:$0xff]
      %v2259 = vld [vmem:[#allocation7 + $0xd8] sm:$0xff]
      %v2260 = vld [vmem:[#allocation7 + $0xe0] sm:$0xff]
      %v2261 = vld [vmem:[#allocation7 + $0xe8] sm:$0xff]
      %v2262 = vld [vmem:[#allocation7 + $0xf0] sm:$0xff]
      %v2263 = vld [vmem:[#allocation7 + $0xf8] sm:$0xff]
      %s2264 = sld [smem:[#allocation3 + $0x1b]]
      %s2265 = sld [smem:[#allocation3 + $0x1c]]
      %s2266 = sld [smem:[#allocation3 + $0x1d]]
      %v2267 = vstv %s2264
      %v2268 = vmul.f32 %v2232, %v2267
      %v2269 = vmul.f32 %v2233, %v2267
      %v2270 = vmul.f32 %v2234, %v2267
      %v2271 = vmul.f32 %v2235, %v2267
      %v2272 = vmul.f32 %v2236, %v2267
      %v2273 = vmul.f32 %v2237, %v2267
      %v2274 = vmul.f32 %v2238, %v2267
      %v2275 = vmul.f32 %v2239, %v2267
      %v2276 = vmul.f32 %v2240, %v2267
      %v2277 = vmul.f32 %v2241, %v2267
      %v2278 = vmul.f32 %v2242, %v2267
      %v2279 = vmul.f32 %v2243, %v2267
      %v2280 = vmul.f32 %v2244, %v2267
      %v2281 = vmul.f32 %v2245, %v2267
      %v2282 = vmul.f32 %v2246, %v2267
      %v2283 = vmul.f32 %v2247, %v2267
      %v2284 = vmul.f32 %v2248, %v2267
      %v2285 = vmul.f32 %v2249, %v2267
      %v2286 = vmul.f32 %v2250, %v2267
      %v2287 = vmul.f32 %v2251, %v2267
      %v2288 = vmul.f32 %v2252, %v2267
      %v2289 = vmul.f32 %v2253, %v2267
      %v2290 = vmul.f32 %v2254, %v2267
      %v2291 = vmul.f32 %v2255, %v2267
      %v2292 = vmul.f32 %v2256, %v2267
      %v2293 = vmul.f32 %v2257, %v2267
      %v2294 = vmul.f32 %v2258, %v2267
      %v2295 = vmul.f32 %v2259, %v2267
      %v2296 = vmul.f32 %v2260, %v2267
      %v2297 = vmul.f32 %v2261, %v2267
      %v2298 = vmul.f32 %v2262, %v2267
      %v2299 = vmul.f32 %v2263, %v2267
      %s2300 = ssub.f32 0.0, %s2265
      %v2301 = vstv %s2300
      %v2302 = vmax.f32 %v2268, %v2301
      %v2303 = vmax.f32 %v2269, %v2301
      %v2304 = vmax.f32 %v2270, %v2301
      %v2305 = vmax.f32 %v2271, %v2301
      %v2306 = vmax.f32 %v2272, %v2301
      %v2307 = vmax.f32 %v2273, %v2301
      %v2308 = vmax.f32 %v2274, %v2301
      %v2309 = vmax.f32 %v2275, %v2301
      %v2310 = vmax.f32 %v2276, %v2301
      %v2311 = vmax.f32 %v2277, %v2301
      %v2312 = vmax.f32 %v2278, %v2301
      %v2313 = vmax.f32 %v2279, %v2301
      %v2314 = vmax.f32 %v2280, %v2301
      %v2315 = vmax.f32 %v2281, %v2301
      %v2316 = vmax.f32 %v2282, %v2301
      %v2317 = vmax.f32 %v2283, %v2301
      %v2318 = vmax.f32 %v2284, %v2301
      %v2319 = vmax.f32 %v2285, %v2301
      %v2320 = vmax.f32 %v2286, %v2301
      %v2321 = vmax.f32 %v2287, %v2301
      %v2322 = vmax.f32 %v2288, %v2301
      %v2323 = vmax.f32 %v2289, %v2301
      %v2324 = vmax.f32 %v2290, %v2301
      %v2325 = vmax.f32 %v2291, %v2301
      %v2326 = vmax.f32 %v2292, %v2301
      %v2327 = vmax.f32 %v2293, %v2301
      %v2328 = vmax.f32 %v2294, %v2301
      %v2329 = vmax.f32 %v2295, %v2301
      %v2330 = vmax.f32 %v2296, %v2301
      %v2331 = vmax.f32 %v2297, %v2301
      %v2332 = vmax.f32 %v2298, %v2301
      %v2333 = vmax.f32 %v2299, %v2301
      %v2334 = vstv %s2265
      %v2335 = vmin.f32 %v2302, %v2334
      %v2336 = vmin.f32 %v2303, %v2334
      %v2337 = vmin.f32 %v2304, %v2334
      %v2338 = vmin.f32 %v2305, %v2334
      %v2339 = vmin.f32 %v2306, %v2334
      %v2340 = vmin.f32 %v2307, %v2334
      %v2341 = vmin.f32 %v2308, %v2334
      %v2342 = vmin.f32 %v2309, %v2334
      %v2343 = vmin.f32 %v2310, %v2334
      %v2344 = vmin.f32 %v2311, %v2334
      %v2345 = vmin.f32 %v2312, %v2334
      %v2346 = vmin.f32 %v2313, %v2334
      %v2347 = vmin.f32 %v2314, %v2334
      %v2348 = vmin.f32 %v2315, %v2334
      %v2349 = vmin.f32 %v2316, %v2334
      %v2350 = vmin.f32 %v2317, %v2334
      %v2351 = vmin.f32 %v2318, %v2334
      %v2352 = vmin.f32 %v2319, %v2334
      %v2353 = vmin.f32 %v2320, %v2334
      %v2354 = vmin.f32 %v2321, %v2334
      %v2355 = vmin.f32 %v2322, %v2334
      %v2356 = vmin.f32 %v2323, %v2334
      %v2357 = vmin.f32 %v2324, %v2334
      %v2358 = vmin.f32 %v2325, %v2334
      %v2359 = vmin.f32 %v2326, %v2334
      %v2360 = vmin.f32 %v2327, %v2334
      %v2361 = vmin.f32 %v2328, %v2334
      %v2362 = vmin.f32 %v2329, %v2334
      %v2363 = vmin.f32 %v2330, %v2334
      %v2364 = vmin.f32 %v2331, %v2334
      %v2365 = vmin.f32 %v2332, %v2334
      %v2366 = vmin.f32 %v2333, %v2334
      %v2367 = vstv %s2266
      %v2368 = vmul.f32 %v2367, %v2232
      %v2369 = vmul.f32 %v2367, %v2233
      %v2370 = vmul.f32 %v2367, %v2234
      %v2371 = vmul.f32 %v2367, %v2235
      %v2372 = vmul.f32 %v2367, %v2236
      %v2373 = vmul.f32 %v2367, %v2237
      %v2374 = vmul.f32 %v2367, %v2238
      %v2375 = vmul.f32 %v2367, %v2239
      %v2376 = vmul.f32 %v2367, %v2240
      %v2377 = vmul.f32 %v2367, %v2241
      %v2378 = vmul.f32 %v2367, %v2242
      %v2379 = vmul.f32 %v2367, %v2243
      %v2380 = vmul.f32 %v2367, %v2244
      %v2381 = vmul.f32 %v2367, %v2245
      %v2382 = vmul.f32 %v2367, %v2246
      %v2383 = vmul.f32 %v2367, %v2247
      %v2384 = vmul.f32 %v2367, %v2248
      %v2385 = vmul.f32 %v2367, %v2249
      %v2386 = vmul.f32 %v2367, %v2250
      %v2387 = vmul.f32 %v2367, %v2251
      %v2388 = vmul.f32 %v2367, %v2252
      %v2389 = vmul.f32 %v2367, %v2253
      %v2390 = vmul.f32 %v2367, %v2254
      %v2391 = vmul.f32 %v2367, %v2255
      %v2392 = vmul.f32 %v2367, %v2256
      %v2393 = vmul.f32 %v2367, %v2257
      %v2394 = vmul.f32 %v2367, %v2258
      %v2395 = vmul.f32 %v2367, %v2259
      %v2396 = vmul.f32 %v2367, %v2260
      %v2397 = vmul.f32 %v2367, %v2261
      %v2398 = vmul.f32 %v2367, %v2262
      %v2399 = vmul.f32 %v2367, %v2263
      %v2400 = vadd.f32 %v2335, %v2368
      %v2401 = vadd.f32 %v2336, %v2369
      %v2402 = vadd.f32 %v2337, %v2370
      %v2403 = vadd.f32 %v2338, %v2371
      %v2404 = vadd.f32 %v2339, %v2372
      %v2405 = vadd.f32 %v2340, %v2373
      %v2406 = vadd.f32 %v2341, %v2374
      %v2407 = vadd.f32 %v2342, %v2375
      %v2408 = vadd.f32 %v2343, %v2376
      %v2409 = vadd.f32 %v2344, %v2377
      %v2410 = vadd.f32 %v2345, %v2378
      %v2411 = vadd.f32 %v2346, %v2379
      %v2412 = vadd.f32 %v2347, %v2380
      %v2413 = vadd.f32 %v2348, %v2381
      %v2414 = vadd.f32 %v2349, %v2382
      %v2415 = vadd.f32 %v2350, %v2383
      %v2416 = vadd.f32 %v2351, %v2384
      %v2417 = vadd.f32 %v2352, %v2385
      %v2418 = vadd.f32 %v2353, %v2386
      %v2419 = vadd.f32 %v2354, %v2387
      %v2420 = vadd.f32 %v2355, %v2388
      %v2421 = vadd.f32 %v2356, %v2389
      %v2422 = vadd.f32 %v2357, %v2390
      %v2423 = vadd.f32 %v2358, %v2391
      %v2424 = vadd.f32 %v2359, %v2392
      %v2425 = vadd.f32 %v2360, %v2393
      %v2426 = vadd.f32 %v2361, %v2394
      %v2427 = vadd.f32 %v2362, %v2395
      %v2428 = vadd.f32 %v2363, %v2396
      %v2429 = vadd.f32 %v2364, %v2397
      %v2430 = vadd.f32 %v2365, %v2398
      %v2431 = vadd.f32 %v2366, %v2399
      %2432 = vst [vmem:[#allocation7] sm:$0xff] %v2400
      %2433 = vst [vmem:[#allocation7 + $0x8] sm:$0xff] %v2401
      %2434 = vst [vmem:[#allocation7 + $0x10] sm:$0xff] %v2402
      %2435 = vst [vmem:[#allocation7 + $0x18] sm:$0xff] %v2403
      %2436 = vst [vmem:[#allocation7 + $0x20] sm:$0xff] %v2404
      %2437 = vst [vmem:[#allocation7 + $0x28] sm:$0xff] %v2405
      %2438 = vst [vmem:[#allocation7 + $0x30] sm:$0xff] %v2406
      %2439 = vst [vmem:[#allocation7 + $0x38] sm:$0xff] %v2407
      %2440 = vst [vmem:[#allocation7 + $0x40] sm:$0xff] %v2408
      %2441 = vst [vmem:[#allocation7 + $0x48] sm:$0xff] %v2409
      %2442 = vst [vmem:[#allocation7 + $0x50] sm:$0xff] %v2410
      %2443 = vst [vmem:[#allocation7 + $0x58] sm:$0xff] %v2411
      %2444 = vst [vmem:[#allocation7 + $0x60] sm:$0xff] %v2412
      %2445 = vst [vmem:[#allocation7 + $0x68] sm:$0xff] %v2413
      %2446 = vst [vmem:[#allocation7 + $0x70] sm:$0xff] %v2414
      %2447 = vst [vmem:[#allocation7 + $0x78] sm:$0xff] %v2415
      %2448 = vst [vmem:[#allocation7 + $0x80] sm:$0xff] %v2416
      %2449 = vst [vmem:[#allocation7 + $0x88] sm:$0xff] %v2417
      %2450 = vst [vmem:[#allocation7 + $0x90] sm:$0xff] %v2418
      %2451 = vst [vmem:[#allocation7 + $0x98] sm:$0xff] %v2419
      %2452 = vst [vmem:[#allocation7 + $0xa0] sm:$0xff] %v2420
      %2453 = vst [vmem:[#allocation7 + $0xa8] sm:$0xff] %v2421
      %2454 = vst [vmem:[#allocation7 + $0xb0] sm:$0xff] %v2422
      %2455 = vst [vmem:[#allocation7 + $0xb8] sm:$0xff] %v2423
      %2456 = vst [vmem:[#allocation7 + $0xc0] sm:$0xff] %v2424
      %2457 = vst [vmem:[#allocation7 + $0xc8] sm:$0xff] %v2425
      %2458 = vst [vmem:[#allocation7 + $0xd0] sm:$0xff] %v2426
      %2459 = vst [vmem:[#allocation7 + $0xd8] sm:$0xff] %v2427
      %2460 = vst [vmem:[#allocation7 + $0xe0] sm:$0xff] %v2428
      %2461 = vst [vmem:[#allocation7 + $0xe8] sm:$0xff] %v2429
      %2462 = vst [vmem:[#allocation7 + $0xf0] sm:$0xff] %v2430
      %2463 = vst [vmem:[#allocation7 + $0xf8] sm:$0xff] %v2431
    $region13: #{tpu_custom_call.1} parent=1 // pred_fallthru
      _
    // Predicated region
    $region14: #{tpu_custom_call.1} parent=1 // pred_check
      _
    $region15: #{tpu_custom_call.1} parent=1 // pred_check_branch
      %2465 = sbr.rel (0) target = $region17
    $region16: #{tpu_custom_call.1} parent=1 // pred_region
      %2467 = vsyncadd [#allocation6], 0
      %s2468 = sshll.u32 [#allocation7], 4
      %s2469 = int_to_ptr.vmem [resolvable:$true] %s2468
      %s2470 = sshll.u32 %s2, 4
      %s2471 = int_to_ptr.hbm [resolvable:$true] %s2470
      %2476 = dma.vmem_to_hbm [thread:$0]  %s2469, 4096, %s2471, [#allocation6], 128, 128, 8
    $region17: #{tpu_custom_call.1} parent=1 // pred_fallthru
      _
    // Predicated region
    $region18: #{tpu_custom_call.1} parent=1 // pred_check
      _
    $region19: #{tpu_custom_call.1} parent=1 // pred_check_branch
      %2478 = sbr.rel (0) target = $region21
    $region20: #{tpu_custom_call.1} parent=1 // pred_region
      %2480 = dma.done [#allocation6], 4096
    $region21: #{tpu_custom_call.1} parent=1 // pred_fallthru
      _
    %2481 = vsyncpa [#allocation5], 1
    %2482 = vsyncpa [#allocation6], 1

</llo_original>
